<compile_context>
chip_gen: v5e
topology: v5e:2x2
jax: 0.10.0
libtpu: 0.0.40
codegen_flags: <defaults>
</compile_context>

<pallas_src>
import functools

import jax
import jax.numpy as jnp
from jax import lax
from jax.experimental import pallas as pl
from jax.experimental.pallas import tpu as pltpu


_LANE = 128


def _round_up(x, m):
    return (x + m - 1) // m * m


def _cdiv(a, b):
    return -(-a // b)


def _vmem_config():
    """(budget, vmem_limit, tm_max) gated by generation; v7x-safe defaults."""
    budget, limit, tm_max = 16 << 20, 32 << 20, 512          # v7x / unknown
    try:
        vmem = pltpu.get_tpu_info().vmem_capacity_bytes
        if vmem >= (100 << 20):                               # v5e / v6e: 128 MiB
            budget, limit, tm_max = 48 << 20, 96 << 20, 1024
    except Exception:
        pass
    return budget, limit, tm_max


# ----------------------------- Pallas kernels ------------------------------

def _conv_block_kernel(p_ref, w_ref, s_ref, o_ref):
    """Fused im2col-matmul (bf16 -> f32 acc) + folded(bias+BN) + LeakyReLU."""
    y = jnp.dot(p_ref[...], w_ref[...], preferred_element_type=jnp.float32)
    y = y + s_ref[...]                       # folded conv bias + BN shift (f32)
    y = jnp.where(y >= 0.0, y, 0.2 * y)
    o_ref[...] = y.astype(o_ref.dtype)


def _choose_tiling(m, k_dim, c_out, budget, tm_max):
    """Pick (tm, m_pad).  Patches/output tiles are double-buffered bf16; the
    resident weight block is charged once; M is padded to a multiple of 16
    and tm chosen to minimise tail waste."""
    resident = 2 * k_dim * c_out + 4 * c_out          # bf16 weights (once) + f32 shift

    def fits(tm):
        streamed = 2 * tm * k_dim * 2 + 2 * tm * c_out * 2
        return streamed + resident <= budget

    tm = tm_max
    while tm > 16 and not fits(tm):
        tm //= 2

    m_al = _round_up(m, 16)
    if m_al <= tm:
        return m_al, m_al
    n_tiles = _cdiv(m_al, tm)
    tm = _round_up(_cdiv(m_al, n_tiles), 16)
    return tm, n_tiles * tm


def conv_bn_lrelu_pallas(patches, w_mat, shift, tm, vmem_limit):
    """patches: (M_pad, K) bf16, w_mat: (K, Cp) bf16, shift: (1, Cp) f32."""
    m_pad, k = patches.shape
    c = w_mat.shape[1]
    grid_m = m_pad // tm
    return pl.pallas_call(
        _conv_block_kernel,
        out_shape=jax.ShapeDtypeStruct((m_pad, c), jnp.bfloat16),
        grid=(grid_m,),
        in_specs=[
            pl.BlockSpec((tm, k), lambda i: (i, 0)),    # patches: tiled over M
            pl.BlockSpec((k, c), lambda i: (0, 0)),     # weights: resident
            pl.BlockSpec((1, c), lambda i: (0, 0)),     # shift:   resident
        ],
        out_specs=pl.BlockSpec((tm, c), lambda i: (i, 0)),
        compiler_params=pltpu.CompilerParams(
            dimension_semantics=("parallel",),
            vmem_limit_bytes=vmem_limit,
            allow_input_fusion=[True, False, False],
        ),
    )(patches, w_mat, shift)


def _head_kernel(f_ref, w1_ref, b1_ref, w2_ref, b2_ref, o_ref, *, inv_hw):
    """AdaptiveAvgPool2d(1) + Linear + LeakyReLU(0.2) + Linear (f32 math)."""
    pooled = jnp.sum(f_ref[...].astype(jnp.float32), axis=1) * inv_hw   # (B, Cp)
    h = jnp.dot(pooled, w1_ref[...],
                preferred_element_type=jnp.float32) + b1_ref[...]
    h = jnp.where(h >= 0.0, h, 0.2 * h)
    o_ref[...] = jnp.dot(h, w2_ref[...],
                         preferred_element_type=jnp.float32) + b2_ref[...]


def head_pallas(feat, w1t, b1, w2t, b2, hw):
    """feat: (B, HW, Cp) bf16; w1t: (Cp, H1p); b1: (1, H1p); w2t: (H1p, 1)."""
    b_sz, hw_sz, c = feat.shape
    h1 = w1t.shape[1]
    kernel = functools.partial(_head_kernel, inv_hw=1.0 / float(hw))
    return pl.pallas_call(
        kernel,
        out_shape=jax.ShapeDtypeStruct((b_sz, 1), jnp.float32),
        grid=(1,),
        in_specs=[
            pl.BlockSpec((b_sz, hw_sz, c), lambda i: (0, 0, 0)),
            pl.BlockSpec((c, h1), lambda i: (0, 0)),
            pl.BlockSpec((1, h1), lambda i: (0, 0)),
            pl.BlockSpec((h1, 1), lambda i: (0, 0)),
            pl.BlockSpec((1, 1), lambda i: (0, 0)),
        ],
        out_specs=pl.BlockSpec((b_sz, 1), lambda i: (0, 0)),
        compiler_params=pltpu.CompilerParams(
            dimension_semantics=("arbitrary",)),
    )(feat, w1t, b1, w2t, b2)


# ----------------------------- JAX glue -------------------------------------

def im2col(x_nhwc, k, stride, pad):
    """Extract conv patches. Returns ((N*Ho*Wo, k*k*C), Ho, Wo)."""
    N, H, W, C = x_nhwc.shape
    xp = jnp.pad(x_nhwc, ((0, 0), (pad, pad), (pad, pad), (0, 0)))
    Ho = (H + 2 * pad - k) // stride + 1
    Wo = (W + 2 * pad - k) // stride + 1
    cols = []
    for i in range(k):
        for j in range(k):
            cols.append(xp[:, i:i + stride * Ho:stride,
                           j:j + stride * Wo:stride, :])
    patches = jnp.stack(cols, axis=3)            # (N, Ho, Wo, k*k, C)
    return patches.reshape(N * Ho * Wo, k * k * C), Ho, Wo


def _fold_weights(w, b, scale, shift, k_pad, c_pad):
    """PyTorch conv weight (O, I, kh, kw) -> bf16 (K_pad, Cp), f32 shift (1, Cp).

    BN scale folded into the weight, conv bias + BN shift folded into the
    shift vector.  Zero pads (K rows, output cols) are exact no-ops.
    """
    cout, cin, kh, kw = w.shape
    # (O, I, kh, kw) -> (kh, kw, I, O) -> (K, O); matches im2col (kh,kw,C) order.
    w_mat = jnp.transpose(w, (2, 3, 1, 0)).reshape(kh * kw * cin, cout)
    w_mat = w_mat * scale[None, :]                       # fold BN scale (f32)
    sh = (b * scale + shift)[None, :]                    # fold bias into shift
    w_mat = jnp.pad(w_mat, ((0, k_pad - kh * kw * cin), (0, c_pad - cout)))
    sh = jnp.pad(sh, ((0, 0), (0, c_pad - cout)))
    return w_mat.astype(jnp.bfloat16), sh


def discriminator_forward(x_nchw, params):
    budget, vmem_limit, tm_max = _vmem_config()
    x = jnp.transpose(x_nchw, (0, 2, 3, 1)).astype(jnp.bfloat16)   # NCHW -> NHWC
    for (w, b, scale, shift, k, stride, pad) in params["convs"]:
        cout, cin = w.shape[0], w.shape[1]
        if x.shape[-1] > cin:
            x = x[..., :cin]                 # drop lane padding before contraction
        N = x.shape[0]
        patches, Ho, Wo = im2col(x, k, stride, pad)
        m, k_true = patches.shape
        # Pad K for MXU depth / lane alignment (exact zero pad): layer-1's
        # K=27 -> 128; larger K only to a multiple of 16 (bf16 sublane pack).
        k_pad = _LANE if k_true <= _LANE else _round_up(k_true, 16)
        c_pad = _round_up(cout, _LANE)       # lane-dense output store
        w_mat, sh = _fold_weights(w, b, scale, shift, k_pad, c_pad)
        tm, m_pad = _choose_tiling(m, k_pad, c_pad, budget, tm_max)
        patches = jnp.pad(patches, ((0, m_pad - m), (0, k_pad - k_true)))
        y = conv_bn_lrelu_pallas(patches, w_mat, sh, tm, vmem_limit)
        x = y[:m].reshape(N, Ho, Wo, c_pad)  # padded channels stay exactly 0

    N, H, W, c_pad = x.shape
    feat = x.reshape(N, H * W, c_pad)        # contiguous -> free reshape
    c_true = params["w1"].shape[1]
    h1_true = params["w1"].shape[0]
    h1_pad = _round_up(h1_true, _LANE)       # 100 -> 128 (exact zero pad)
    w1t = jnp.pad(params["w1"].T, ((0, c_pad - c_true), (0, h1_pad - h1_true)))
    b1 = jnp.pad(params["b1"], (0, h1_pad - h1_true)).reshape(1, -1)
    w2t = jnp.pad(params["w2"].T, ((0, h1_pad - h1_true), (0, 0)))
    b2 = params["b2"].reshape(1, 1)
    return head_pallas(feat, w1t, b1, w2t, b2, H * W)


# ----------------------------- reference (pure JAX) --------------------------
# Mirrors the kernel's bf16 rounding points (bf16 conv operands, f32 accumulate
# and epilogue, bf16 inter-layer activations) so only summation-order differs.

def discriminator_reference(x_nchw, params):
    x = jnp.transpose(x_nchw, (0, 2, 3, 1)).astype(jnp.bfloat16)
    for (w, b, scale, shift, k, stride, pad) in params["convs"]:
        w_hwio = jnp.transpose(w, (2, 3, 1, 0)) * scale[None, None, None, :]
        y = lax.conv_general_dilated(
            x, w_hwio.astype(jnp.bfloat16), (stride, stride),
            [(pad, pad), (pad, pad)],
            dimension_numbers=("NHWC", "HWIO", "NHWC"),
            preferred_element_type=jnp.float32)
        y = y + (b * scale + shift).reshape(1, 1, 1, -1)
        y = jnp.where(y >= 0.0, y, 0.2 * y)
        x = y.astype(jnp.bfloat16)
    pooled = jnp.mean(x.astype(jnp.float32), axis=(1, 2))
    h = pooled @ params["w1"].T + params["b1"]
    h = jnp.where(h >= 0.0, h, 0.2 * h)
    return h @ params["w2"].T + params["b2"]


# ----------------------------- param init ------------------------------------

def make_params(key, in_nc, base_nf):
    eps = 1e-5
    # (cin, cout, k, stride, pad, has_bn) as in the nn.Sequential
    cfg = [
        (in_nc,       base_nf,     3, 1, 1, False),
        (base_nf,     base_nf,     4, 2, 1, True),
        (base_nf,     base_nf * 2, 3, 1, 1, True),
        (base_nf * 2, base_nf * 2, 4, 2, 1, True),
        (base_nf * 2, base_nf * 4, 3, 1, 1, True),
        (base_nf * 4, base_nf * 4, 4, 2, 1, True),
    ]
    convs = []
    for cin, cout, k, s, p, has_bn in cfg:
        key, kw, kb, k1, k2, k3, k4 = jax.random.split(key, 7)
        w = jax.random.normal(kw, (cout, cin, k, k), jnp.float32)
        w = w * (1.0 / jnp.sqrt(float(k * k * cin)))
        b = 0.1 * jax.random.normal(kb, (cout,), jnp.float32)
        if has_bn:
            gamma = 1.0 + 0.1 * jax.random.normal(k1, (cout,), jnp.float32)
            beta = 0.1 * jax.random.normal(k2, (cout,), jnp.float32)
            rmean = 0.1 * jax.random.normal(k3, (cout,), jnp.float32)
            rvar = 0.9 + 0.1 * jnp.abs(jax.random.normal(k4, (cout,), jnp.float32))
            scale = gamma / jnp.sqrt(rvar + eps)
            shift = beta - rmean * scale
        else:
            scale = jnp.ones((cout,), jnp.float32)
            shift = jnp.zeros((cout,), jnp.float32)
        convs.append((w, b, scale, shift, k, s, p))

    key, k1, k2, k3, k4 = jax.random.split(key, 5)
    c_feat = base_nf * 4
    w1 = jax.random.normal(k1, (100, c_feat), jnp.float32) / jnp.sqrt(float(c_feat))
    b1 = 0.1 * jax.random.normal(k2, (100,), jnp.float32)
    w2 = jax.random.normal(k3, (1, 100), jnp.float32) / jnp.sqrt(100.0)
    b2 = 0.1 * jax.random.normal(k4, (1,), jnp.float32)
    return {"convs": convs, "w1": w1, "b1": b1, "w2": w2, "b2": b2}


# ----------------------------- main -------------------------------------------

if __name__ == "__main__":
    key = jax.random.PRNGKey(0)
    key, kx, kp = jax.random.split(key, 3)

    batch, in_nc, base_nf, spatial = 2, 3, 8, 16
    x = jax.random.normal(kx, (batch, in_nc, spatial, spatial), jnp.float32)
    params = make_params(kp, in_nc, base_nf)

    # jit the whole forward so im2col / padding can fuse into the pallas input DMA.
    fwd = jax.jit(lambda inp: discriminator_forward(inp, params))
    out = jax.block_until_ready(fwd(x))              # Pallas path

    ref_fn = jax.jit(lambda inp: discriminator_reference(inp, params))
    ref = jax.block_until_ready(ref_fn(x))           # pure-JAX (bf16-matched) reference

    assert out.shape == (batch, 1), out.shape
    assert jnp.allclose(out, ref, atol=1e-2, rtol=1e-2), (out, ref)
    print("KERNEL_OK")
</pallas_src>

<mosaic_0001>
module attributes {stable_mosaic.version = 11 : i64} {
  func.func @_conv_block_kernel(%arg0: i32, %arg1: memref<512x128xbf16, #tpu.memory_space<vmem>>, %arg2: memref<128x128xbf16, #tpu.memory_space<vmem>>, %arg3: memref<1x128xf32, #tpu.memory_space<vmem>>, %arg4: memref<512x128xbf16, #tpu.memory_space<vmem>>) attributes {dimension_semantics = [#tpu.dimension_semantics<parallel>], iteration_bounds = array<i64: 1>, scalar_prefetch = 0 : i64, scratch_operands = 0 : i64, tpu.core_type = #tpu.core_type<tc>, window_params = [{transform_indices = @transform_0, window_bounds = array<i64: 512, 128>}, {pipeline_mode = #tpu.pipeline_mode<synchronous>, transform_indices = @transform_1, window_bounds = array<i64: 128, 128>}, {pipeline_mode = #tpu.pipeline_mode<synchronous>, transform_indices = @transform_2, window_bounds = array<i64: 1, 128>}, {transform_indices = @transform_3, window_bounds = array<i64: 512, 128>}]} {
    %c0 = arith.constant 0 : index
    %c0_0 = arith.constant 0 : index
    %0 = vector.load %arg1[%c0, %c0_0] : memref<512x128xbf16, #tpu.memory_space<vmem>>, vector<512x128xbf16>
    %c0_1 = arith.constant 0 : index
    %c0_2 = arith.constant 0 : index
    %1 = vector.load %arg2[%c0_1, %c0_2] : memref<128x128xbf16, #tpu.memory_space<vmem>>, vector<128x128xbf16>
    %cst = arith.constant dense<0.000000e+00> : vector<512x128xf32>
    %2 = tpu.matmul %0, %1, %cst {dimension_numbers = #tpu.dot_dimension_numbers<[1], [0], [0], [1], [0, 0, 1, 1], [], []>} : vector<512x128xbf16>, vector<128x128xbf16>, vector<512x128xf32> -> vector<512x128xf32>
    %c0_3 = arith.constant 0 : index
    %c0_4 = arith.constant 0 : index
    %3 = vector.load %arg3[%c0_3, %c0_4] : memref<1x128xf32, #tpu.memory_space<vmem>>, vector<1x128xf32>
    %4 = vector.broadcast %3 : vector<1x128xf32> to vector<512x128xf32>
    %5 = arith.addf %2, %4 : vector<512x128xf32>
    %cst_5 = arith.constant 0.000000e+00 : f32
    %6 = vector.broadcast %cst_5 : f32 to vector<512x128xf32>
    %7 = arith.cmpf oge, %5, %6 : vector<512x128xf32>
    %cst_6 = arith.constant 2.000000e-01 : f32
    %8 = vector.broadcast %cst_6 : f32 to vector<512x128xf32>
    %9 = arith.mulf %8, %5 : vector<512x128xf32>
    %10 = arith.select %7, %5, %9 : vector<512x128xi1>, vector<512x128xf32>
    %11 = arith.truncf %10 : vector<512x128xf32> to vector<512x128xbf16>
    %c0_7 = arith.constant 0 : index
    %c0_8 = arith.constant 0 : index
    %12 = vector.load %arg4[%c0_7, %c0_8] : memref<512x128xbf16, #tpu.memory_space<vmem>>, vector<512x128xbf16>
    tpu.vector_store %arg4[%c0_7, %c0_8], %11 {strides = array<i32>} : memref<512x128xbf16, #tpu.memory_space<vmem>>, vector<512x128xbf16>,
    return
  }
  func.func @transform_0(%arg0: i32) -> (i32, i32) {
    %c0_i32 = arith.constant 0 : i32
    %c0_i32_0 = arith.constant 0 : i32
    return %arg0, %c0_i32 : i32, i32
  }
  func.func @transform_1(%arg0: i32) -> (i32, i32) {
    %c0_i32 = arith.constant 0 : i32
    %c0_i32_0 = arith.constant 0 : i32
    %c0_i32_1 = arith.constant 0 : i32
    return %c0_i32, %c0_i32_0 : i32, i32
  }
  func.func @transform_2(%arg0: i32) -> (i32, i32) {
    %c0_i32 = arith.constant 0 : i32
    %c0_i32_0 = arith.constant 0 : i32
    %c0_i32_1 = arith.constant 0 : i32
    return %c0_i32, %c0_i32_0 : i32, i32
  }
  func.func @transform_3(%arg0: i32) -> (i32, i32) {
    %c0_i32 = arith.constant 0 : i32
    %c0_i32_0 = arith.constant 0 : i32
    return %arg0, %c0_i32 : i32, i32
  }
}

module attributes {stable_mosaic.version = 11 : i64} {
  func.func @_conv_block_kernel(%arg0: i32, %arg1: memref<128x128xbf16, #tpu.memory_space<vmem>>, %arg2: memref<128x128xbf16, #tpu.memory_space<vmem>>, %arg3: memref<1x128xf32, #tpu.memory_space<vmem>>, %arg4: memref<128x128xbf16, #tpu.memory_space<vmem>>) attributes {dimension_semantics = [#tpu.dimension_semantics<parallel>], iteration_bounds = array<i64: 1>, scalar_prefetch = 0 : i64, scratch_operands = 0 : i64, tpu.core_type = #tpu.core_type<tc>, window_params = [{transform_indices = @transform_0, window_bounds = array<i64: 128, 128>}, {pipeline_mode = #tpu.pipeline_mode<synchronous>, transform_indices = @transform_1, window_bounds = array<i64: 128, 128>}, {pipeline_mode = #tpu.pipeline_mode<synchronous>, transform_indices = @transform_2, window_bounds = array<i64: 1, 128>}, {transform_indices = @transform_3, window_bounds = array<i64: 128, 128>}]} {
    %c0 = arith.constant 0 : index
    %c0_0 = arith.constant 0 : index
    %0 = vector.load %arg1[%c0, %c0_0] : memref<128x128xbf16, #tpu.memory_space<vmem>>, vector<128x128xbf16>
    %c0_1 = arith.constant 0 : index
    %c0_2 = arith.constant 0 : index
    %1 = vector.load %arg2[%c0_1, %c0_2] : memref<128x128xbf16, #tpu.memory_space<vmem>>, vector<128x128xbf16>
    %cst = arith.constant dense<0.000000e+00> : vector<128x128xf32>
    %2 = tpu.matmul %0, %1, %cst {dimension_numbers = #tpu.dot_dimension_numbers<[1], [0], [0], [1], [0, 0, 1, 1], [], []>} : vector<128x128xbf16>, vector<128x128xbf16>, vector<128x128xf32> -> vector<128x128xf32>
    %c0_3 = arith.constant 0 : index
    %c0_4 = arith.constant 0 : index
    %3 = vector.load %arg3[%c0_3, %c0_4] : memref<1x128xf32, #tpu.memory_space<vmem>>, vector<1x128xf32>
    %4 = vector.broadcast %3 : vector<1x128xf32> to vector<128x128xf32>
    %5 = arith.addf %2, %4 : vector<128x128xf32>
    %cst_5 = arith.constant 0.000000e+00 : f32
    %6 = vector.broadcast %cst_5 : f32 to vector<128x128xf32>
    %7 = arith.cmpf oge, %5, %6 : vector<128x128xf32>
    %cst_6 = arith.constant 2.000000e-01 : f32
    %8 = vector.broadcast %cst_6 : f32 to vector<128x128xf32>
    %9 = arith.mulf %8, %5 : vector<128x128xf32>
    %10 = arith.select %7, %5, %9 : vector<128x128xi1>, vector<128x128xf32>
    %11 = arith.truncf %10 : vector<128x128xf32> to vector<128x128xbf16>
    %c0_7 = arith.constant 0 : index
    %c0_8 = arith.constant 0 : index
    %12 = vector.load %arg4[%c0_7, %c0_8] : memref<128x128xbf16, #tpu.memory_space<vmem>>, vector<128x128xbf16>
    tpu.vector_store %arg4[%c0_7, %c0_8], %11 {strides = array<i32>} : memref<128x128xbf16, #tpu.memory_space<vmem>>, vector<128x128xbf16>,
    return
  }
  func.func @transform_0(%arg0: i32) -> (i32, i32) {
    %c0_i32 = arith.constant 0 : i32
    %c0_i32_0 = arith.constant 0 : i32
    return %arg0, %c0_i32 : i32, i32
  }
  func.func @transform_1(%arg0: i32) -> (i32, i32) {
    %c0_i32 = arith.constant 0 : i32
    %c0_i32_0 = arith.constant 0 : i32
    %c0_i32_1 = arith.constant 0 : i32
    return %c0_i32, %c0_i32_0 : i32, i32
  }
  func.func @transform_2(%arg0: i32) -> (i32, i32) {
    %c0_i32 = arith.constant 0 : i32
    %c0_i32_0 = arith.constant 0 : i32
    %c0_i32_1 = arith.constant 0 : i32
    return %c0_i32, %c0_i32_0 : i32, i32
  }
  func.func @transform_3(%arg0: i32) -> (i32, i32) {
    %c0_i32 = arith.constant 0 : i32
    %c0_i32_0 = arith.constant 0 : i32
    return %arg0, %c0_i32 : i32, i32
  }
}

module attributes {stable_mosaic.version = 11 : i64} {
  func.func @_conv_block_kernel(%arg0: i32, %arg1: memref<128x128xbf16, #tpu.memory_space<vmem>>, %arg2: memref<128x128xbf16, #tpu.memory_space<vmem>>, %arg3: memref<1x128xf32, #tpu.memory_space<vmem>>, %arg4: memref<128x128xbf16, #tpu.memory_space<vmem>>) attributes {dimension_semantics = [#tpu.dimension_semantics<parallel>], iteration_bounds = array<i64: 1>, scalar_prefetch = 0 : i64, scratch_operands = 0 : i64, tpu.core_type = #tpu.core_type<tc>, window_params = [{transform_indices = @transform_0, window_bounds = array<i64: 128, 128>}, {pipeline_mode = #tpu.pipeline_mode<synchronous>, transform_indices = @transform_1, window_bounds = array<i64: 128, 128>}, {pipeline_mode = #tpu.pipeline_mode<synchronous>, transform_indices = @transform_2, window_bounds = array<i64: 1, 128>}, {transform_indices = @transform_3, window_bounds = array<i64: 128, 128>}]} {
    %c0 = arith.constant 0 : index
    %c0_0 = arith.constant 0 : index
    %0 = vector.load %arg1[%c0, %c0_0] : memref<128x128xbf16, #tpu.memory_space<vmem>>, vector<128x128xbf16>
    %c0_1 = arith.constant 0 : index
    %c0_2 = arith.constant 0 : index
    %1 = vector.load %arg2[%c0_1, %c0_2] : memref<128x128xbf16, #tpu.memory_space<vmem>>, vector<128x128xbf16>
    %cst = arith.constant dense<0.000000e+00> : vector<128x128xf32>
    %2 = tpu.matmul %0, %1, %cst {dimension_numbers = #tpu.dot_dimension_numbers<[1], [0], [0], [1], [0, 0, 1, 1], [], []>} : vector<128x128xbf16>, vector<128x128xbf16>, vector<128x128xf32> -> vector<128x128xf32>
    %c0_3 = arith.constant 0 : index
    %c0_4 = arith.constant 0 : index
    %3 = vector.load %arg3[%c0_3, %c0_4] : memref<1x128xf32, #tpu.memory_space<vmem>>, vector<1x128xf32>
    %4 = vector.broadcast %3 : vector<1x128xf32> to vector<128x128xf32>
    %5 = arith.addf %2, %4 : vector<128x128xf32>
    %cst_5 = arith.constant 0.000000e+00 : f32
    %6 = vector.broadcast %cst_5 : f32 to vector<128x128xf32>
    %7 = arith.cmpf oge, %5, %6 : vector<128x128xf32>
    %cst_6 = arith.constant 2.000000e-01 : f32
    %8 = vector.broadcast %cst_6 : f32 to vector<128x128xf32>
    %9 = arith.mulf %8, %5 : vector<128x128xf32>
    %10 = arith.select %7, %5, %9 : vector<128x128xi1>, vector<128x128xf32>
    %11 = arith.truncf %10 : vector<128x128xf32> to vector<128x128xbf16>
    %c0_7 = arith.constant 0 : index
    %c0_8 = arith.constant 0 : index
    %12 = vector.load %arg4[%c0_7, %c0_8] : memref<128x128xbf16, #tpu.memory_space<vmem>>, vector<128x128xbf16>
    tpu.vector_store %arg4[%c0_7, %c0_8], %11 {strides = array<i32>} : memref<128x128xbf16, #tpu.memory_space<vmem>>, vector<128x128xbf16>,
    return
  }
  func.func @transform_0(%arg0: i32) -> (i32, i32) {
    %c0_i32 = arith.constant 0 : i32
    %c0_i32_0 = arith.constant 0 : i32
    return %arg0, %c0_i32 : i32, i32
  }
  func.func @transform_1(%arg0: i32) -> (i32, i32) {
    %c0_i32 = arith.constant 0 : i32
    %c0_i32_0 = arith.constant 0 : i32
    %c0_i32_1 = arith.constant 0 : i32
    return %c0_i32, %c0_i32_0 : i32, i32
  }
  func.func @transform_2(%arg0: i32) -> (i32, i32) {
    %c0_i32 = arith.constant 0 : i32
    %c0_i32_0 = arith.constant 0 : i32
    %c0_i32_1 = arith.constant 0 : i32
    return %c0_i32, %c0_i32_0 : i32, i32
  }
  func.func @transform_3(%arg0: i32) -> (i32, i32) {
    %c0_i32 = arith.constant 0 : i32
    %c0_i32_0 = arith.constant 0 : i32
    return %arg0, %c0_i32 : i32, i32
  }
}

module attributes {stable_mosaic.version = 11 : i64} {
  func.func @_conv_block_kernel(%arg0: i32, %arg1: memref<32x256xbf16, #tpu.memory_space<vmem>>, %arg2: memref<256x128xbf16, #tpu.memory_space<vmem>>, %arg3: memref<1x128xf32, #tpu.memory_space<vmem>>, %arg4: memref<32x128xbf16, #tpu.memory_space<vmem>>) attributes {dimension_semantics = [#tpu.dimension_semantics<parallel>], iteration_bounds = array<i64: 1>, scalar_prefetch = 0 : i64, scratch_operands = 0 : i64, tpu.core_type = #tpu.core_type<tc>, window_params = [{transform_indices = @transform_0, window_bounds = array<i64: 32, 256>}, {pipeline_mode = #tpu.pipeline_mode<synchronous>, transform_indices = @transform_1, window_bounds = array<i64: 256, 128>}, {pipeline_mode = #tpu.pipeline_mode<synchronous>, transform_indices = @transform_2, window_bounds = array<i64: 1, 128>}, {transform_indices = @transform_3, window_bounds = array<i64: 32, 128>}]} {
    %c0 = arith.constant 0 : index
    %c0_0 = arith.constant 0 : index
    %0 = vector.load %arg1[%c0, %c0_0] : memref<32x256xbf16, #tpu.memory_space<vmem>>, vector<32x256xbf16>
    %c0_1 = arith.constant 0 : index
    %c0_2 = arith.constant 0 : index
    %1 = vector.load %arg2[%c0_1, %c0_2] : memref<256x128xbf16, #tpu.memory_space<vmem>>, vector<256x128xbf16>
    %cst = arith.constant dense<0.000000e+00> : vector<32x128xf32>
    %2 = tpu.matmul %0, %1, %cst {dimension_numbers = #tpu.dot_dimension_numbers<[1], [0], [0], [1], [0, 0, 1, 1], [], []>} : vector<32x256xbf16>, vector<256x128xbf16>, vector<32x128xf32> -> vector<32x128xf32>
    %c0_3 = arith.constant 0 : index
    %c0_4 = arith.constant 0 : index
    %3 = vector.load %arg3[%c0_3, %c0_4] : memref<1x128xf32, #tpu.memory_space<vmem>>, vector<1x128xf32>
    %4 = vector.broadcast %3 : vector<1x128xf32> to vector<32x128xf32>
    %5 = arith.addf %2, %4 : vector<32x128xf32>
    %cst_5 = arith.constant 0.000000e+00 : f32
    %6 = vector.broadcast %cst_5 : f32 to vector<32x128xf32>
    %7 = arith.cmpf oge, %5, %6 : vector<32x128xf32>
    %cst_6 = arith.constant 2.000000e-01 : f32
    %8 = vector.broadcast %cst_6 : f32 to vector<32x128xf32>
    %9 = arith.mulf %8, %5 : vector<32x128xf32>
    %10 = arith.select %7, %5, %9 : vector<32x128xi1>, vector<32x128xf32>
    %11 = arith.truncf %10 : vector<32x128xf32> to vector<32x128xbf16>
    %c0_7 = arith.constant 0 : index
    %c0_8 = arith.constant 0 : index
    %12 = vector.load %arg4[%c0_7, %c0_8] : memref<32x128xbf16, #tpu.memory_space<vmem>>, vector<32x128xbf16>
    tpu.vector_store %arg4[%c0_7, %c0_8], %11 {strides = array<i32>} : memref<32x128xbf16, #tpu.memory_space<vmem>>, vector<32x128xbf16>,
    return
  }
  func.func @transform_0(%arg0: i32) -> (i32, i32) {
    %c0_i32 = arith.constant 0 : i32
    %c0_i32_0 = arith.constant 0 : i32
    return %arg0, %c0_i32 : i32, i32
  }
  func.func @transform_1(%arg0: i32) -> (i32, i32) {
    %c0_i32 = arith.constant 0 : i32
    %c0_i32_0 = arith.constant 0 : i32
    %c0_i32_1 = arith.constant 0 : i32
    return %c0_i32, %c0_i32_0 : i32, i32
  }
  func.func @transform_2(%arg0: i32) -> (i32, i32) {
    %c0_i32 = arith.constant 0 : i32
    %c0_i32_0 = arith.constant 0 : i32
    %c0_i32_1 = arith.constant 0 : i32
    return %c0_i32, %c0_i32_0 : i32, i32
  }
  func.func @transform_3(%arg0: i32) -> (i32, i32) {
    %c0_i32 = arith.constant 0 : i32
    %c0_i32_0 = arith.constant 0 : i32
    return %arg0, %c0_i32 : i32, i32
  }
}

module attributes {stable_mosaic.version = 11 : i64} {
  func.func @_conv_block_kernel(%arg0: i32, %arg1: memref<32x144xbf16, #tpu.memory_space<vmem>>, %arg2: memref<144x128xbf16, #tpu.memory_space<vmem>>, %arg3: memref<1x128xf32, #tpu.memory_space<vmem>>, %arg4: memref<32x128xbf16, #tpu.memory_space<vmem>>) attributes {dimension_semantics = [#tpu.dimension_semantics<parallel>], iteration_bounds = array<i64: 1>, scalar_prefetch = 0 : i64, scratch_operands = 0 : i64, tpu.core_type = #tpu.core_type<tc>, window_params = [{transform_indices = @transform_0, window_bounds = array<i64: 32, 144>}, {pipeline_mode = #tpu.pipeline_mode<synchronous>, transform_indices = @transform_1, window_bounds = array<i64: 144, 128>}, {pipeline_mode = #tpu.pipeline_mode<synchronous>, transform_indices = @transform_2, window_bounds = array<i64: 1, 128>}, {transform_indices = @transform_3, window_bounds = array<i64: 32, 128>}]} {
    %c0 = arith.constant 0 : index
    %c0_0 = arith.constant 0 : index
    %0 = vector.load %arg1[%c0, %c0_0] : memref<32x144xbf16, #tpu.memory_space<vmem>>, vector<32x144xbf16>
    %c0_1 = arith.constant 0 : index
    %c0_2 = arith.constant 0 : index
    %1 = vector.load %arg2[%c0_1, %c0_2] : memref<144x128xbf16, #tpu.memory_space<vmem>>, vector<144x128xbf16>
    %cst = arith.constant dense<0.000000e+00> : vector<32x128xf32>
    %2 = tpu.matmul %0, %1, %cst {dimension_numbers = #tpu.dot_dimension_numbers<[1], [0], [0], [1], [0, 0, 1, 1], [], []>} : vector<32x144xbf16>, vector<144x128xbf16>, vector<32x128xf32> -> vector<32x128xf32>
    %c0_3 = arith.constant 0 : index
    %c0_4 = arith.constant 0 : index
    %3 = vector.load %arg3[%c0_3, %c0_4] : memref<1x128xf32, #tpu.memory_space<vmem>>, vector<1x128xf32>
    %4 = vector.broadcast %3 : vector<1x128xf32> to vector<32x128xf32>
    %5 = arith.addf %2, %4 : vector<32x128xf32>
    %cst_5 = arith.constant 0.000000e+00 : f32
    %6 = vector.broadcast %cst_5 : f32 to vector<32x128xf32>
    %7 = arith.cmpf oge, %5, %6 : vector<32x128xf32>
    %cst_6 = arith.constant 2.000000e-01 : f32
    %8 = vector.broadcast %cst_6 : f32 to vector<32x128xf32>
    %9 = arith.mulf %8, %5 : vector<32x128xf32>
    %10 = arith.select %7, %5, %9 : vector<32x128xi1>, vector<32x128xf32>
    %11 = arith.truncf %10 : vector<32x128xf32> to vector<32x128xbf16>
    %c0_7 = arith.constant 0 : index
    %c0_8 = arith.constant 0 : index
    %12 = vector.load %arg4[%c0_7, %c0_8] : memref<32x128xbf16, #tpu.memory_space<vmem>>, vector<32x128xbf16>
    tpu.vector_store %arg4[%c0_7, %c0_8], %11 {strides = array<i32>} : memref<32x128xbf16, #tpu.memory_space<vmem>>, vector<32x128xbf16>,
    return
  }
  func.func @transform_0(%arg0: i32) -> (i32, i32) {
    %c0_i32 = arith.constant 0 : i32
    %c0_i32_0 = arith.constant 0 : i32
    return %arg0, %c0_i32 : i32, i32
  }
  func.func @transform_1(%arg0: i32) -> (i32, i32) {
    %c0_i32 = arith.constant 0 : i32
    %c0_i32_0 = arith.constant 0 : i32
    %c0_i32_1 = arith.constant 0 : i32
    return %c0_i32, %c0_i32_0 : i32, i32
  }
  func.func @transform_2(%arg0: i32) -> (i32, i32) {
    %c0_i32 = arith.constant 0 : i32
    %c0_i32_0 = arith.constant 0 : i32
    %c0_i32_1 = arith.constant 0 : i32
    return %c0_i32, %c0_i32_0 : i32, i32
  }
  func.func @transform_3(%arg0: i32) -> (i32, i32) {
    %c0_i32 = arith.constant 0 : i32
    %c0_i32_0 = arith.constant 0 : i32
    return %arg0, %c0_i32 : i32, i32
  }
}

module attributes {stable_mosaic.version = 11 : i64} {
  func.func @_conv_block_kernel(%arg0: i32, %arg1: memref<16x512xbf16, #tpu.memory_space<vmem>>, %arg2: memref<512x128xbf16, #tpu.memory_space<vmem>>, %arg3: memref<1x128xf32, #tpu.memory_space<vmem>>, %arg4: memref<16x128xbf16, #tpu.memory_space<vmem>>) attributes {dimension_semantics = [#tpu.dimension_semantics<parallel>], iteration_bounds = array<i64: 1>, scalar_prefetch = 0 : i64, scratch_operands = 0 : i64, tpu.core_type = #tpu.core_type<tc>, window_params = [{transform_indices = @transform_0, window_bounds = array<i64: 16, 512>}, {pipeline_mode = #tpu.pipeline_mode<synchronous>, transform_indices = @transform_1, window_bounds = array<i64: 512, 128>}, {pipeline_mode = #tpu.pipeline_mode<synchronous>, transform_indices = @transform_2, window_bounds = array<i64: 1, 128>}, {transform_indices = @transform_3, window_bounds = array<i64: 16, 128>}]} {
    %c0 = arith.constant 0 : index
    %c0_0 = arith.constant 0 : index
    %0 = vector.load %arg1[%c0, %c0_0] : memref<16x512xbf16, #tpu.memory_space<vmem>>, vector<16x512xbf16>
    %c0_1 = arith.constant 0 : index
    %c0_2 = arith.constant 0 : index
    %1 = vector.load %arg2[%c0_1, %c0_2] : memref<512x128xbf16, #tpu.memory_space<vmem>>, vector<512x128xbf16>
    %cst = arith.constant dense<0.000000e+00> : vector<16x128xf32>
    %2 = tpu.matmul %0, %1, %cst {dimension_numbers = #tpu.dot_dimension_numbers<[1], [0], [0], [1], [0, 0, 1, 1], [], []>} : vector<16x512xbf16>, vector<512x128xbf16>, vector<16x128xf32> -> vector<16x128xf32>
    %c0_3 = arith.constant 0 : index
    %c0_4 = arith.constant 0 : index
    %3 = vector.load %arg3[%c0_3, %c0_4] : memref<1x128xf32, #tpu.memory_space<vmem>>, vector<1x128xf32>
    %4 = vector.broadcast %3 : vector<1x128xf32> to vector<16x128xf32>
    %5 = arith.addf %2, %4 : vector<16x128xf32>
    %cst_5 = arith.constant 0.000000e+00 : f32
    %6 = vector.broadcast %cst_5 : f32 to vector<16x128xf32>
    %7 = arith.cmpf oge, %5, %6 : vector<16x128xf32>
    %cst_6 = arith.constant 2.000000e-01 : f32
    %8 = vector.broadcast %cst_6 : f32 to vector<16x128xf32>
    %9 = arith.mulf %8, %5 : vector<16x128xf32>
    %10 = arith.select %7, %5, %9 : vector<16x128xi1>, vector<16x128xf32>
    %11 = arith.truncf %10 : vector<16x128xf32> to vector<16x128xbf16>
    %c0_7 = arith.constant 0 : index
    %c0_8 = arith.constant 0 : index
    %12 = vector.load %arg4[%c0_7, %c0_8] : memref<16x128xbf16, #tpu.memory_space<vmem>>, vector<16x128xbf16>
    tpu.vector_store %arg4[%c0_7, %c0_8], %11 {strides = array<i32>} : memref<16x128xbf16, #tpu.memory_space<vmem>>, vector<16x128xbf16>,
    return
  }
  func.func @transform_0(%arg0: i32) -> (i32, i32) {
    %c0_i32 = arith.constant 0 : i32
    %c0_i32_0 = arith.constant 0 : i32
    return %arg0, %c0_i32 : i32, i32
  }
  func.func @transform_1(%arg0: i32) -> (i32, i32) {
    %c0_i32 = arith.constant 0 : i32
    %c0_i32_0 = arith.constant 0 : i32
    %c0_i32_1 = arith.constant 0 : i32
    return %c0_i32, %c0_i32_0 : i32, i32
  }
  func.func @transform_2(%arg0: i32) -> (i32, i32) {
    %c0_i32 = arith.constant 0 : i32
    %c0_i32_0 = arith.constant 0 : i32
    %c0_i32_1 = arith.constant 0 : i32
    return %c0_i32, %c0_i32_0 : i32, i32
  }
  func.func @transform_3(%arg0: i32) -> (i32, i32) {
    %c0_i32 = arith.constant 0 : i32
    %c0_i32_0 = arith.constant 0 : i32
    return %arg0, %c0_i32 : i32, i32
  }
}

module attributes {stable_mosaic.version = 11 : i64} {
  func.func @_head_kernel(%arg0: i32, %arg1: memref<2x4x128xbf16, #tpu.memory_space<vmem>>, %arg2: memref<128x128xf32, #tpu.memory_space<vmem>>, %arg3: memref<1x128xf32, #tpu.memory_space<vmem>>, %arg4: memref<128x1xf32, #tpu.memory_space<vmem>>, %arg5: memref<1x1xf32, #tpu.memory_space<vmem>>, %arg6: memref<2x1xf32, #tpu.memory_space<vmem>>) attributes {dimension_semantics = [#tpu.dimension_semantics<arbitrary>], iteration_bounds = array<i64: 1>, scalar_prefetch = 0 : i64, scratch_operands = 0 : i64, tpu.core_type = #tpu.core_type<tc>, window_params = [{pipeline_mode = #tpu.pipeline_mode<synchronous>, transform_indices = @transform_0, window_bounds = array<i64: 2, 4, 128>}, {pipeline_mode = #tpu.pipeline_mode<synchronous>, transform_indices = @transform_1, window_bounds = array<i64: 128, 128>}, {pipeline_mode = #tpu.pipeline_mode<synchronous>, transform_indices = @transform_2, window_bounds = array<i64: 1, 128>}, {pipeline_mode = #tpu.pipeline_mode<synchronous>, transform_indices = @transform_3, window_bounds = array<i64: 128, 1>}, {pipeline_mode = #tpu.pipeline_mode<synchronous>, transform_indices = @transform_4, window_bounds = array<i64: 1, 1>}, {pipeline_mode = #tpu.pipeline_mode<synchronous>, transform_indices = @transform_5, window_bounds = array<i64: 2, 1>}]} {
    %c0 = arith.constant 0 : index
    %c0_0 = arith.constant 0 : index
    %c0_1 = arith.constant 0 : index
    %0 = vector.load %arg1[%c0, %c0_0, %c0_1] : memref<2x4x128xbf16, #tpu.memory_space<vmem>>, vector<2x4x128xbf16>
    %1 = arith.extf %0 : vector<2x4x128xbf16> to vector<2x4x128xf32>
    %cst = arith.constant dense<0.000000e+00> : vector<2x128xf32>
    %2 = vector.multi_reduction <add>, %1, %cst [1] : vector<2x4x128xf32> to vector<2x128xf32>
    %cst_2 = arith.constant 2.500000e-01 : f32
    %3 = vector.broadcast %cst_2 : f32 to vector<2x128xf32>
    %4 = arith.mulf %2, %3 : vector<2x128xf32>
    %c0_3 = arith.constant 0 : index
    %c0_4 = arith.constant 0 : index
    %5 = vector.load %arg2[%c0_3, %c0_4] : memref<128x128xf32, #tpu.memory_space<vmem>>, vector<128x128xf32>
    %cst_5 = arith.constant dense<0.000000e+00> : vector<2x128xf32>
    %6 = tpu.matmul %4, %5, %cst_5 {dimension_numbers = #tpu.dot_dimension_numbers<[1], [0], [0], [1], [0, 0, 1, 1], [], []>} : vector<2x128xf32>, vector<128x128xf32>, vector<2x128xf32> -> vector<2x128xf32>
    %c0_6 = arith.constant 0 : index
    %c0_7 = arith.constant 0 : index
    %7 = vector.load %arg3[%c0_6, %c0_7] : memref<1x128xf32, #tpu.memory_space<vmem>>, vector<1x128xf32>
    %8 = vector.broadcast %7 : vector<1x128xf32> to vector<2x128xf32>
    %9 = arith.addf %6, %8 : vector<2x128xf32>
    %cst_8 = arith.constant 0.000000e+00 : f32
    %10 = vector.broadcast %cst_8 : f32 to vector<2x128xf32>
    %11 = arith.cmpf oge, %9, %10 : vector<2x128xf32>
    %cst_9 = arith.constant 2.000000e-01 : f32
    %12 = vector.broadcast %cst_9 : f32 to vector<2x128xf32>
    %13 = arith.mulf %12, %9 : vector<2x128xf32>
    %14 = arith.select %11, %9, %13 : vector<2x128xi1>, vector<2x128xf32>
    %c0_10 = arith.constant 0 : index
    %c0_11 = arith.constant 0 : index
    %15 = vector.load %arg4[%c0_10, %c0_11] : memref<128x1xf32, #tpu.memory_space<vmem>>, vector<128x1xf32>
    %cst_12 = arith.constant dense<0.000000e+00> : vector<2x1xf32>
    %16 = tpu.matmul %14, %15, %cst_12 {dimension_numbers = #tpu.dot_dimension_numbers<[1], [0], [0], [1], [0, 0, 1, 1], [], []>} : vector<2x128xf32>, vector<128x1xf32>, vector<2x1xf32> -> vector<2x1xf32>
    %c0_13 = arith.constant 0 : index
    %c0_14 = arith.constant 0 : index
    %17 = vector.load %arg5[%c0_13, %c0_14] : memref<1x1xf32, #tpu.memory_space<vmem>>, vector<1x1xf32>
    %18 = vector.broadcast %17 : vector<1x1xf32> to vector<2x1xf32>
    %19 = arith.addf %16, %18 : vector<2x1xf32>
    %c0_15 = arith.constant 0 : index
    %c0_16 = arith.constant 0 : index
    %20 = vector.load %arg6[%c0_15, %c0_16] : memref<2x1xf32, #tpu.memory_space<vmem>>, vector<2x1xf32>
    tpu.vector_store %arg6[%c0_15, %c0_16], %19 {strides = array<i32>} : memref<2x1xf32, #tpu.memory_space<vmem>>, vector<2x1xf32>,
    return
  }
  func.func @transform_0(%arg0: i32) -> (i32, i32, i32) {
    %c0_i32 = arith.constant 0 : i32
    %c0_i32_0 = arith.constant 0 : i32
    %c0_i32_1 = arith.constant 0 : i32
    %c0_i32_2 = arith.constant 0 : i32
    return %c0_i32, %c0_i32_0, %c0_i32_1 : i32, i32, i32
  }
  func.func @transform_1(%arg0: i32) -> (i32, i32) {
    %c0_i32 = arith.constant 0 : i32
    %c0_i32_0 = arith.constant 0 : i32
    %c0_i32_1 = arith.constant 0 : i32
    return %c0_i32, %c0_i32_0 : i32, i32
  }
  func.func @transform_2(%arg0: i32) -> (i32, i32) {
    %c0_i32 = arith.constant 0 : i32
    %c0_i32_0 = arith.constant 0 : i32
    %c0_i32_1 = arith.constant 0 : i32
    return %c0_i32, %c0_i32_0 : i32, i32
  }
  func.func @transform_3(%arg0: i32) -> (i32, i32) {
    %c0_i32 = arith.constant 0 : i32
    %c0_i32_0 = arith.constant 0 : i32
    %c0_i32_1 = arith.constant 0 : i32
    return %c0_i32, %c0_i32_0 : i32, i32
  }
  func.func @transform_4(%arg0: i32) -> (i32, i32) {
    %c0_i32 = arith.constant 0 : i32
    %c0_i32_0 = arith.constant 0 : i32
    %c0_i32_1 = arith.constant 0 : i32
    return %c0_i32, %c0_i32_0 : i32, i32
  }
  func.func @transform_5(%arg0: i32) -> (i32, i32) {
    %c0_i32 = arith.constant 0 : i32
    %c0_i32_0 = arith.constant 0 : i32
    %c0_i32_1 = arith.constant 0 : i32
    return %c0_i32, %c0_i32_0 : i32, i32
  }
}

</mosaic_0001>

<llo_original>
// kernel: _lambda_.14
$region0: #{_lambda_.14}
  #allocation0 [shape = 'u32[]', space=smem, size = 0x4, offset = 0x4, fixed_abs, tag = 'smem constant byte address 0x4 - core index']
  #allocation1 [shape = 'u32[72,128]{1,0:T(1,128)}', space=vmem, size = 0x9000, scoped, tag = 'internal scratch']
  #allocation2 [shape = 'u32[2048]{0}', space=vmem, size = 0x2000, scoped, tag = 'scoped memory for _lambda_.14']
  #allocation3 [shape = 'u32[2048]{0}', space=vmem, size = 0x2000, scoped, tag = 'scoped memory for _lambda_.14']
  #allocation4 [shape = 'u32[2048]{0}', space=vmem, size = 0x2000, scoped, tag = 'scoped memory for _lambda_.14']
  #allocation5 [shape = 'u32[2048]{0}', space=vmem, size = 0x2000, scoped, tag = 'scoped memory for _lambda_.14']
  #allocation6 [shape = 'u32[2048]{0}', space=vmem, size = 0x2000, scoped, tag = 'scoped memory for _lambda_.14']
  %s0 = inlined_call_operand.vmem [shape: bf16[128,128], index: 0, kind: input, shape index: {}]
  %s1 = inlined_call_operand.vmem [shape: f32[1,128], index: 1, kind: input, shape index: {}]
  %s2 = inlined_call_operand.vmem [shape: bf16[512,27], index: 2, kind: input, shape index: {}]
  %s3 = inlined_call_operand.<no memory space> [shape: bf16[], index: 3, kind: input, shape index: {}]
  %s4 = inlined_call_operand.vmem [shape: bf16[512,128], index: 4, kind: output, shape index: {}]
  %s5 = sld [smem:[#allocation0]]
  $region22: #{_lambda_.14} parent=0
    _
  %s7 = ssub.s32 1, %s5
  %s8 = scalar_select 0, %s7, %s5
  %v9 = vstv %s3
  %v10 = vunpack.i.l.bf16 %v9
  %v12 = vunpack.i.h.bf16 %v9
  $region1: #{_lambda_.14} parent=0
    #allocation7 [shape = 'u8[131072]{0}', space=vmem, size = 0x20000, dematerialized = true, scoped, tag = 'FusionAdapter Buffer %fusion.1 = bf16[512,128]{1,0:T(8,128)(2,1)} fusion(%param_2.145, %param_3.69), kind=kLoop, calls=%fused_computation.84.clone, metadata={op_name="jit(<lambda>)/jit(_pad)/pad" stack_frame_id=21}']
    // Predicated region
    $region2: #{_lambda_.14} parent=1 // pred_check
      _
    $region3: #{_lambda_.14} parent=1 // pred_check_branch
      %15 = sbr.rel (0) target = $region5
    $region4: #{_lambda_.14} parent=1 // pred_region
      _
    $region5: #{_lambda_.14} parent=1 // pred_fallthru
      _
    // Predicated region
    $region6: #{_lambda_.14} parent=1 // pred_check
      _
    $region7: #{_lambda_.14} parent=1 // pred_check_branch
      %17 = sbr.rel (0) target = $region9
    $region8: #{_lambda_.14} parent=1 // pred_region
      _
    $region9: #{_lambda_.14} parent=1 // pred_fallthru
      _
    // Predicated region
    $region10: #{_lambda_.14} parent=1 // pred_check
      _
    $region11: #{_lambda_.14} parent=1 // pred_check_branch
      %19 = sbr.rel (0) target = $region13
    $region12: #{_lambda_.14} parent=1 // pred_region
      _
    $region13: #{_lambda_.14} parent=1 // pred_fallthru
      _
    %s21 = sor.u32 255, 127
    %s22 = sand.u32 %s21, 85
    %s23 = sshrl.u32 %s22, 1
    %s24 = sor.u32 %s22, %s23
    %s25 = sand.u32 51, %s24
    %s26 = sshrl.u32 %s25, 2
    %s27 = sor.u32 %s25, %s26
    %s28 = sand.u32 15, %s27
    %v29 = vld [vmem:[%s2] sm:%s28]
    %v30 = vunpack.c.l.bf16 %v29
    %v31 = vunpack.c.h.bf16 %v29
    %v32 = vlaneseq
    %v33 = vand.u32 %v32, 127
    %vm35 = vcmp.lt.s32.totalorder %v33, 27
    %v36 = vsel %vm35, %v30, %v10
    %v37 = vpack.c.bf16 0.0, %v36
    %s39 = ssub.s32 16, 1
    %40 = vst [vmem:[#allocation7] sm:%s39] %v37
    %s41 = scalar_lea.vmem %s2, 4
    %s43 = sor.u32 255, 127
    %s44 = sand.u32 %s43, 85
    %s45 = sshrl.u32 %s44, 1
    %s46 = sor.u32 %s44, %s45
    %s47 = sand.u32 51, %s46
    %s48 = sshrl.u32 %s47, 2
    %s49 = sor.u32 %s47, %s48
    %s50 = sand.u32 15, %s49
    %v51 = vld [vmem:[%s41] sm:%s50]
    %v52 = vunpack.c.l.bf16 %v51
    %v53 = vunpack.c.h.bf16 %v51
    %v54 = vlaneseq
    %v55 = vand.u32 %v54, 127
    %vm57 = vcmp.lt.s32.totalorder %v55, 27
    %v58 = vsel %vm57, %v52, %v10
    %s59 = scalar_lea.vmem [#allocation7], 4
    %v60 = vpack.c.bf16 0.0, %v58
    %s62 = ssub.s32 16, 1
    %63 = vst [vmem:[%s59] sm:%s62] %v60
    %s64 = scalar_lea.vmem %s2, 8
    %s66 = sor.u32 255, 127
    %s67 = sand.u32 %s66, 85
    %s68 = sshrl.u32 %s67, 1
    %s69 = sor.u32 %s67, %s68
    %s70 = sand.u32 51, %s69
    %s71 = sshrl.u32 %s70, 2
    %s72 = sor.u32 %s70, %s71
    %s73 = sand.u32 15, %s72
    %v74 = vld [vmem:[%s64] sm:%s73]
    %v75 = vunpack.c.l.bf16 %v74
    %v76 = vunpack.c.h.bf16 %v74
    %v77 = vlaneseq
    %v78 = vand.u32 %v77, 127
    %vm80 = vcmp.lt.s32.totalorder %v78, 27
    %v81 = vsel %vm80, %v75, %v10
    %s82 = scalar_lea.vmem [#allocation7], 8
    %v83 = vpack.c.bf16 0.0, %v81
    %s85 = ssub.s32 16, 1
    %86 = vst [vmem:[%s82] sm:%s85] %v83
    %s87 = scalar_lea.vmem %s2, 12
    %s89 = sor.u32 255, 127
    %s90 = sand.u32 %s89, 85
    %s91 = sshrl.u32 %s90, 1
    %s92 = sor.u32 %s90, %s91
    %s93 = sand.u32 51, %s92
    %s94 = sshrl.u32 %s93, 2
    %s95 = sor.u32 %s93, %s94
    %s96 = sand.u32 15, %s95
    %v97 = vld [vmem:[%s87] sm:%s96]
    %v98 = vunpack.c.l.bf16 %v97
    %v99 = vunpack.c.h.bf16 %v97
    %v100 = vlaneseq
    %v101 = vand.u32 %v100, 127
    %vm103 = vcmp.lt.s32.totalorder %v101, 27
    %v104 = vsel %vm103, %v98, %v10
    %s105 = scalar_lea.vmem [#allocation7], 12
    %v106 = vpack.c.bf16 0.0, %v104
    %s108 = ssub.s32 16, 1
    %109 = vst [vmem:[%s105] sm:%s108] %v106
    %s110 = scalar_lea.vmem %s2, 16
    %s112 = sor.u32 255, 127
    %s113 = sand.u32 %s112, 85
    %s114 = sshrl.u32 %s113, 1
    %s115 = sor.u32 %s113, %s114
    %s116 = sand.u32 51, %s115
    %s117 = sshrl.u32 %s116, 2
    %s118 = sor.u32 %s116, %s117
    %s119 = sand.u32 15, %s118
    %v120 = vld [vmem:[%s110] sm:%s119]
    %v121 = vunpack.c.l.bf16 %v120
    %v122 = vunpack.c.h.bf16 %v120
    %v123 = vlaneseq
    %v124 = vand.u32 %v123, 127
    %vm126 = vcmp.lt.s32.totalorder %v124, 27
    %v127 = vsel %vm126, %v121, %v10
    %s128 = scalar_lea.vmem [#allocation7], 16
    %v129 = vpack.c.bf16 0.0, %v127
    %s131 = ssub.s32 16, 1
    %132 = vst [vmem:[%s128] sm:%s131] %v129
    %s133 = scalar_lea.vmem %s2, 20
    %s135 = sor.u32 255, 127
    %s136 = sand.u32 %s135, 85
    %s137 = sshrl.u32 %s136, 1
    %s138 = sor.u32 %s136, %s137
    %s139 = sand.u32 51, %s138
    %s140 = sshrl.u32 %s139, 2
    %s141 = sor.u32 %s139, %s140
    %s142 = sand.u32 15, %s141
    %v143 = vld [vmem:[%s133] sm:%s142]
    %v144 = vunpack.c.l.bf16 %v143
    %v145 = vunpack.c.h.bf16 %v143
    %v146 = vlaneseq
    %v147 = vand.u32 %v146, 127
    %vm149 = vcmp.lt.s32.totalorder %v147, 27
    %v150 = vsel %vm149, %v144, %v10
    %s151 = scalar_lea.vmem [#allocation7], 20
    %v152 = vpack.c.bf16 0.0, %v150
    %s154 = ssub.s32 16, 1
    %155 = vst [vmem:[%s151] sm:%s154] %v152
    %s156 = scalar_lea.vmem %s2, 24
    %s158 = sor.u32 255, 127
    %s159 = sand.u32 %s158, 85
    %s160 = sshrl.u32 %s159, 1
    %s161 = sor.u32 %s159, %s160
    %s162 = sand.u32 51, %s161
    %s163 = sshrl.u32 %s162, 2
    %s164 = sor.u32 %s162, %s163
    %s165 = sand.u32 15, %s164
    %v166 = vld [vmem:[%s156] sm:%s165]
    %v167 = vunpack.c.l.bf16 %v166
    %v168 = vunpack.c.h.bf16 %v166
    %v169 = vlaneseq
    %v170 = vand.u32 %v169, 127
    %vm172 = vcmp.lt.s32.totalorder %v170, 27
    %v173 = vsel %vm172, %v167, %v10
    %s174 = scalar_lea.vmem [#allocation7], 24
    %v175 = vpack.c.bf16 0.0, %v173
    %s177 = ssub.s32 16, 1
    %178 = vst [vmem:[%s174] sm:%s177] %v175
    %s179 = scalar_lea.vmem %s2, 28
    %s181 = sor.u32 255, 127
    %s182 = sand.u32 %s181, 85
    %s183 = sshrl.u32 %s182, 1
    %s184 = sor.u32 %s182, %s183
    %s185 = sand.u32 51, %s184
    %s186 = sshrl.u32 %s185, 2
    %s187 = sor.u32 %s185, %s186
    %s188 = sand.u32 15, %s187
    %v189 = vld [vmem:[%s179] sm:%s188]
    %v190 = vunpack.c.l.bf16 %v189
    %v191 = vunpack.c.h.bf16 %v189
    %v192 = vlaneseq
    %v193 = vand.u32 %v192, 127
    %vm195 = vcmp.lt.s32.totalorder %v193, 27
    %v196 = vsel %vm195, %v190, %v10
    %s197 = scalar_lea.vmem [#allocation7], 28
    %v198 = vpack.c.bf16 0.0, %v196
    %s200 = ssub.s32 16, 1
    %201 = vst [vmem:[%s197] sm:%s200] %v198
    %s202 = scalar_lea.vmem %s2, 32
    %s204 = sor.u32 255, 127
    %s205 = sand.u32 %s204, 85
    %s206 = sshrl.u32 %s205, 1
    %s207 = sor.u32 %s205, %s206
    %s208 = sand.u32 51, %s207
    %s209 = sshrl.u32 %s208, 2
    %s210 = sor.u32 %s208, %s209
    %s211 = sand.u32 15, %s210
    %v212 = vld [vmem:[%s202] sm:%s211]
    %v213 = vunpack.c.l.bf16 %v212
    %v214 = vunpack.c.h.bf16 %v212
    %v215 = vlaneseq
    %v216 = vand.u32 %v215, 127
    %vm218 = vcmp.lt.s32.totalorder %v216, 27
    %v219 = vsel %vm218, %v213, %v10
    %s220 = scalar_lea.vmem [#allocation7], 32
    %v221 = vpack.c.bf16 0.0, %v219
    %s223 = ssub.s32 16, 1
    %224 = vst [vmem:[%s220] sm:%s223] %v221
    %s225 = scalar_lea.vmem %s2, 36
    %s227 = sor.u32 255, 127
    %s228 = sand.u32 %s227, 85
    %s229 = sshrl.u32 %s228, 1
    %s230 = sor.u32 %s228, %s229
    %s231 = sand.u32 51, %s230
    %s232 = sshrl.u32 %s231, 2
    %s233 = sor.u32 %s231, %s232
    %s234 = sand.u32 15, %s233
    %v235 = vld [vmem:[%s225] sm:%s234]
    %v236 = vunpack.c.l.bf16 %v235
    %v237 = vunpack.c.h.bf16 %v235
    %v238 = vlaneseq
    %v239 = vand.u32 %v238, 127
    %vm241 = vcmp.lt.s32.totalorder %v239, 27
    %v242 = vsel %vm241, %v236, %v10
    %s243 = scalar_lea.vmem [#allocation7], 36
    %v244 = vpack.c.bf16 0.0, %v242
    %s246 = ssub.s32 16, 1
    %247 = vst [vmem:[%s243] sm:%s246] %v244
    %s248 = scalar_lea.vmem %s2, 40
    %s250 = sor.u32 255, 127
    %s251 = sand.u32 %s250, 85
    %s252 = sshrl.u32 %s251, 1
    %s253 = sor.u32 %s251, %s252
    %s254 = sand.u32 51, %s253
    %s255 = sshrl.u32 %s254, 2
    %s256 = sor.u32 %s254, %s255
    %s257 = sand.u32 15, %s256
    %v258 = vld [vmem:[%s248] sm:%s257]
    %v259 = vunpack.c.l.bf16 %v258
    %v260 = vunpack.c.h.bf16 %v258
    %v261 = vlaneseq
    %v262 = vand.u32 %v261, 127
    %vm264 = vcmp.lt.s32.totalorder %v262, 27
    %v265 = vsel %vm264, %v259, %v10
    %s266 = scalar_lea.vmem [#allocation7], 40
    %v267 = vpack.c.bf16 0.0, %v265
    %s269 = ssub.s32 16, 1
    %270 = vst [vmem:[%s266] sm:%s269] %v267
    %s271 = scalar_lea.vmem %s2, 44
    %s273 = sor.u32 255, 127
    %s274 = sand.u32 %s273, 85
    %s275 = sshrl.u32 %s274, 1
    %s276 = sor.u32 %s274, %s275
    %s277 = sand.u32 51, %s276
    %s278 = sshrl.u32 %s277, 2
    %s279 = sor.u32 %s277, %s278
    %s280 = sand.u32 15, %s279
    %v281 = vld [vmem:[%s271] sm:%s280]
    %v282 = vunpack.c.l.bf16 %v281
    %v283 = vunpack.c.h.bf16 %v281
    %v284 = vlaneseq
    %v285 = vand.u32 %v284, 127
    %vm287 = vcmp.lt.s32.totalorder %v285, 27
    %v288 = vsel %vm287, %v282, %v10
    %s289 = scalar_lea.vmem [#allocation7], 44
    %v290 = vpack.c.bf16 0.0, %v288
    %s292 = ssub.s32 16, 1
    %293 = vst [vmem:[%s289] sm:%s292] %v290
    %s294 = scalar_lea.vmem %s2, 48
    %s296 = sor.u32 255, 127
    %s297 = sand.u32 %s296, 85
    %s298 = sshrl.u32 %s297, 1
    %s299 = sor.u32 %s297, %s298
    %s300 = sand.u32 51, %s299
    %s301 = sshrl.u32 %s300, 2
    %s302 = sor.u32 %s300, %s301
    %s303 = sand.u32 15, %s302
    %v304 = vld [vmem:[%s294] sm:%s303]
    %v305 = vunpack.c.l.bf16 %v304
    %v306 = vunpack.c.h.bf16 %v304
    %v307 = vlaneseq
    %v308 = vand.u32 %v307, 127
    %vm310 = vcmp.lt.s32.totalorder %v308, 27
    %v311 = vsel %vm310, %v305, %v10
    %s312 = scalar_lea.vmem [#allocation7], 48
    %v313 = vpack.c.bf16 0.0, %v311
    %s315 = ssub.s32 16, 1
    %316 = vst [vmem:[%s312] sm:%s315] %v313
    %s317 = scalar_lea.vmem %s2, 52
    %s319 = sor.u32 255, 127
    %s320 = sand.u32 %s319, 85
    %s321 = sshrl.u32 %s320, 1
    %s322 = sor.u32 %s320, %s321
    %s323 = sand.u32 51, %s322
    %s324 = sshrl.u32 %s323, 2
    %s325 = sor.u32 %s323, %s324
    %s326 = sand.u32 15, %s325
    %v327 = vld [vmem:[%s317] sm:%s326]
    %v328 = vunpack.c.l.bf16 %v327
    %v329 = vunpack.c.h.bf16 %v327
    %v330 = vlaneseq
    %v331 = vand.u32 %v330, 127
    %vm333 = vcmp.lt.s32.totalorder %v331, 27
    %v334 = vsel %vm333, %v328, %v10
    %s335 = scalar_lea.vmem [#allocation7], 52
    %v336 = vpack.c.bf16 0.0, %v334
    %s338 = ssub.s32 16, 1
    %339 = vst [vmem:[%s335] sm:%s338] %v336
    %s340 = scalar_lea.vmem %s2, 56
    %s342 = sor.u32 255, 127
    %s343 = sand.u32 %s342, 85
    %s344 = sshrl.u32 %s343, 1
    %s345 = sor.u32 %s343, %s344
    %s346 = sand.u32 51, %s345
    %s347 = sshrl.u32 %s346, 2
    %s348 = sor.u32 %s346, %s347
    %s349 = sand.u32 15, %s348
    %v350 = vld [vmem:[%s340] sm:%s349]
    %v351 = vunpack.c.l.bf16 %v350
    %v352 = vunpack.c.h.bf16 %v350
    %v353 = vlaneseq
    %v354 = vand.u32 %v353, 127
    %vm356 = vcmp.lt.s32.totalorder %v354, 27
    %v357 = vsel %vm356, %v351, %v10
    %s358 = scalar_lea.vmem [#allocation7], 56
    %v359 = vpack.c.bf16 0.0, %v357
    %s361 = ssub.s32 16, 1
    %362 = vst [vmem:[%s358] sm:%s361] %v359
    %s363 = scalar_lea.vmem %s2, 60
    %s365 = sor.u32 255, 127
    %s366 = sand.u32 %s365, 85
    %s367 = sshrl.u32 %s366, 1
    %s368 = sor.u32 %s366, %s367
    %s369 = sand.u32 51, %s368
    %s370 = sshrl.u32 %s369, 2
    %s371 = sor.u32 %s369, %s370
    %s372 = sand.u32 15, %s371
    %v373 = vld [vmem:[%s363] sm:%s372]
    %v374 = vunpack.c.l.bf16 %v373
    %v375 = vunpack.c.h.bf16 %v373
    %v376 = vlaneseq
    %v377 = vand.u32 %v376, 127
    %vm379 = vcmp.lt.s32.totalorder %v377, 27
    %v380 = vsel %vm379, %v374, %v10
    %s381 = scalar_lea.vmem [#allocation7], 60
    %v382 = vpack.c.bf16 0.0, %v380
    %s384 = ssub.s32 16, 1
    %385 = vst [vmem:[%s381] sm:%s384] %v382
    %s386 = scalar_lea.vmem %s2, 64
    %s388 = sor.u32 255, 127
    %s389 = sand.u32 %s388, 85
    %s390 = sshrl.u32 %s389, 1
    %s391 = sor.u32 %s389, %s390
    %s392 = sand.u32 51, %s391
    %s393 = sshrl.u32 %s392, 2
    %s394 = sor.u32 %s392, %s393
    %s395 = sand.u32 15, %s394
    %v396 = vld [vmem:[%s386] sm:%s395]
    %v397 = vunpack.c.l.bf16 %v396
    %v398 = vunpack.c.h.bf16 %v396
    %v399 = vlaneseq
    %v400 = vand.u32 %v399, 127
    %vm402 = vcmp.lt.s32.totalorder %v400, 27
    %v403 = vsel %vm402, %v397, %v10
    %s404 = scalar_lea.vmem [#allocation7], 64
    %v405 = vpack.c.bf16 0.0, %v403
    %s407 = ssub.s32 16, 1
    %408 = vst [vmem:[%s404] sm:%s407] %v405
    %s409 = scalar_lea.vmem %s2, 68
    %s411 = sor.u32 255, 127
    %s412 = sand.u32 %s411, 85
    %s413 = sshrl.u32 %s412, 1
    %s414 = sor.u32 %s412, %s413
    %s415 = sand.u32 51, %s414
    %s416 = sshrl.u32 %s415, 2
    %s417 = sor.u32 %s415, %s416
    %s418 = sand.u32 15, %s417
    %v419 = vld [vmem:[%s409] sm:%s418]
    %v420 = vunpack.c.l.bf16 %v419
    %v421 = vunpack.c.h.bf16 %v419
    %v422 = vlaneseq
    %v423 = vand.u32 %v422, 127
    %vm425 = vcmp.lt.s32.totalorder %v423, 27
    %v426 = vsel %vm425, %v420, %v10
    %s427 = scalar_lea.vmem [#allocation7], 68
    %v428 = vpack.c.bf16 0.0, %v426
    %s430 = ssub.s32 16, 1
    %431 = vst [vmem:[%s427] sm:%s430] %v428
    %s432 = scalar_lea.vmem %s2, 72
    %s434 = sor.u32 255, 127
    %s435 = sand.u32 %s434, 85
    %s436 = sshrl.u32 %s435, 1
    %s437 = sor.u32 %s435, %s436
    %s438 = sand.u32 51, %s437
    %s439 = sshrl.u32 %s438, 2
    %s440 = sor.u32 %s438, %s439
    %s441 = sand.u32 15, %s440
    %v442 = vld [vmem:[%s432] sm:%s441]
    %v443 = vunpack.c.l.bf16 %v442
    %v444 = vunpack.c.h.bf16 %v442
    %v445 = vlaneseq
    %v446 = vand.u32 %v445, 127
    %vm448 = vcmp.lt.s32.totalorder %v446, 27
    %v449 = vsel %vm448, %v443, %v10
    %s450 = scalar_lea.vmem [#allocation7], 72
    %v451 = vpack.c.bf16 0.0, %v449
    %s453 = ssub.s32 16, 1
    %454 = vst [vmem:[%s450] sm:%s453] %v451
    %s455 = scalar_lea.vmem %s2, 76
    %s457 = sor.u32 255, 127
    %s458 = sand.u32 %s457, 85
    %s459 = sshrl.u32 %s458, 1
    %s460 = sor.u32 %s458, %s459
    %s461 = sand.u32 51, %s460
    %s462 = sshrl.u32 %s461, 2
    %s463 = sor.u32 %s461, %s462
    %s464 = sand.u32 15, %s463
    %v465 = vld [vmem:[%s455] sm:%s464]
    %v466 = vunpack.c.l.bf16 %v465
    %v467 = vunpack.c.h.bf16 %v465
    %v468 = vlaneseq
    %v469 = vand.u32 %v468, 127
    %vm471 = vcmp.lt.s32.totalorder %v469, 27
    %v472 = vsel %vm471, %v466, %v10
    %s473 = scalar_lea.vmem [#allocation7], 76
    %v474 = vpack.c.bf16 0.0, %v472
    %s476 = ssub.s32 16, 1
    %477 = vst [vmem:[%s473] sm:%s476] %v474
    %s478 = scalar_lea.vmem %s2, 80
    %s480 = sor.u32 255, 127
    %s481 = sand.u32 %s480, 85
    %s482 = sshrl.u32 %s481, 1
    %s483 = sor.u32 %s481, %s482
    %s484 = sand.u32 51, %s483
    %s485 = sshrl.u32 %s484, 2
    %s486 = sor.u32 %s484, %s485
    %s487 = sand.u32 15, %s486
    %v488 = vld [vmem:[%s478] sm:%s487]
    %v489 = vunpack.c.l.bf16 %v488
    %v490 = vunpack.c.h.bf16 %v488
    %v491 = vlaneseq
    %v492 = vand.u32 %v491, 127
    %vm494 = vcmp.lt.s32.totalorder %v492, 27
    %v495 = vsel %vm494, %v489, %v10
    %s496 = scalar_lea.vmem [#allocation7], 80
    %v497 = vpack.c.bf16 0.0, %v495
    %s499 = ssub.s32 16, 1
    %500 = vst [vmem:[%s496] sm:%s499] %v497
    %s501 = scalar_lea.vmem %s2, 84
    %s503 = sor.u32 255, 127
    %s504 = sand.u32 %s503, 85
    %s505 = sshrl.u32 %s504, 1
    %s506 = sor.u32 %s504, %s505
    %s507 = sand.u32 51, %s506
    %s508 = sshrl.u32 %s507, 2
    %s509 = sor.u32 %s507, %s508
    %s510 = sand.u32 15, %s509
    %v511 = vld [vmem:[%s501] sm:%s510]
    %v512 = vunpack.c.l.bf16 %v511
    %v513 = vunpack.c.h.bf16 %v511
    %v514 = vlaneseq
    %v515 = vand.u32 %v514, 127
    %vm517 = vcmp.lt.s32.totalorder %v515, 27
    %v518 = vsel %vm517, %v512, %v10
    %s519 = scalar_lea.vmem [#allocation7], 84
    %v520 = vpack.c.bf16 0.0, %v518
    %s522 = ssub.s32 16, 1
    %523 = vst [vmem:[%s519] sm:%s522] %v520
    %s524 = scalar_lea.vmem %s2, 88
    %s526 = sor.u32 255, 127
    %s527 = sand.u32 %s526, 85
    %s528 = sshrl.u32 %s527, 1
    %s529 = sor.u32 %s527, %s528
    %s530 = sand.u32 51, %s529
    %s531 = sshrl.u32 %s530, 2
    %s532 = sor.u32 %s530, %s531
    %s533 = sand.u32 15, %s532
    %v534 = vld [vmem:[%s524] sm:%s533]
    %v535 = vunpack.c.l.bf16 %v534
    %v536 = vunpack.c.h.bf16 %v534
    %v537 = vlaneseq
    %v538 = vand.u32 %v537, 127
    %vm540 = vcmp.lt.s32.totalorder %v538, 27
    %v541 = vsel %vm540, %v535, %v10
    %s542 = scalar_lea.vmem [#allocation7], 88
    %v543 = vpack.c.bf16 0.0, %v541
    %s545 = ssub.s32 16, 1
    %546 = vst [vmem:[%s542] sm:%s545] %v543
    %s547 = scalar_lea.vmem %s2, 92
    %s549 = sor.u32 255, 127
    %s550 = sand.u32 %s549, 85
    %s551 = sshrl.u32 %s550, 1
    %s552 = sor.u32 %s550, %s551
    %s553 = sand.u32 51, %s552
    %s554 = sshrl.u32 %s553, 2
    %s555 = sor.u32 %s553, %s554
    %s556 = sand.u32 15, %s555
    %v557 = vld [vmem:[%s547] sm:%s556]
    %v558 = vunpack.c.l.bf16 %v557
    %v559 = vunpack.c.h.bf16 %v557
    %v560 = vlaneseq
    %v561 = vand.u32 %v560, 127
    %vm563 = vcmp.lt.s32.totalorder %v561, 27
    %v564 = vsel %vm563, %v558, %v10
    %s565 = scalar_lea.vmem [#allocation7], 92
    %v566 = vpack.c.bf16 0.0, %v564
    %s568 = ssub.s32 16, 1
    %569 = vst [vmem:[%s565] sm:%s568] %v566
    %s570 = scalar_lea.vmem %s2, 96
    %s572 = sor.u32 255, 127
    %s573 = sand.u32 %s572, 85
    %s574 = sshrl.u32 %s573, 1
    %s575 = sor.u32 %s573, %s574
    %s576 = sand.u32 51, %s575
    %s577 = sshrl.u32 %s576, 2
    %s578 = sor.u32 %s576, %s577
    %s579 = sand.u32 15, %s578
    %v580 = vld [vmem:[%s570] sm:%s579]
    %v581 = vunpack.c.l.bf16 %v580
    %v582 = vunpack.c.h.bf16 %v580
    %v583 = vlaneseq
    %v584 = vand.u32 %v583, 127
    %vm586 = vcmp.lt.s32.totalorder %v584, 27
    %v587 = vsel %vm586, %v581, %v10
    %s588 = scalar_lea.vmem [#allocation7], 96
    %v589 = vpack.c.bf16 0.0, %v587
    %s591 = ssub.s32 16, 1
    %592 = vst [vmem:[%s588] sm:%s591] %v589
    %s593 = scalar_lea.vmem %s2, 100
    %s595 = sor.u32 255, 127
    %s596 = sand.u32 %s595, 85
    %s597 = sshrl.u32 %s596, 1
    %s598 = sor.u32 %s596, %s597
    %s599 = sand.u32 51, %s598
    %s600 = sshrl.u32 %s599, 2
    %s601 = sor.u32 %s599, %s600
    %s602 = sand.u32 15, %s601
    %v603 = vld [vmem:[%s593] sm:%s602]
    %v604 = vunpack.c.l.bf16 %v603
    %v605 = vunpack.c.h.bf16 %v603
    %v606 = vlaneseq
    %v607 = vand.u32 %v606, 127
    %vm609 = vcmp.lt.s32.totalorder %v607, 27
    %v610 = vsel %vm609, %v604, %v10
    %s611 = scalar_lea.vmem [#allocation7], 100
    %v612 = vpack.c.bf16 0.0, %v610
    %s614 = ssub.s32 16, 1
    %615 = vst [vmem:[%s611] sm:%s614] %v612
    %s616 = scalar_lea.vmem %s2, 104
    %s618 = sor.u32 255, 127
    %s619 = sand.u32 %s618, 85
    %s620 = sshrl.u32 %s619, 1
    %s621 = sor.u32 %s619, %s620
    %s622 = sand.u32 51, %s621
    %s623 = sshrl.u32 %s622, 2
    %s624 = sor.u32 %s622, %s623
    %s625 = sand.u32 15, %s624
    %v626 = vld [vmem:[%s616] sm:%s625]
    %v627 = vunpack.c.l.bf16 %v626
    %v628 = vunpack.c.h.bf16 %v626
    %v629 = vlaneseq
    %v630 = vand.u32 %v629, 127
    %vm632 = vcmp.lt.s32.totalorder %v630, 27
    %v633 = vsel %vm632, %v627, %v10
    %s634 = scalar_lea.vmem [#allocation7], 104
    %v635 = vpack.c.bf16 0.0, %v633
    %s637 = ssub.s32 16, 1
    %638 = vst [vmem:[%s634] sm:%s637] %v635
    %s639 = scalar_lea.vmem %s2, 108
    %s641 = sor.u32 255, 127
    %s642 = sand.u32 %s641, 85
    %s643 = sshrl.u32 %s642, 1
    %s644 = sor.u32 %s642, %s643
    %s645 = sand.u32 51, %s644
    %s646 = sshrl.u32 %s645, 2
    %s647 = sor.u32 %s645, %s646
    %s648 = sand.u32 15, %s647
    %v649 = vld [vmem:[%s639] sm:%s648]
    %v650 = vunpack.c.l.bf16 %v649
    %v651 = vunpack.c.h.bf16 %v649
    %v652 = vlaneseq
    %v653 = vand.u32 %v652, 127
    %vm655 = vcmp.lt.s32.totalorder %v653, 27
    %v656 = vsel %vm655, %v650, %v10
    %s657 = scalar_lea.vmem [#allocation7], 108
    %v658 = vpack.c.bf16 0.0, %v656
    %s660 = ssub.s32 16, 1
    %661 = vst [vmem:[%s657] sm:%s660] %v658
    %s662 = scalar_lea.vmem %s2, 112
    %s664 = sor.u32 255, 127
    %s665 = sand.u32 %s664, 85
    %s666 = sshrl.u32 %s665, 1
    %s667 = sor.u32 %s665, %s666
    %s668 = sand.u32 51, %s667
    %s669 = sshrl.u32 %s668, 2
    %s670 = sor.u32 %s668, %s669
    %s671 = sand.u32 15, %s670
    %v672 = vld [vmem:[%s662] sm:%s671]
    %v673 = vunpack.c.l.bf16 %v672
    %v674 = vunpack.c.h.bf16 %v672
    %v675 = vlaneseq
    %v676 = vand.u32 %v675, 127
    %vm678 = vcmp.lt.s32.totalorder %v676, 27
    %v679 = vsel %vm678, %v673, %v10
    %s680 = scalar_lea.vmem [#allocation7], 112
    %v681 = vpack.c.bf16 0.0, %v679
    %s683 = ssub.s32 16, 1
    %684 = vst [vmem:[%s680] sm:%s683] %v681
    %s685 = scalar_lea.vmem %s2, 116
    %s687 = sor.u32 255, 127
    %s688 = sand.u32 %s687, 85
    %s689 = sshrl.u32 %s688, 1
    %s690 = sor.u32 %s688, %s689
    %s691 = sand.u32 51, %s690
    %s692 = sshrl.u32 %s691, 2
    %s693 = sor.u32 %s691, %s692
    %s694 = sand.u32 15, %s693
    %v695 = vld [vmem:[%s685] sm:%s694]
    %v696 = vunpack.c.l.bf16 %v695
    %v697 = vunpack.c.h.bf16 %v695
    %v698 = vlaneseq
    %v699 = vand.u32 %v698, 127
    %vm701 = vcmp.lt.s32.totalorder %v699, 27
    %v702 = vsel %vm701, %v696, %v10
    %s703 = scalar_lea.vmem [#allocation7], 116
    %v704 = vpack.c.bf16 0.0, %v702
    %s706 = ssub.s32 16, 1
    %707 = vst [vmem:[%s703] sm:%s706] %v704
    %s708 = scalar_lea.vmem %s2, 120
    %s710 = sor.u32 255, 127
    %s711 = sand.u32 %s710, 85
    %s712 = sshrl.u32 %s711, 1
    %s713 = sor.u32 %s711, %s712
    %s714 = sand.u32 51, %s713
    %s715 = sshrl.u32 %s714, 2
    %s716 = sor.u32 %s714, %s715
    %s717 = sand.u32 15, %s716
    %v718 = vld [vmem:[%s708] sm:%s717]
    %v719 = vunpack.c.l.bf16 %v718
    %v720 = vunpack.c.h.bf16 %v718
    %v721 = vlaneseq
    %v722 = vand.u32 %v721, 127
    %vm724 = vcmp.lt.s32.totalorder %v722, 27
    %v725 = vsel %vm724, %v719, %v10
    %s726 = scalar_lea.vmem [#allocation7], 120
    %v727 = vpack.c.bf16 0.0, %v725
    %s729 = ssub.s32 16, 1
    %730 = vst [vmem:[%s726] sm:%s729] %v727
    %s731 = scalar_lea.vmem %s2, 124
    %s733 = sor.u32 255, 127
    %s734 = sand.u32 %s733, 85
    %s735 = sshrl.u32 %s734, 1
    %s736 = sor.u32 %s734, %s735
    %s737 = sand.u32 51, %s736
    %s738 = sshrl.u32 %s737, 2
    %s739 = sor.u32 %s737, %s738
    %s740 = sand.u32 15, %s739
    %v741 = vld [vmem:[%s731] sm:%s740]
    %v742 = vunpack.c.l.bf16 %v741
    %v743 = vunpack.c.h.bf16 %v741
    %v744 = vlaneseq
    %v745 = vand.u32 %v744, 127
    %vm747 = vcmp.lt.s32.totalorder %v745, 27
    %v748 = vsel %vm747, %v742, %v10
    %s749 = scalar_lea.vmem [#allocation7], 124
    %v750 = vpack.c.bf16 0.0, %v748
    %s752 = ssub.s32 16, 1
    %753 = vst [vmem:[%s749] sm:%s752] %v750
    %s754 = scalar_lea.vmem %s2, 128
    %s756 = sor.u32 255, 127
    %s757 = sand.u32 %s756, 85
    %s758 = sshrl.u32 %s757, 1
    %s759 = sor.u32 %s757, %s758
    %s760 = sand.u32 51, %s759
    %s761 = sshrl.u32 %s760, 2
    %s762 = sor.u32 %s760, %s761
    %s763 = sand.u32 15, %s762
    %v764 = vld [vmem:[%s754] sm:%s763]
    %v765 = vunpack.c.l.bf16 %v764
    %v766 = vunpack.c.h.bf16 %v764
    %v767 = vlaneseq
    %v768 = vand.u32 %v767, 127
    %vm770 = vcmp.lt.s32.totalorder %v768, 27
    %v771 = vsel %vm770, %v765, %v10
    %s772 = scalar_lea.vmem [#allocation7], 128
    %v773 = vpack.c.bf16 0.0, %v771
    %s775 = ssub.s32 16, 1
    %776 = vst [vmem:[%s772] sm:%s775] %v773
    %s777 = scalar_lea.vmem %s2, 132
    %s779 = sor.u32 255, 127
    %s780 = sand.u32 %s779, 85
    %s781 = sshrl.u32 %s780, 1
    %s782 = sor.u32 %s780, %s781
    %s783 = sand.u32 51, %s782
    %s784 = sshrl.u32 %s783, 2
    %s785 = sor.u32 %s783, %s784
    %s786 = sand.u32 15, %s785
    %v787 = vld [vmem:[%s777] sm:%s786]
    %v788 = vunpack.c.l.bf16 %v787
    %v789 = vunpack.c.h.bf16 %v787
    %v790 = vlaneseq
    %v791 = vand.u32 %v790, 127
    %vm793 = vcmp.lt.s32.totalorder %v791, 27
    %v794 = vsel %vm793, %v788, %v10
    %s795 = scalar_lea.vmem [#allocation7], 132
    %v796 = vpack.c.bf16 0.0, %v794
    %s798 = ssub.s32 16, 1
    %799 = vst [vmem:[%s795] sm:%s798] %v796
    %s800 = scalar_lea.vmem %s2, 136
    %s802 = sor.u32 255, 127
    %s803 = sand.u32 %s802, 85
    %s804 = sshrl.u32 %s803, 1
    %s805 = sor.u32 %s803, %s804
    %s806 = sand.u32 51, %s805
    %s807 = sshrl.u32 %s806, 2
    %s808 = sor.u32 %s806, %s807
    %s809 = sand.u32 15, %s808
    %v810 = vld [vmem:[%s800] sm:%s809]
    %v811 = vunpack.c.l.bf16 %v810
    %v812 = vunpack.c.h.bf16 %v810
    %v813 = vlaneseq
    %v814 = vand.u32 %v813, 127
    %vm816 = vcmp.lt.s32.totalorder %v814, 27
    %v817 = vsel %vm816, %v811, %v10
    %s818 = scalar_lea.vmem [#allocation7], 136
    %v819 = vpack.c.bf16 0.0, %v817
    %s821 = ssub.s32 16, 1
    %822 = vst [vmem:[%s818] sm:%s821] %v819
    %s823 = scalar_lea.vmem %s2, 140
    %s825 = sor.u32 255, 127
    %s826 = sand.u32 %s825, 85
    %s827 = sshrl.u32 %s826, 1
    %s828 = sor.u32 %s826, %s827
    %s829 = sand.u32 51, %s828
    %s830 = sshrl.u32 %s829, 2
    %s831 = sor.u32 %s829, %s830
    %s832 = sand.u32 15, %s831
    %v833 = vld [vmem:[%s823] sm:%s832]
    %v834 = vunpack.c.l.bf16 %v833
    %v835 = vunpack.c.h.bf16 %v833
    %v836 = vlaneseq
    %v837 = vand.u32 %v836, 127
    %vm839 = vcmp.lt.s32.totalorder %v837, 27
    %v840 = vsel %vm839, %v834, %v10
    %s841 = scalar_lea.vmem [#allocation7], 140
    %v842 = vpack.c.bf16 0.0, %v840
    %s844 = ssub.s32 16, 1
    %845 = vst [vmem:[%s841] sm:%s844] %v842
    %s846 = scalar_lea.vmem %s2, 144
    %s848 = sor.u32 255, 127
    %s849 = sand.u32 %s848, 85
    %s850 = sshrl.u32 %s849, 1
    %s851 = sor.u32 %s849, %s850
    %s852 = sand.u32 51, %s851
    %s853 = sshrl.u32 %s852, 2
    %s854 = sor.u32 %s852, %s853
    %s855 = sand.u32 15, %s854
    %v856 = vld [vmem:[%s846] sm:%s855]
    %v857 = vunpack.c.l.bf16 %v856
    %v858 = vunpack.c.h.bf16 %v856
    %v859 = vlaneseq
    %v860 = vand.u32 %v859, 127
    %vm862 = vcmp.lt.s32.totalorder %v860, 27
    %v863 = vsel %vm862, %v857, %v10
    %s864 = scalar_lea.vmem [#allocation7], 144
    %v865 = vpack.c.bf16 0.0, %v863
    %s867 = ssub.s32 16, 1
    %868 = vst [vmem:[%s864] sm:%s867] %v865
    %s869 = scalar_lea.vmem %s2, 148
    %s871 = sor.u32 255, 127
    %s872 = sand.u32 %s871, 85
    %s873 = sshrl.u32 %s872, 1
    %s874 = sor.u32 %s872, %s873
    %s875 = sand.u32 51, %s874
    %s876 = sshrl.u32 %s875, 2
    %s877 = sor.u32 %s875, %s876
    %s878 = sand.u32 15, %s877
    %v879 = vld [vmem:[%s869] sm:%s878]
    %v880 = vunpack.c.l.bf16 %v879
    %v881 = vunpack.c.h.bf16 %v879
    %v882 = vlaneseq
    %v883 = vand.u32 %v882, 127
    %vm885 = vcmp.lt.s32.totalorder %v883, 27
    %v886 = vsel %vm885, %v880, %v10
    %s887 = scalar_lea.vmem [#allocation7], 148
    %v888 = vpack.c.bf16 0.0, %v886
    %s890 = ssub.s32 16, 1
    %891 = vst [vmem:[%s887] sm:%s890] %v888
    %s892 = scalar_lea.vmem %s2, 152
    %s894 = sor.u32 255, 127
    %s895 = sand.u32 %s894, 85
    %s896 = sshrl.u32 %s895, 1
    %s897 = sor.u32 %s895, %s896
    %s898 = sand.u32 51, %s897
    %s899 = sshrl.u32 %s898, 2
    %s900 = sor.u32 %s898, %s899
    %s901 = sand.u32 15, %s900
    %v902 = vld [vmem:[%s892] sm:%s901]
    %v903 = vunpack.c.l.bf16 %v902
    %v904 = vunpack.c.h.bf16 %v902
    %v905 = vlaneseq
    %v906 = vand.u32 %v905, 127
    %vm908 = vcmp.lt.s32.totalorder %v906, 27
    %v909 = vsel %vm908, %v903, %v10
    %s910 = scalar_lea.vmem [#allocation7], 152
    %v911 = vpack.c.bf16 0.0, %v909
    %s913 = ssub.s32 16, 1
    %914 = vst [vmem:[%s910] sm:%s913] %v911
    %s915 = scalar_lea.vmem %s2, 156
    %s917 = sor.u32 255, 127
    %s918 = sand.u32 %s917, 85
    %s919 = sshrl.u32 %s918, 1
    %s920 = sor.u32 %s918, %s919
    %s921 = sand.u32 51, %s920
    %s922 = sshrl.u32 %s921, 2
    %s923 = sor.u32 %s921, %s922
    %s924 = sand.u32 15, %s923
    %v925 = vld [vmem:[%s915] sm:%s924]
    %v926 = vunpack.c.l.bf16 %v925
    %v927 = vunpack.c.h.bf16 %v925
    %v928 = vlaneseq
    %v929 = vand.u32 %v928, 127
    %vm931 = vcmp.lt.s32.totalorder %v929, 27
    %v932 = vsel %vm931, %v926, %v10
    %s933 = scalar_lea.vmem [#allocation7], 156
    %v934 = vpack.c.bf16 0.0, %v932
    %s936 = ssub.s32 16, 1
    %937 = vst [vmem:[%s933] sm:%s936] %v934
    %s938 = scalar_lea.vmem %s2, 160
    %s940 = sor.u32 255, 127
    %s941 = sand.u32 %s940, 85
    %s942 = sshrl.u32 %s941, 1
    %s943 = sor.u32 %s941, %s942
    %s944 = sand.u32 51, %s943
    %s945 = sshrl.u32 %s944, 2
    %s946 = sor.u32 %s944, %s945
    %s947 = sand.u32 15, %s946
    %v948 = vld [vmem:[%s938] sm:%s947]
    %v949 = vunpack.c.l.bf16 %v948
    %v950 = vunpack.c.h.bf16 %v948
    %v951 = vlaneseq
    %v952 = vand.u32 %v951, 127
    %vm954 = vcmp.lt.s32.totalorder %v952, 27
    %v955 = vsel %vm954, %v949, %v10
    %s956 = scalar_lea.vmem [#allocation7], 160
    %v957 = vpack.c.bf16 0.0, %v955
    %s959 = ssub.s32 16, 1
    %960 = vst [vmem:[%s956] sm:%s959] %v957
    %s961 = scalar_lea.vmem %s2, 164
    %s963 = sor.u32 255, 127
    %s964 = sand.u32 %s963, 85
    %s965 = sshrl.u32 %s964, 1
    %s966 = sor.u32 %s964, %s965
    %s967 = sand.u32 51, %s966
    %s968 = sshrl.u32 %s967, 2
    %s969 = sor.u32 %s967, %s968
    %s970 = sand.u32 15, %s969
    %v971 = vld [vmem:[%s961] sm:%s970]
    %v972 = vunpack.c.l.bf16 %v971
    %v973 = vunpack.c.h.bf16 %v971
    %v974 = vlaneseq
    %v975 = vand.u32 %v974, 127
    %vm977 = vcmp.lt.s32.totalorder %v975, 27
    %v978 = vsel %vm977, %v972, %v10
    %s979 = scalar_lea.vmem [#allocation7], 164
    %v980 = vpack.c.bf16 0.0, %v978
    %s982 = ssub.s32 16, 1
    %983 = vst [vmem:[%s979] sm:%s982] %v980
    %s984 = scalar_lea.vmem %s2, 168
    %s986 = sor.u32 255, 127
    %s987 = sand.u32 %s986, 85
    %s988 = sshrl.u32 %s987, 1
    %s989 = sor.u32 %s987, %s988
    %s990 = sand.u32 51, %s989
    %s991 = sshrl.u32 %s990, 2
    %s992 = sor.u32 %s990, %s991
    %s993 = sand.u32 15, %s992
    %v994 = vld [vmem:[%s984] sm:%s993]
    %v995 = vunpack.c.l.bf16 %v994
    %v996 = vunpack.c.h.bf16 %v994
    %v997 = vlaneseq
    %v998 = vand.u32 %v997, 127
    %vm1000 = vcmp.lt.s32.totalorder %v998, 27
    %v1001 = vsel %vm1000, %v995, %v10
    %s1002 = scalar_lea.vmem [#allocation7], 168
    %v1003 = vpack.c.bf16 0.0, %v1001
    %s1005 = ssub.s32 16, 1
    %1006 = vst [vmem:[%s1002] sm:%s1005] %v1003
    %s1007 = scalar_lea.vmem %s2, 172
    %s1009 = sor.u32 255, 127
    %s1010 = sand.u32 %s1009, 85
    %s1011 = sshrl.u32 %s1010, 1
    %s1012 = sor.u32 %s1010, %s1011
    %s1013 = sand.u32 51, %s1012
    %s1014 = sshrl.u32 %s1013, 2
    %s1015 = sor.u32 %s1013, %s1014
    %s1016 = sand.u32 15, %s1015
    %v1017 = vld [vmem:[%s1007] sm:%s1016]
    %v1018 = vunpack.c.l.bf16 %v1017
    %v1019 = vunpack.c.h.bf16 %v1017
    %v1020 = vlaneseq
    %v1021 = vand.u32 %v1020, 127
    %vm1023 = vcmp.lt.s32.totalorder %v1021, 27
    %v1024 = vsel %vm1023, %v1018, %v10
    %s1025 = scalar_lea.vmem [#allocation7], 172
    %v1026 = vpack.c.bf16 0.0, %v1024
    %s1028 = ssub.s32 16, 1
    %1029 = vst [vmem:[%s1025] sm:%s1028] %v1026
    %s1030 = scalar_lea.vmem %s2, 176
    %s1032 = sor.u32 255, 127
    %s1033 = sand.u32 %s1032, 85
    %s1034 = sshrl.u32 %s1033, 1
    %s1035 = sor.u32 %s1033, %s1034
    %s1036 = sand.u32 51, %s1035
    %s1037 = sshrl.u32 %s1036, 2
    %s1038 = sor.u32 %s1036, %s1037
    %s1039 = sand.u32 15, %s1038
    %v1040 = vld [vmem:[%s1030] sm:%s1039]
    %v1041 = vunpack.c.l.bf16 %v1040
    %v1042 = vunpack.c.h.bf16 %v1040
    %v1043 = vlaneseq
    %v1044 = vand.u32 %v1043, 127
    %vm1046 = vcmp.lt.s32.totalorder %v1044, 27
    %v1047 = vsel %vm1046, %v1041, %v10
    %s1048 = scalar_lea.vmem [#allocation7], 176
    %v1049 = vpack.c.bf16 0.0, %v1047
    %s1051 = ssub.s32 16, 1
    %1052 = vst [vmem:[%s1048] sm:%s1051] %v1049
    %s1053 = scalar_lea.vmem %s2, 180
    %s1055 = sor.u32 255, 127
    %s1056 = sand.u32 %s1055, 85
    %s1057 = sshrl.u32 %s1056, 1
    %s1058 = sor.u32 %s1056, %s1057
    %s1059 = sand.u32 51, %s1058
    %s1060 = sshrl.u32 %s1059, 2
    %s1061 = sor.u32 %s1059, %s1060
    %s1062 = sand.u32 15, %s1061
    %v1063 = vld [vmem:[%s1053] sm:%s1062]
    %v1064 = vunpack.c.l.bf16 %v1063
    %v1065 = vunpack.c.h.bf16 %v1063
    %v1066 = vlaneseq
    %v1067 = vand.u32 %v1066, 127
    %vm1069 = vcmp.lt.s32.totalorder %v1067, 27
    %v1070 = vsel %vm1069, %v1064, %v10
    %s1071 = scalar_lea.vmem [#allocation7], 180
    %v1072 = vpack.c.bf16 0.0, %v1070
    %s1074 = ssub.s32 16, 1
    %1075 = vst [vmem:[%s1071] sm:%s1074] %v1072
    %s1076 = scalar_lea.vmem %s2, 184
    %s1078 = sor.u32 255, 127
    %s1079 = sand.u32 %s1078, 85
    %s1080 = sshrl.u32 %s1079, 1
    %s1081 = sor.u32 %s1079, %s1080
    %s1082 = sand.u32 51, %s1081
    %s1083 = sshrl.u32 %s1082, 2
    %s1084 = sor.u32 %s1082, %s1083
    %s1085 = sand.u32 15, %s1084
    %v1086 = vld [vmem:[%s1076] sm:%s1085]
    %v1087 = vunpack.c.l.bf16 %v1086
    %v1088 = vunpack.c.h.bf16 %v1086
    %v1089 = vlaneseq
    %v1090 = vand.u32 %v1089, 127
    %vm1092 = vcmp.lt.s32.totalorder %v1090, 27
    %v1093 = vsel %vm1092, %v1087, %v10
    %s1094 = scalar_lea.vmem [#allocation7], 184
    %v1095 = vpack.c.bf16 0.0, %v1093
    %s1097 = ssub.s32 16, 1
    %1098 = vst [vmem:[%s1094] sm:%s1097] %v1095
    %s1099 = scalar_lea.vmem %s2, 188
    %s1101 = sor.u32 255, 127
    %s1102 = sand.u32 %s1101, 85
    %s1103 = sshrl.u32 %s1102, 1
    %s1104 = sor.u32 %s1102, %s1103
    %s1105 = sand.u32 51, %s1104
    %s1106 = sshrl.u32 %s1105, 2
    %s1107 = sor.u32 %s1105, %s1106
    %s1108 = sand.u32 15, %s1107
    %v1109 = vld [vmem:[%s1099] sm:%s1108]
    %v1110 = vunpack.c.l.bf16 %v1109
    %v1111 = vunpack.c.h.bf16 %v1109
    %v1112 = vlaneseq
    %v1113 = vand.u32 %v1112, 127
    %vm1115 = vcmp.lt.s32.totalorder %v1113, 27
    %v1116 = vsel %vm1115, %v1110, %v10
    %s1117 = scalar_lea.vmem [#allocation7], 188
    %v1118 = vpack.c.bf16 0.0, %v1116
    %s1120 = ssub.s32 16, 1
    %1121 = vst [vmem:[%s1117] sm:%s1120] %v1118
    %s1122 = scalar_lea.vmem %s2, 192
    %s1124 = sor.u32 255, 127
    %s1125 = sand.u32 %s1124, 85
    %s1126 = sshrl.u32 %s1125, 1
    %s1127 = sor.u32 %s1125, %s1126
    %s1128 = sand.u32 51, %s1127
    %s1129 = sshrl.u32 %s1128, 2
    %s1130 = sor.u32 %s1128, %s1129
    %s1131 = sand.u32 15, %s1130
    %v1132 = vld [vmem:[%s1122] sm:%s1131]
    %v1133 = vunpack.c.l.bf16 %v1132
    %v1134 = vunpack.c.h.bf16 %v1132
    %v1135 = vlaneseq
    %v1136 = vand.u32 %v1135, 127
    %vm1138 = vcmp.lt.s32.totalorder %v1136, 27
    %v1139 = vsel %vm1138, %v1133, %v10
    %s1140 = scalar_lea.vmem [#allocation7], 192
    %v1141 = vpack.c.bf16 0.0, %v1139
    %s1143 = ssub.s32 16, 1
    %1144 = vst [vmem:[%s1140] sm:%s1143] %v1141
    %s1145 = scalar_lea.vmem %s2, 196
    %s1147 = sor.u32 255, 127
    %s1148 = sand.u32 %s1147, 85
    %s1149 = sshrl.u32 %s1148, 1
    %s1150 = sor.u32 %s1148, %s1149
    %s1151 = sand.u32 51, %s1150
    %s1152 = sshrl.u32 %s1151, 2
    %s1153 = sor.u32 %s1151, %s1152
    %s1154 = sand.u32 15, %s1153
    %v1155 = vld [vmem:[%s1145] sm:%s1154]
    %v1156 = vunpack.c.l.bf16 %v1155
    %v1157 = vunpack.c.h.bf16 %v1155
    %v1158 = vlaneseq
    %v1159 = vand.u32 %v1158, 127
    %vm1161 = vcmp.lt.s32.totalorder %v1159, 27
    %v1162 = vsel %vm1161, %v1156, %v10
    %s1163 = scalar_lea.vmem [#allocation7], 196
    %v1164 = vpack.c.bf16 0.0, %v1162
    %s1166 = ssub.s32 16, 1
    %1167 = vst [vmem:[%s1163] sm:%s1166] %v1164
    %s1168 = scalar_lea.vmem %s2, 200
    %s1170 = sor.u32 255, 127
    %s1171 = sand.u32 %s1170, 85
    %s1172 = sshrl.u32 %s1171, 1
    %s1173 = sor.u32 %s1171, %s1172
    %s1174 = sand.u32 51, %s1173
    %s1175 = sshrl.u32 %s1174, 2
    %s1176 = sor.u32 %s1174, %s1175
    %s1177 = sand.u32 15, %s1176
    %v1178 = vld [vmem:[%s1168] sm:%s1177]
    %v1179 = vunpack.c.l.bf16 %v1178
    %v1180 = vunpack.c.h.bf16 %v1178
    %v1181 = vlaneseq
    %v1182 = vand.u32 %v1181, 127
    %vm1184 = vcmp.lt.s32.totalorder %v1182, 27
    %v1185 = vsel %vm1184, %v1179, %v10
    %s1186 = scalar_lea.vmem [#allocation7], 200
    %v1187 = vpack.c.bf16 0.0, %v1185
    %s1189 = ssub.s32 16, 1
    %1190 = vst [vmem:[%s1186] sm:%s1189] %v1187
    %s1191 = scalar_lea.vmem %s2, 204
    %s1193 = sor.u32 255, 127
    %s1194 = sand.u32 %s1193, 85
    %s1195 = sshrl.u32 %s1194, 1
    %s1196 = sor.u32 %s1194, %s1195
    %s1197 = sand.u32 51, %s1196
    %s1198 = sshrl.u32 %s1197, 2
    %s1199 = sor.u32 %s1197, %s1198
    %s1200 = sand.u32 15, %s1199
    %v1201 = vld [vmem:[%s1191] sm:%s1200]
    %v1202 = vunpack.c.l.bf16 %v1201
    %v1203 = vunpack.c.h.bf16 %v1201
    %v1204 = vlaneseq
    %v1205 = vand.u32 %v1204, 127
    %vm1207 = vcmp.lt.s32.totalorder %v1205, 27
    %v1208 = vsel %vm1207, %v1202, %v10
    %s1209 = scalar_lea.vmem [#allocation7], 204
    %v1210 = vpack.c.bf16 0.0, %v1208
    %s1212 = ssub.s32 16, 1
    %1213 = vst [vmem:[%s1209] sm:%s1212] %v1210
    %s1214 = scalar_lea.vmem %s2, 208
    %s1216 = sor.u32 255, 127
    %s1217 = sand.u32 %s1216, 85
    %s1218 = sshrl.u32 %s1217, 1
    %s1219 = sor.u32 %s1217, %s1218
    %s1220 = sand.u32 51, %s1219
    %s1221 = sshrl.u32 %s1220, 2
    %s1222 = sor.u32 %s1220, %s1221
    %s1223 = sand.u32 15, %s1222
    %v1224 = vld [vmem:[%s1214] sm:%s1223]
    %v1225 = vunpack.c.l.bf16 %v1224
    %v1226 = vunpack.c.h.bf16 %v1224
    %v1227 = vlaneseq
    %v1228 = vand.u32 %v1227, 127
    %vm1230 = vcmp.lt.s32.totalorder %v1228, 27
    %v1231 = vsel %vm1230, %v1225, %v10
    %s1232 = scalar_lea.vmem [#allocation7], 208
    %v1233 = vpack.c.bf16 0.0, %v1231
    %s1235 = ssub.s32 16, 1
    %1236 = vst [vmem:[%s1232] sm:%s1235] %v1233
    %s1237 = scalar_lea.vmem %s2, 212
    %s1239 = sor.u32 255, 127
    %s1240 = sand.u32 %s1239, 85
    %s1241 = sshrl.u32 %s1240, 1
    %s1242 = sor.u32 %s1240, %s1241
    %s1243 = sand.u32 51, %s1242
    %s1244 = sshrl.u32 %s1243, 2
    %s1245 = sor.u32 %s1243, %s1244
    %s1246 = sand.u32 15, %s1245
    %v1247 = vld [vmem:[%s1237] sm:%s1246]
    %v1248 = vunpack.c.l.bf16 %v1247
    %v1249 = vunpack.c.h.bf16 %v1247
    %v1250 = vlaneseq
    %v1251 = vand.u32 %v1250, 127
    %vm1253 = vcmp.lt.s32.totalorder %v1251, 27
    %v1254 = vsel %vm1253, %v1248, %v10
    %s1255 = scalar_lea.vmem [#allocation7], 212
    %v1256 = vpack.c.bf16 0.0, %v1254
    %s1258 = ssub.s32 16, 1
    %1259 = vst [vmem:[%s1255] sm:%s1258] %v1256
    %s1260 = scalar_lea.vmem %s2, 216
    %s1262 = sor.u32 255, 127
    %s1263 = sand.u32 %s1262, 85
    %s1264 = sshrl.u32 %s1263, 1
    %s1265 = sor.u32 %s1263, %s1264
    %s1266 = sand.u32 51, %s1265
    %s1267 = sshrl.u32 %s1266, 2
    %s1268 = sor.u32 %s1266, %s1267
    %s1269 = sand.u32 15, %s1268
    %v1270 = vld [vmem:[%s1260] sm:%s1269]
    %v1271 = vunpack.c.l.bf16 %v1270
    %v1272 = vunpack.c.h.bf16 %v1270
    %v1273 = vlaneseq
    %v1274 = vand.u32 %v1273, 127
    %vm1276 = vcmp.lt.s32.totalorder %v1274, 27
    %v1277 = vsel %vm1276, %v1271, %v10
    %s1278 = scalar_lea.vmem [#allocation7], 216
    %v1279 = vpack.c.bf16 0.0, %v1277
    %s1281 = ssub.s32 16, 1
    %1282 = vst [vmem:[%s1278] sm:%s1281] %v1279
    %s1283 = scalar_lea.vmem %s2, 220
    %s1285 = sor.u32 255, 127
    %s1286 = sand.u32 %s1285, 85
    %s1287 = sshrl.u32 %s1286, 1
    %s1288 = sor.u32 %s1286, %s1287
    %s1289 = sand.u32 51, %s1288
    %s1290 = sshrl.u32 %s1289, 2
    %s1291 = sor.u32 %s1289, %s1290
    %s1292 = sand.u32 15, %s1291
    %v1293 = vld [vmem:[%s1283] sm:%s1292]
    %v1294 = vunpack.c.l.bf16 %v1293
    %v1295 = vunpack.c.h.bf16 %v1293
    %v1296 = vlaneseq
    %v1297 = vand.u32 %v1296, 127
    %vm1299 = vcmp.lt.s32.totalorder %v1297, 27
    %v1300 = vsel %vm1299, %v1294, %v10
    %s1301 = scalar_lea.vmem [#allocation7], 220
    %v1302 = vpack.c.bf16 0.0, %v1300
    %s1304 = ssub.s32 16, 1
    %1305 = vst [vmem:[%s1301] sm:%s1304] %v1302
    %s1306 = scalar_lea.vmem %s2, 224
    %s1308 = sor.u32 255, 127
    %s1309 = sand.u32 %s1308, 85
    %s1310 = sshrl.u32 %s1309, 1
    %s1311 = sor.u32 %s1309, %s1310
    %s1312 = sand.u32 51, %s1311
    %s1313 = sshrl.u32 %s1312, 2
    %s1314 = sor.u32 %s1312, %s1313
    %s1315 = sand.u32 15, %s1314
    %v1316 = vld [vmem:[%s1306] sm:%s1315]
    %v1317 = vunpack.c.l.bf16 %v1316
    %v1318 = vunpack.c.h.bf16 %v1316
    %v1319 = vlaneseq
    %v1320 = vand.u32 %v1319, 127
    %vm1322 = vcmp.lt.s32.totalorder %v1320, 27
    %v1323 = vsel %vm1322, %v1317, %v10
    %s1324 = scalar_lea.vmem [#allocation7], 224
    %v1325 = vpack.c.bf16 0.0, %v1323
    %s1327 = ssub.s32 16, 1
    %1328 = vst [vmem:[%s1324] sm:%s1327] %v1325
    %s1329 = scalar_lea.vmem %s2, 228
    %s1331 = sor.u32 255, 127
    %s1332 = sand.u32 %s1331, 85
    %s1333 = sshrl.u32 %s1332, 1
    %s1334 = sor.u32 %s1332, %s1333
    %s1335 = sand.u32 51, %s1334
    %s1336 = sshrl.u32 %s1335, 2
    %s1337 = sor.u32 %s1335, %s1336
    %s1338 = sand.u32 15, %s1337
    %v1339 = vld [vmem:[%s1329] sm:%s1338]
    %v1340 = vunpack.c.l.bf16 %v1339
    %v1341 = vunpack.c.h.bf16 %v1339
    %v1342 = vlaneseq
    %v1343 = vand.u32 %v1342, 127
    %vm1345 = vcmp.lt.s32.totalorder %v1343, 27
    %v1346 = vsel %vm1345, %v1340, %v10
    %s1347 = scalar_lea.vmem [#allocation7], 228
    %v1348 = vpack.c.bf16 0.0, %v1346
    %s1350 = ssub.s32 16, 1
    %1351 = vst [vmem:[%s1347] sm:%s1350] %v1348
    %s1352 = scalar_lea.vmem %s2, 232
    %s1354 = sor.u32 255, 127
    %s1355 = sand.u32 %s1354, 85
    %s1356 = sshrl.u32 %s1355, 1
    %s1357 = sor.u32 %s1355, %s1356
    %s1358 = sand.u32 51, %s1357
    %s1359 = sshrl.u32 %s1358, 2
    %s1360 = sor.u32 %s1358, %s1359
    %s1361 = sand.u32 15, %s1360
    %v1362 = vld [vmem:[%s1352] sm:%s1361]
    %v1363 = vunpack.c.l.bf16 %v1362
    %v1364 = vunpack.c.h.bf16 %v1362
    %v1365 = vlaneseq
    %v1366 = vand.u32 %v1365, 127
    %vm1368 = vcmp.lt.s32.totalorder %v1366, 27
    %v1369 = vsel %vm1368, %v1363, %v10
    %s1370 = scalar_lea.vmem [#allocation7], 232
    %v1371 = vpack.c.bf16 0.0, %v1369
    %s1373 = ssub.s32 16, 1
    %1374 = vst [vmem:[%s1370] sm:%s1373] %v1371
    %s1375 = scalar_lea.vmem %s2, 236
    %s1377 = sor.u32 255, 127
    %s1378 = sand.u32 %s1377, 85
    %s1379 = sshrl.u32 %s1378, 1
    %s1380 = sor.u32 %s1378, %s1379
    %s1381 = sand.u32 51, %s1380
    %s1382 = sshrl.u32 %s1381, 2
    %s1383 = sor.u32 %s1381, %s1382
    %s1384 = sand.u32 15, %s1383
    %v1385 = vld [vmem:[%s1375] sm:%s1384]
    %v1386 = vunpack.c.l.bf16 %v1385
    %v1387 = vunpack.c.h.bf16 %v1385
    %v1388 = vlaneseq
    %v1389 = vand.u32 %v1388, 127
    %vm1391 = vcmp.lt.s32.totalorder %v1389, 27
    %v1392 = vsel %vm1391, %v1386, %v10
    %s1393 = scalar_lea.vmem [#allocation7], 236
    %v1394 = vpack.c.bf16 0.0, %v1392
    %s1396 = ssub.s32 16, 1
    %1397 = vst [vmem:[%s1393] sm:%s1396] %v1394
    %s1398 = scalar_lea.vmem %s2, 240
    %s1400 = sor.u32 255, 127
    %s1401 = sand.u32 %s1400, 85
    %s1402 = sshrl.u32 %s1401, 1
    %s1403 = sor.u32 %s1401, %s1402
    %s1404 = sand.u32 51, %s1403
    %s1405 = sshrl.u32 %s1404, 2
    %s1406 = sor.u32 %s1404, %s1405
    %s1407 = sand.u32 15, %s1406
    %v1408 = vld [vmem:[%s1398] sm:%s1407]
    %v1409 = vunpack.c.l.bf16 %v1408
    %v1410 = vunpack.c.h.bf16 %v1408
    %v1411 = vlaneseq
    %v1412 = vand.u32 %v1411, 127
    %vm1414 = vcmp.lt.s32.totalorder %v1412, 27
    %v1415 = vsel %vm1414, %v1409, %v10
    %s1416 = scalar_lea.vmem [#allocation7], 240
    %v1417 = vpack.c.bf16 0.0, %v1415
    %s1419 = ssub.s32 16, 1
    %1420 = vst [vmem:[%s1416] sm:%s1419] %v1417
    %s1421 = scalar_lea.vmem %s2, 244
    %s1423 = sor.u32 255, 127
    %s1424 = sand.u32 %s1423, 85
    %s1425 = sshrl.u32 %s1424, 1
    %s1426 = sor.u32 %s1424, %s1425
    %s1427 = sand.u32 51, %s1426
    %s1428 = sshrl.u32 %s1427, 2
    %s1429 = sor.u32 %s1427, %s1428
    %s1430 = sand.u32 15, %s1429
    %v1431 = vld [vmem:[%s1421] sm:%s1430]
    %v1432 = vunpack.c.l.bf16 %v1431
    %v1433 = vunpack.c.h.bf16 %v1431
    %v1434 = vlaneseq
    %v1435 = vand.u32 %v1434, 127
    %vm1437 = vcmp.lt.s32.totalorder %v1435, 27
    %v1438 = vsel %vm1437, %v1432, %v10
    %s1439 = scalar_lea.vmem [#allocation7], 244
    %v1440 = vpack.c.bf16 0.0, %v1438
    %s1442 = ssub.s32 16, 1
    %1443 = vst [vmem:[%s1439] sm:%s1442] %v1440
    %s1444 = scalar_lea.vmem %s2, 248
    %s1446 = sor.u32 255, 127
    %s1447 = sand.u32 %s1446, 85
    %s1448 = sshrl.u32 %s1447, 1
    %s1449 = sor.u32 %s1447, %s1448
    %s1450 = sand.u32 51, %s1449
    %s1451 = sshrl.u32 %s1450, 2
    %s1452 = sor.u32 %s1450, %s1451
    %s1453 = sand.u32 15, %s1452
    %v1454 = vld [vmem:[%s1444] sm:%s1453]
    %v1455 = vunpack.c.l.bf16 %v1454
    %v1456 = vunpack.c.h.bf16 %v1454
    %v1457 = vlaneseq
    %v1458 = vand.u32 %v1457, 127
    %vm1460 = vcmp.lt.s32.totalorder %v1458, 27
    %v1461 = vsel %vm1460, %v1455, %v10
    %s1462 = scalar_lea.vmem [#allocation7], 248
    %v1463 = vpack.c.bf16 0.0, %v1461
    %s1465 = ssub.s32 16, 1
    %1466 = vst [vmem:[%s1462] sm:%s1465] %v1463
    %s1467 = scalar_lea.vmem %s2, 252
    %s1469 = sor.u32 255, 127
    %s1470 = sand.u32 %s1469, 85
    %s1471 = sshrl.u32 %s1470, 1
    %s1472 = sor.u32 %s1470, %s1471
    %s1473 = sand.u32 51, %s1472
    %s1474 = sshrl.u32 %s1473, 2
    %s1475 = sor.u32 %s1473, %s1474
    %s1476 = sand.u32 15, %s1475
    %v1477 = vld [vmem:[%s1467] sm:%s1476]
    %v1478 = vunpack.c.l.bf16 %v1477
    %v1479 = vunpack.c.h.bf16 %v1477
    %v1480 = vlaneseq
    %v1481 = vand.u32 %v1480, 127
    %vm1483 = vcmp.lt.s32.totalorder %v1481, 27
    %v1484 = vsel %vm1483, %v1478, %v10
    %s1485 = scalar_lea.vmem [#allocation7], 252
    %v1486 = vpack.c.bf16 0.0, %v1484
    %s1488 = ssub.s32 16, 1
    %1489 = vst [vmem:[%s1485] sm:%s1488] %v1486
    %v1490 = vld [vmem:[#allocation7] sm:$0xf]
    %v1491 = vld [vmem:[#allocation7 + $0x4] sm:$0xf]
    %v1492 = vld [vmem:[#allocation7 + $0x8] sm:$0xf]
    %v1493 = vld [vmem:[#allocation7 + $0xc] sm:$0xf]
    %v1494 = vld [vmem:[#allocation7 + $0x10] sm:$0xf]
    %v1495 = vld [vmem:[#allocation7 + $0x14] sm:$0xf]
    %v1496 = vld [vmem:[#allocation7 + $0x18] sm:$0xf]
    %v1497 = vld [vmem:[#allocation7 + $0x1c] sm:$0xf]
    %v1498 = vld [vmem:[#allocation7 + $0x20] sm:$0xf]
    %v1499 = vld [vmem:[#allocation7 + $0x24] sm:$0xf]
    %v1500 = vld [vmem:[#allocation7 + $0x28] sm:$0xf]
    %v1501 = vld [vmem:[#allocation7 + $0x2c] sm:$0xf]
    %v1502 = vld [vmem:[#allocation7 + $0x30] sm:$0xf]
    %v1503 = vld [vmem:[#allocation7 + $0x34] sm:$0xf]
    %v1504 = vld [vmem:[#allocation7 + $0x38] sm:$0xf]
    %v1505 = vld [vmem:[#allocation7 + $0x3c] sm:$0xf]
    %v1506 = vld [vmem:[#allocation7 + $0x40] sm:$0xf]
    %v1507 = vld [vmem:[#allocation7 + $0x44] sm:$0xf]
    %v1508 = vld [vmem:[#allocation7 + $0x48] sm:$0xf]
    %v1509 = vld [vmem:[#allocation7 + $0x4c] sm:$0xf]
    %v1510 = vld [vmem:[#allocation7 + $0x50] sm:$0xf]
    %v1511 = vld [vmem:[#allocation7 + $0x54] sm:$0xf]
    %v1512 = vld [vmem:[#allocation7 + $0x58] sm:$0xf]
    %v1513 = vld [vmem:[#allocation7 + $0x5c] sm:$0xf]
    %v1514 = vld [vmem:[#allocation7 + $0x60] sm:$0xf]
    %v1515 = vld [vmem:[#allocation7 + $0x64] sm:$0xf]
    %v1516 = vld [vmem:[#allocation7 + $0x68] sm:$0xf]
    %v1517 = vld [vmem:[#allocation7 + $0x6c] sm:$0xf]
    %v1518 = vld [vmem:[#allocation7 + $0x70] sm:$0xf]
    %v1519 = vld [vmem:[#allocation7 + $0x74] sm:$0xf]
    %v1520 = vld [vmem:[#allocation7 + $0x78] sm:$0xf]
    %v1521 = vld [vmem:[#allocation7 + $0x7c] sm:$0xf]
    %v1522 = vld [vmem:[#allocation7 + $0x80] sm:$0xf]
    %v1523 = vld [vmem:[#allocation7 + $0x84] sm:$0xf]
    %v1524 = vld [vmem:[#allocation7 + $0x88] sm:$0xf]
    %v1525 = vld [vmem:[#allocation7 + $0x8c] sm:$0xf]
    %v1526 = vld [vmem:[#allocation7 + $0x90] sm:$0xf]
    %v1527 = vld [vmem:[#allocation7 + $0x94] sm:$0xf]
    %v1528 = vld [vmem:[#allocation7 + $0x98] sm:$0xf]
    %v1529 = vld [vmem:[#allocation7 + $0x9c] sm:$0xf]
    %v1530 = vld [vmem:[#allocation7 + $0xa0] sm:$0xf]
    %v1531 = vld [vmem:[#allocation7 + $0xa4] sm:$0xf]
    %v1532 = vld [vmem:[#allocation7 + $0xa8] sm:$0xf]
    %v1533 = vld [vmem:[#allocation7 + $0xac] sm:$0xf]
    %v1534 = vld [vmem:[#allocation7 + $0xb0] sm:$0xf]
    %v1535 = vld [vmem:[#allocation7 + $0xb4] sm:$0xf]
    %v1536 = vld [vmem:[#allocation7 + $0xb8] sm:$0xf]
    %v1537 = vld [vmem:[#allocation7 + $0xbc] sm:$0xf]
    %v1538 = vld [vmem:[#allocation7 + $0xc0] sm:$0xf]
    %v1539 = vld [vmem:[#allocation7 + $0xc4] sm:$0xf]
    %v1540 = vld [vmem:[#allocation7 + $0xc8] sm:$0xf]
    %v1541 = vld [vmem:[#allocation7 + $0xcc] sm:$0xf]
    %v1542 = vld [vmem:[#allocation7 + $0xd0] sm:$0xf]
    %v1543 = vld [vmem:[#allocation7 + $0xd4] sm:$0xf]
    %v1544 = vld [vmem:[#allocation7 + $0xd8] sm:$0xf]
    %v1545 = vld [vmem:[#allocation7 + $0xdc] sm:$0xf]
    %v1546 = vld [vmem:[#allocation7 + $0xe0] sm:$0xf]
    %v1547 = vld [vmem:[#allocation7 + $0xe4] sm:$0xf]
    %v1548 = vld [vmem:[#allocation7 + $0xe8] sm:$0xf]
    %v1549 = vld [vmem:[#allocation7 + $0xec] sm:$0xf]
    %v1550 = vld [vmem:[#allocation7 + $0xf0] sm:$0xf]
    %v1551 = vld [vmem:[#allocation7 + $0xf4] sm:$0xf]
    %v1552 = vld [vmem:[#allocation7 + $0xf8] sm:$0xf]
    %v1553 = vld [vmem:[#allocation7 + $0xfc] sm:$0xf]
    %v1554 = vld [vmem:[%s0] sm:$0xf]
    %v1555 = vld [vmem:[%s0 + $0x4] sm:$0xf]
    %v1556 = vld [vmem:[%s0 + $0x8] sm:$0xf]
    %v1557 = vld [vmem:[%s0 + $0xc] sm:$0xf]
    %v1558 = vld [vmem:[%s0 + $0x10] sm:$0xf]
    %v1559 = vld [vmem:[%s0 + $0x14] sm:$0xf]
    %v1560 = vld [vmem:[%s0 + $0x18] sm:$0xf]
    %v1561 = vld [vmem:[%s0 + $0x1c] sm:$0xf]
    %v1562 = vld [vmem:[%s0 + $0x20] sm:$0xf]
    %v1563 = vld [vmem:[%s0 + $0x24] sm:$0xf]
    %v1564 = vld [vmem:[%s0 + $0x28] sm:$0xf]
    %v1565 = vld [vmem:[%s0 + $0x2c] sm:$0xf]
    %v1566 = vld [vmem:[%s0 + $0x30] sm:$0xf]
    %v1567 = vld [vmem:[%s0 + $0x34] sm:$0xf]
    %v1568 = vld [vmem:[%s0 + $0x38] sm:$0xf]
    %v1569 = vld [vmem:[%s0 + $0x3c] sm:$0xf]
    %v1570 = vld [vmem:[%s1] sm:$0x1]
    %v1572 = vperm.slane %v1570, 0
    %v1638 = vunpack.c.l.b16 %v1490
    %v1639 = vunpack.c.l.b16 %v1491
    %v1640 = vunpack.c.l.b16 %v1492
    %v1641 = vunpack.c.l.b16 %v1493
    %v1642 = vunpack.c.l.b16 %v1494
    %v1643 = vunpack.c.l.b16 %v1495
    %v1644 = vunpack.c.l.b16 %v1496
    %v1645 = vunpack.c.l.b16 %v1497
    %v1646 = vunpack.c.l.b16 %v1498
    %v1647 = vunpack.c.l.b16 %v1499
    %v1648 = vunpack.c.l.b16 %v1500
    %v1649 = vunpack.c.l.b16 %v1501
    %v1650 = vunpack.c.l.b16 %v1502
    %v1651 = vunpack.c.l.b16 %v1503
    %v1652 = vunpack.c.l.b16 %v1504
    %v1653 = vunpack.c.l.b16 %v1505
    %v1654 = vunpack.c.l.b16 %v1506
    %v1655 = vunpack.c.l.b16 %v1507
    %v1656 = vunpack.c.l.b16 %v1508
    %v1657 = vunpack.c.l.b16 %v1509
    %v1658 = vunpack.c.l.b16 %v1510
    %v1659 = vunpack.c.l.b16 %v1511
    %v1660 = vunpack.c.l.b16 %v1512
    %v1661 = vunpack.c.l.b16 %v1513
    %v1662 = vunpack.c.l.b16 %v1514
    %v1663 = vunpack.c.l.b16 %v1515
    %v1664 = vunpack.c.l.b16 %v1516
    %v1665 = vunpack.c.l.b16 %v1517
    %v1666 = vunpack.c.l.b16 %v1518
    %v1667 = vunpack.c.l.b16 %v1519
    %v1668 = vunpack.c.l.b16 %v1520
    %v1669 = vunpack.c.l.b16 %v1521
    %v1670 = vunpack.c.l.b16 %v1522
    %v1671 = vunpack.c.l.b16 %v1523
    %v1672 = vunpack.c.l.b16 %v1524
    %v1673 = vunpack.c.l.b16 %v1525
    %v1674 = vunpack.c.l.b16 %v1526
    %v1675 = vunpack.c.l.b16 %v1527
    %v1676 = vunpack.c.l.b16 %v1528
    %v1677 = vunpack.c.l.b16 %v1529
    %v1678 = vunpack.c.l.b16 %v1530
    %v1679 = vunpack.c.l.b16 %v1531
    %v1680 = vunpack.c.l.b16 %v1532
    %v1681 = vunpack.c.l.b16 %v1533
    %v1682 = vunpack.c.l.b16 %v1534
    %v1683 = vunpack.c.l.b16 %v1535
    %v1684 = vunpack.c.l.b16 %v1536
    %v1685 = vunpack.c.l.b16 %v1537
    %v1686 = vunpack.c.l.b16 %v1538
    %v1687 = vunpack.c.l.b16 %v1539
    %v1688 = vunpack.c.l.b16 %v1540
    %v1689 = vunpack.c.l.b16 %v1541
    %v1690 = vunpack.c.l.b16 %v1542
    %v1691 = vunpack.c.l.b16 %v1543
    %v1692 = vunpack.c.l.b16 %v1544
    %v1693 = vunpack.c.l.b16 %v1545
    %v1694 = vunpack.c.l.b16 %v1546
    %v1695 = vunpack.c.l.b16 %v1547
    %v1696 = vunpack.c.l.b16 %v1548
    %v1697 = vunpack.c.l.b16 %v1549
    %v1698 = vunpack.c.l.b16 %v1550
    %v1699 = vunpack.c.l.b16 %v1551
    %v1700 = vunpack.c.l.b16 %v1552
    %v1701 = vunpack.c.l.b16 %v1553
    %v1702 = vpack.c.b16 %v1639, %v1638
    %v1703 = vpack.c.b16 %v1641, %v1640
    %v1704 = vpack.c.b16 %v1643, %v1642
    %v1705 = vpack.c.b16 %v1645, %v1644
    %v1706 = vpack.c.b16 %v1647, %v1646
    %v1707 = vpack.c.b16 %v1649, %v1648
    %v1708 = vpack.c.b16 %v1651, %v1650
    %v1709 = vpack.c.b16 %v1653, %v1652
    %v1710 = vpack.c.b16 %v1655, %v1654
    %v1711 = vpack.c.b16 %v1657, %v1656
    %v1712 = vpack.c.b16 %v1659, %v1658
    %v1713 = vpack.c.b16 %v1661, %v1660
    %v1714 = vpack.c.b16 %v1663, %v1662
    %v1715 = vpack.c.b16 %v1665, %v1664
    %v1716 = vpack.c.b16 %v1667, %v1666
    %v1717 = vpack.c.b16 %v1669, %v1668
    %v1718 = vpack.c.b16 %v1671, %v1670
    %v1719 = vpack.c.b16 %v1673, %v1672
    %v1720 = vpack.c.b16 %v1675, %v1674
    %v1721 = vpack.c.b16 %v1677, %v1676
    %v1722 = vpack.c.b16 %v1679, %v1678
    %v1723 = vpack.c.b16 %v1681, %v1680
    %v1724 = vpack.c.b16 %v1683, %v1682
    %v1725 = vpack.c.b16 %v1685, %v1684
    %v1726 = vpack.c.b16 %v1687, %v1686
    %v1727 = vpack.c.b16 %v1689, %v1688
    %v1728 = vpack.c.b16 %v1691, %v1690
    %v1729 = vpack.c.b16 %v1693, %v1692
    %v1730 = vpack.c.b16 %v1695, %v1694
    %v1731 = vpack.c.b16 %v1697, %v1696
    %v1732 = vpack.c.b16 %v1699, %v1698
    %v1733 = vpack.c.b16 %v1701, %v1700
    %v1782 = vunpack.c.l.b16 %v1554
    %v1783 = vunpack.c.l.b16 %v1555
    %v1784 = vunpack.c.l.b16 %v1556
    %v1785 = vunpack.c.l.b16 %v1557
    %v1786 = vunpack.c.l.b16 %v1558
    %v1787 = vunpack.c.l.b16 %v1559
    %v1788 = vunpack.c.l.b16 %v1560
    %v1789 = vunpack.c.l.b16 %v1561
    %v1790 = vunpack.c.l.b16 %v1562
    %v1791 = vunpack.c.l.b16 %v1563
    %v1792 = vunpack.c.l.b16 %v1564
    %v1793 = vunpack.c.l.b16 %v1565
    %v1794 = vunpack.c.l.b16 %v1566
    %v1795 = vunpack.c.l.b16 %v1567
    %v1796 = vunpack.c.l.b16 %v1568
    %v1797 = vunpack.c.l.b16 %v1569
    %v1798 = vpack.c.b16 %v1783, %v1782
    %v1799 = vpack.c.b16 %v1785, %v1784
    %v1800 = vpack.c.b16 %v1787, %v1786
    %v1801 = vpack.c.b16 %v1789, %v1788
    %v1802 = vpack.c.b16 %v1791, %v1790
    %v1803 = vpack.c.b16 %v1793, %v1792
    %v1804 = vpack.c.b16 %v1795, %v1794
    %v1805 = vpack.c.b16 %v1797, %v1796
    %1814 = vmatpush.bf16.msra.mxu0 %v1805
    %1815 = vmatpush.bf16.msra.mxu0 %v1804
    %1816 = vmatpush.bf16.msra.mxu0 %v1803
    %1817 = vmatpush.bf16.msra.mxu0 %v1802
    %1818 = vmatpush.bf16.msra.mxu0 %v1801
    %1819 = vmatpush.bf16.msra.mxu0 %v1800
    %1820 = vmatpush.bf16.msra.mxu0 %v1799
    %1821 = vmatpush.bf16.msra.mxu0 %v1798
    %1822 = vmatmul.bf16.gmra.mxu0 %v1702
    %v1823 = vpop.f32.mrf.mxu0
    %v1824 = vadd.f32 %v1572, %v1823
    %v1825 = vpop.f32.mrf.mxu0
    %v1826 = vadd.f32 %v1572, %v1825
    %1827 = vmatmul.bf16.gmra.mxu0 %v1703
    %v1828 = vpop.f32.mrf.mxu0
    %v1829 = vadd.f32 %v1572, %v1828
    %v1830 = vpop.f32.mrf.mxu0
    %v1831 = vadd.f32 %v1572, %v1830
    %1832 = vmatmul.bf16.gmra.mxu0 %v1704
    %v1833 = vpop.f32.mrf.mxu0
    %v1834 = vadd.f32 %v1572, %v1833
    %v1835 = vpop.f32.mrf.mxu0
    %v1836 = vadd.f32 %v1572, %v1835
    %1837 = vmatmul.bf16.gmra.mxu0 %v1705
    %v1838 = vpop.f32.mrf.mxu0
    %v1839 = vadd.f32 %v1572, %v1838
    %v1840 = vpop.f32.mrf.mxu0
    %v1841 = vadd.f32 %v1572, %v1840
    %1842 = vmatmul.bf16.gmra.mxu0 %v1706
    %v1843 = vpop.f32.mrf.mxu0
    %v1844 = vadd.f32 %v1572, %v1843
    %v1845 = vpop.f32.mrf.mxu0
    %v1846 = vadd.f32 %v1572, %v1845
    %1847 = vmatmul.bf16.gmra.mxu0 %v1707
    %v1848 = vpop.f32.mrf.mxu0
    %v1849 = vadd.f32 %v1572, %v1848
    %v1850 = vpop.f32.mrf.mxu0
    %v1851 = vadd.f32 %v1572, %v1850
    %1852 = vmatmul.bf16.gmra.mxu0 %v1708
    %v1853 = vpop.f32.mrf.mxu0
    %v1854 = vadd.f32 %v1572, %v1853
    %v1855 = vpop.f32.mrf.mxu0
    %v1856 = vadd.f32 %v1572, %v1855
    %1857 = vmatmul.bf16.gmra.mxu0 %v1709
    %v1858 = vpop.f32.mrf.mxu0
    %v1859 = vadd.f32 %v1572, %v1858
    %v1860 = vpop.f32.mrf.mxu0
    %v1861 = vadd.f32 %v1572, %v1860
    %1862 = vmatmul.bf16.gmra.mxu0 %v1710
    %v1863 = vpop.f32.mrf.mxu0
    %v1864 = vadd.f32 %v1572, %v1863
    %v1865 = vpop.f32.mrf.mxu0
    %v1866 = vadd.f32 %v1572, %v1865
    %1867 = vmatmul.bf16.gmra.mxu0 %v1711
    %v1868 = vpop.f32.mrf.mxu0
    %v1869 = vadd.f32 %v1572, %v1868
    %v1870 = vpop.f32.mrf.mxu0
    %v1871 = vadd.f32 %v1572, %v1870
    %1872 = vmatmul.bf16.gmra.mxu0 %v1712
    %v1873 = vpop.f32.mrf.mxu0
    %v1874 = vadd.f32 %v1572, %v1873
    %v1875 = vpop.f32.mrf.mxu0
    %v1876 = vadd.f32 %v1572, %v1875
    %1877 = vmatmul.bf16.gmra.mxu0 %v1713
    %v1878 = vpop.f32.mrf.mxu0
    %v1879 = vadd.f32 %v1572, %v1878
    %v1880 = vpop.f32.mrf.mxu0
    %v1881 = vadd.f32 %v1572, %v1880
    %1882 = vmatmul.bf16.gmra.mxu0 %v1714
    %v1883 = vpop.f32.mrf.mxu0
    %v1884 = vadd.f32 %v1572, %v1883
    %v1885 = vpop.f32.mrf.mxu0
    %v1886 = vadd.f32 %v1572, %v1885
    %1887 = vmatmul.bf16.gmra.mxu0 %v1715
    %v1888 = vpop.f32.mrf.mxu0
    %v1889 = vadd.f32 %v1572, %v1888
    %v1890 = vpop.f32.mrf.mxu0
    %v1891 = vadd.f32 %v1572, %v1890
    %1892 = vmatmul.bf16.gmra.mxu0 %v1716
    %v1893 = vpop.f32.mrf.mxu0
    %v1894 = vadd.f32 %v1572, %v1893
    %v1895 = vpop.f32.mrf.mxu0
    %v1896 = vadd.f32 %v1572, %v1895
    %1897 = vmatmul.bf16.gmra.mxu0 %v1717
    %v1898 = vpop.f32.mrf.mxu0
    %v1899 = vadd.f32 %v1572, %v1898
    %v1900 = vpop.f32.mrf.mxu0
    %v1901 = vadd.f32 %v1572, %v1900
    %1902 = vmatmul.bf16.gmra.mxu0 %v1718
    %v1903 = vpop.f32.mrf.mxu0
    %v1904 = vadd.f32 %v1572, %v1903
    %v1905 = vpop.f32.mrf.mxu0
    %v1906 = vadd.f32 %v1572, %v1905
    %1907 = vmatmul.bf16.gmra.mxu0 %v1719
    %v1908 = vpop.f32.mrf.mxu0
    %v1909 = vadd.f32 %v1572, %v1908
    %v1910 = vpop.f32.mrf.mxu0
    %v1911 = vadd.f32 %v1572, %v1910
    %1912 = vmatmul.bf16.gmra.mxu0 %v1720
    %v1913 = vpop.f32.mrf.mxu0
    %v1914 = vadd.f32 %v1572, %v1913
    %v1915 = vpop.f32.mrf.mxu0
    %v1916 = vadd.f32 %v1572, %v1915
    %1917 = vmatmul.bf16.gmra.mxu0 %v1721
    %v1918 = vpop.f32.mrf.mxu0
    %v1919 = vadd.f32 %v1572, %v1918
    %v1920 = vpop.f32.mrf.mxu0
    %v1921 = vadd.f32 %v1572, %v1920
    %1922 = vmatmul.bf16.gmra.mxu0 %v1722
    %v1923 = vpop.f32.mrf.mxu0
    %v1924 = vadd.f32 %v1572, %v1923
    %v1925 = vpop.f32.mrf.mxu0
    %v1926 = vadd.f32 %v1572, %v1925
    %1927 = vmatmul.bf16.gmra.mxu0 %v1723
    %v1928 = vpop.f32.mrf.mxu0
    %v1929 = vadd.f32 %v1572, %v1928
    %v1930 = vpop.f32.mrf.mxu0
    %v1931 = vadd.f32 %v1572, %v1930
    %1932 = vmatmul.bf16.gmra.mxu0 %v1724
    %v1933 = vpop.f32.mrf.mxu0
    %v1934 = vadd.f32 %v1572, %v1933
    %v1935 = vpop.f32.mrf.mxu0
    %v1936 = vadd.f32 %v1572, %v1935
    %1937 = vmatmul.bf16.gmra.mxu0 %v1725
    %v1938 = vpop.f32.mrf.mxu0
    %v1939 = vadd.f32 %v1572, %v1938
    %v1940 = vpop.f32.mrf.mxu0
    %v1941 = vadd.f32 %v1572, %v1940
    %1942 = vmatmul.bf16.gmra.mxu0 %v1726
    %v1943 = vpop.f32.mrf.mxu0
    %v1944 = vadd.f32 %v1572, %v1943
    %v1945 = vpop.f32.mrf.mxu0
    %v1946 = vadd.f32 %v1572, %v1945
    %1947 = vmatmul.bf16.gmra.mxu0 %v1727
    %v1948 = vpop.f32.mrf.mxu0
    %v1949 = vadd.f32 %v1572, %v1948
    %v1950 = vpop.f32.mrf.mxu0
    %v1951 = vadd.f32 %v1572, %v1950
    %1952 = vmatmul.bf16.gmra.mxu0 %v1728
    %v1953 = vpop.f32.mrf.mxu0
    %v1954 = vadd.f32 %v1572, %v1953
    %v1955 = vpop.f32.mrf.mxu0
    %v1956 = vadd.f32 %v1572, %v1955
    %1957 = vmatmul.bf16.gmra.mxu0 %v1729
    %v1958 = vpop.f32.mrf.mxu0
    %v1959 = vadd.f32 %v1572, %v1958
    %v1960 = vpop.f32.mrf.mxu0
    %v1961 = vadd.f32 %v1572, %v1960
    %1962 = vmatmul.bf16.gmra.mxu0 %v1730
    %v1963 = vpop.f32.mrf.mxu0
    %v1964 = vadd.f32 %v1572, %v1963
    %v1965 = vpop.f32.mrf.mxu0
    %v1966 = vadd.f32 %v1572, %v1965
    %1967 = vmatmul.bf16.gmra.mxu0 %v1731
    %v1968 = vpop.f32.mrf.mxu0
    %v1969 = vadd.f32 %v1572, %v1968
    %v1970 = vpop.f32.mrf.mxu0
    %v1971 = vadd.f32 %v1572, %v1970
    %1972 = vmatmul.bf16.gmra.mxu0 %v1732
    %v1973 = vpop.f32.mrf.mxu0
    %v1974 = vadd.f32 %v1572, %v1973
    %v1975 = vpop.f32.mrf.mxu0
    %v1976 = vadd.f32 %v1572, %v1975
    %1977 = vmatmul.bf16.gmra.mxu0 %v1733
    %v1978 = vpop.f32.mrf.mxu0
    %v1979 = vadd.f32 %v1572, %v1978
    %v1980 = vpop.f32.mrf.mxu0
    %v1981 = vadd.f32 %v1572, %v1980
    %1982 = vdwg.mxu0
    %vm1983 = vcmp.ge.f32.partialorder %v1824, 0.0
    %vm1984 = vcmp.ge.f32.partialorder %v1826, 0.0
    %vm1985 = vcmp.ge.f32.partialorder %v1829, 0.0
    %vm1986 = vcmp.ge.f32.partialorder %v1831, 0.0
    %vm1987 = vcmp.ge.f32.partialorder %v1834, 0.0
    %vm1988 = vcmp.ge.f32.partialorder %v1836, 0.0
    %vm1989 = vcmp.ge.f32.partialorder %v1839, 0.0
    %vm1990 = vcmp.ge.f32.partialorder %v1841, 0.0
    %vm1991 = vcmp.ge.f32.partialorder %v1844, 0.0
    %vm1992 = vcmp.ge.f32.partialorder %v1846, 0.0
    %vm1993 = vcmp.ge.f32.partialorder %v1849, 0.0
    %vm1994 = vcmp.ge.f32.partialorder %v1851, 0.0
    %vm1995 = vcmp.ge.f32.partialorder %v1854, 0.0
    %vm1996 = vcmp.ge.f32.partialorder %v1856, 0.0
    %vm1997 = vcmp.ge.f32.partialorder %v1859, 0.0
    %vm1998 = vcmp.ge.f32.partialorder %v1861, 0.0
    %vm1999 = vcmp.ge.f32.partialorder %v1864, 0.0
    %vm2000 = vcmp.ge.f32.partialorder %v1866, 0.0
    %vm2001 = vcmp.ge.f32.partialorder %v1869, 0.0
    %vm2002 = vcmp.ge.f32.partialorder %v1871, 0.0
    %vm2003 = vcmp.ge.f32.partialorder %v1874, 0.0
    %vm2004 = vcmp.ge.f32.partialorder %v1876, 0.0
    %vm2005 = vcmp.ge.f32.partialorder %v1879, 0.0
    %vm2006 = vcmp.ge.f32.partialorder %v1881, 0.0
    %vm2007 = vcmp.ge.f32.partialorder %v1884, 0.0
    %vm2008 = vcmp.ge.f32.partialorder %v1886, 0.0
    %vm2009 = vcmp.ge.f32.partialorder %v1889, 0.0
    %vm2010 = vcmp.ge.f32.partialorder %v1891, 0.0
    %vm2011 = vcmp.ge.f32.partialorder %v1894, 0.0
    %vm2012 = vcmp.ge.f32.partialorder %v1896, 0.0
    %vm2013 = vcmp.ge.f32.partialorder %v1899, 0.0
    %vm2014 = vcmp.ge.f32.partialorder %v1901, 0.0
    %vm2015 = vcmp.ge.f32.partialorder %v1904, 0.0
    %vm2016 = vcmp.ge.f32.partialorder %v1906, 0.0
    %vm2017 = vcmp.ge.f32.partialorder %v1909, 0.0
    %vm2018 = vcmp.ge.f32.partialorder %v1911, 0.0
    %vm2019 = vcmp.ge.f32.partialorder %v1914, 0.0
    %vm2020 = vcmp.ge.f32.partialorder %v1916, 0.0
    %vm2021 = vcmp.ge.f32.partialorder %v1919, 0.0
    %vm2022 = vcmp.ge.f32.partialorder %v1921, 0.0
    %vm2023 = vcmp.ge.f32.partialorder %v1924, 0.0
    %vm2024 = vcmp.ge.f32.partialorder %v1926, 0.0
    %vm2025 = vcmp.ge.f32.partialorder %v1929, 0.0
    %vm2026 = vcmp.ge.f32.partialorder %v1931, 0.0
    %vm2027 = vcmp.ge.f32.partialorder %v1934, 0.0
    %vm2028 = vcmp.ge.f32.partialorder %v1936, 0.0
    %vm2029 = vcmp.ge.f32.partialorder %v1939, 0.0
    %vm2030 = vcmp.ge.f32.partialorder %v1941, 0.0
    %vm2031 = vcmp.ge.f32.partialorder %v1944, 0.0
    %vm2032 = vcmp.ge.f32.partialorder %v1946, 0.0
    %vm2033 = vcmp.ge.f32.partialorder %v1949, 0.0
    %vm2034 = vcmp.ge.f32.partialorder %v1951, 0.0
    %vm2035 = vcmp.ge.f32.partialorder %v1954, 0.0
    %vm2036 = vcmp.ge.f32.partialorder %v1956, 0.0
    %vm2037 = vcmp.ge.f32.partialorder %v1959, 0.0
    %vm2038 = vcmp.ge.f32.partialorder %v1961, 0.0
    %vm2039 = vcmp.ge.f32.partialorder %v1964, 0.0
    %vm2040 = vcmp.ge.f32.partialorder %v1966, 0.0
    %vm2041 = vcmp.ge.f32.partialorder %v1969, 0.0
    %vm2042 = vcmp.ge.f32.partialorder %v1971, 0.0
    %vm2043 = vcmp.ge.f32.partialorder %v1974, 0.0
    %vm2044 = vcmp.ge.f32.partialorder %v1976, 0.0
    %vm2045 = vcmp.ge.f32.partialorder %v1979, 0.0
    %vm2046 = vcmp.ge.f32.partialorder %v1981, 0.0
    %v2047 = vmul.f32 %v1824, 0.2
    %v2048 = vmul.f32 %v1826, 0.2
    %v2049 = vmul.f32 %v1829, 0.2
    %v2050 = vmul.f32 %v1831, 0.2
    %v2051 = vmul.f32 %v1834, 0.2
    %v2052 = vmul.f32 %v1836, 0.2
    %v2053 = vmul.f32 %v1839, 0.2
    %v2054 = vmul.f32 %v1841, 0.2
    %v2055 = vmul.f32 %v1844, 0.2
    %v2056 = vmul.f32 %v1846, 0.2
    %v2057 = vmul.f32 %v1849, 0.2
    %v2058 = vmul.f32 %v1851, 0.2
    %v2059 = vmul.f32 %v1854, 0.2
    %v2060 = vmul.f32 %v1856, 0.2
    %v2061 = vmul.f32 %v1859, 0.2
    %v2062 = vmul.f32 %v1861, 0.2
    %v2063 = vmul.f32 %v1864, 0.2
    %v2064 = vmul.f32 %v1866, 0.2
    %v2065 = vmul.f32 %v1869, 0.2
    %v2066 = vmul.f32 %v1871, 0.2
    %v2067 = vmul.f32 %v1874, 0.2
    %v2068 = vmul.f32 %v1876, 0.2
    %v2069 = vmul.f32 %v1879, 0.2
    %v2070 = vmul.f32 %v1881, 0.2
    %v2071 = vmul.f32 %v1884, 0.2
    %v2072 = vmul.f32 %v1886, 0.2
    %v2073 = vmul.f32 %v1889, 0.2
    %v2074 = vmul.f32 %v1891, 0.2
    %v2075 = vmul.f32 %v1894, 0.2
    %v2076 = vmul.f32 %v1896, 0.2
    %v2077 = vmul.f32 %v1899, 0.2
    %v2078 = vmul.f32 %v1901, 0.2
    %v2079 = vmul.f32 %v1904, 0.2
    %v2080 = vmul.f32 %v1906, 0.2
    %v2081 = vmul.f32 %v1909, 0.2
    %v2082 = vmul.f32 %v1911, 0.2
    %v2083 = vmul.f32 %v1914, 0.2
    %v2084 = vmul.f32 %v1916, 0.2
    %v2085 = vmul.f32 %v1919, 0.2
    %v2086 = vmul.f32 %v1921, 0.2
    %v2087 = vmul.f32 %v1924, 0.2
    %v2088 = vmul.f32 %v1926, 0.2
    %v2089 = vmul.f32 %v1929, 0.2
    %v2090 = vmul.f32 %v1931, 0.2
    %v2091 = vmul.f32 %v1934, 0.2
    %v2092 = vmul.f32 %v1936, 0.2
    %v2093 = vmul.f32 %v1939, 0.2
    %v2094 = vmul.f32 %v1941, 0.2
    %v2095 = vmul.f32 %v1944, 0.2
    %v2096 = vmul.f32 %v1946, 0.2
    %v2097 = vmul.f32 %v1949, 0.2
    %v2098 = vmul.f32 %v1951, 0.2
    %v2099 = vmul.f32 %v1954, 0.2
    %v2100 = vmul.f32 %v1956, 0.2
    %v2101 = vmul.f32 %v1959, 0.2
    %v2102 = vmul.f32 %v1961, 0.2
    %v2103 = vmul.f32 %v1964, 0.2
    %v2104 = vmul.f32 %v1966, 0.2
    %v2105 = vmul.f32 %v1969, 0.2
    %v2106 = vmul.f32 %v1971, 0.2
    %v2107 = vmul.f32 %v1974, 0.2
    %v2108 = vmul.f32 %v1976, 0.2
    %v2109 = vmul.f32 %v1979, 0.2
    %v2110 = vmul.f32 %v1981, 0.2
    %v2111 = vsel %vm1983, %v1824, %v2047
    %v2112 = vsel %vm1984, %v1826, %v2048
    %v2113 = vsel %vm1985, %v1829, %v2049
    %v2114 = vsel %vm1986, %v1831, %v2050
    %v2115 = vsel %vm1987, %v1834, %v2051
    %v2116 = vsel %vm1988, %v1836, %v2052
    %v2117 = vsel %vm1989, %v1839, %v2053
    %v2118 = vsel %vm1990, %v1841, %v2054
    %v2119 = vsel %vm1991, %v1844, %v2055
    %v2120 = vsel %vm1992, %v1846, %v2056
    %v2121 = vsel %vm1993, %v1849, %v2057
    %v2122 = vsel %vm1994, %v1851, %v2058
    %v2123 = vsel %vm1995, %v1854, %v2059
    %v2124 = vsel %vm1996, %v1856, %v2060
    %v2125 = vsel %vm1997, %v1859, %v2061
    %v2126 = vsel %vm1998, %v1861, %v2062
    %v2127 = vsel %vm1999, %v1864, %v2063
    %v2128 = vsel %vm2000, %v1866, %v2064
    %v2129 = vsel %vm2001, %v1869, %v2065
    %v2130 = vsel %vm2002, %v1871, %v2066
    %v2131 = vsel %vm2003, %v1874, %v2067
    %v2132 = vsel %vm2004, %v1876, %v2068
    %v2133 = vsel %vm2005, %v1879, %v2069
    %v2134 = vsel %vm2006, %v1881, %v2070
    %v2135 = vsel %vm2007, %v1884, %v2071
    %v2136 = vsel %vm2008, %v1886, %v2072
    %v2137 = vsel %vm2009, %v1889, %v2073
    %v2138 = vsel %vm2010, %v1891, %v2074
    %v2139 = vsel %vm2011, %v1894, %v2075
    %v2140 = vsel %vm2012, %v1896, %v2076
    %v2141 = vsel %vm2013, %v1899, %v2077
    %v2142 = vsel %vm2014, %v1901, %v2078
    %v2143 = vsel %vm2015, %v1904, %v2079
    %v2144 = vsel %vm2016, %v1906, %v2080
    %v2145 = vsel %vm2017, %v1909, %v2081
    %v2146 = vsel %vm2018, %v1911, %v2082
    %v2147 = vsel %vm2019, %v1914, %v2083
    %v2148 = vsel %vm2020, %v1916, %v2084
    %v2149 = vsel %vm2021, %v1919, %v2085
    %v2150 = vsel %vm2022, %v1921, %v2086
    %v2151 = vsel %vm2023, %v1924, %v2087
    %v2152 = vsel %vm2024, %v1926, %v2088
    %v2153 = vsel %vm2025, %v1929, %v2089
    %v2154 = vsel %vm2026, %v1931, %v2090
    %v2155 = vsel %vm2027, %v1934, %v2091
    %v2156 = vsel %vm2028, %v1936, %v2092
    %v2157 = vsel %vm2029, %v1939, %v2093
    %v2158 = vsel %vm2030, %v1941, %v2094
    %v2159 = vsel %vm2031, %v1944, %v2095
    %v2160 = vsel %vm2032, %v1946, %v2096
    %v2161 = vsel %vm2033, %v1949, %v2097
    %v2162 = vsel %vm2034, %v1951, %v2098
    %v2163 = vsel %vm2035, %v1954, %v2099
    %v2164 = vsel %vm2036, %v1956, %v2100
    %v2165 = vsel %vm2037, %v1959, %v2101
    %v2166 = vsel %vm2038, %v1961, %v2102
    %v2167 = vsel %vm2039, %v1964, %v2103
    %v2168 = vsel %vm2040, %v1966, %v2104
    %v2169 = vsel %vm2041, %v1969, %v2105
    %v2170 = vsel %vm2042, %v1971, %v2106
    %v2171 = vsel %vm2043, %v1974, %v2107
    %v2172 = vsel %vm2044, %v1976, %v2108
    %v2173 = vsel %vm2045, %v1979, %v2109
    %v2174 = vsel %vm2046, %v1981, %v2110
    %v2175 = vpack.c.bf16 %v2111, %v2111
    %v2176 = vpack.c.bf16 %v2112, %v2112
    %v2177 = vpack.c.bf16 %v2113, %v2113
    %v2178 = vpack.c.bf16 %v2114, %v2114
    %v2179 = vpack.c.bf16 %v2115, %v2115
    %v2180 = vpack.c.bf16 %v2116, %v2116
    %v2181 = vpack.c.bf16 %v2117, %v2117
    %v2182 = vpack.c.bf16 %v2118, %v2118
    %v2183 = vpack.c.bf16 %v2119, %v2119
    %v2184 = vpack.c.bf16 %v2120, %v2120
    %v2185 = vpack.c.bf16 %v2121, %v2121
    %v2186 = vpack.c.bf16 %v2122, %v2122
    %v2187 = vpack.c.bf16 %v2123, %v2123
    %v2188 = vpack.c.bf16 %v2124, %v2124
    %v2189 = vpack.c.bf16 %v2125, %v2125
    %v2190 = vpack.c.bf16 %v2126, %v2126
    %v2191 = vpack.c.bf16 %v2127, %v2127
    %v2192 = vpack.c.bf16 %v2128, %v2128
    %v2193 = vpack.c.bf16 %v2129, %v2129
    %v2194 = vpack.c.bf16 %v2130, %v2130
    %v2195 = vpack.c.bf16 %v2131, %v2131
    %v2196 = vpack.c.bf16 %v2132, %v2132
    %v2197 = vpack.c.bf16 %v2133, %v2133
    %v2198 = vpack.c.bf16 %v2134, %v2134
    %v2199 = vpack.c.bf16 %v2135, %v2135
    %v2200 = vpack.c.bf16 %v2136, %v2136
    %v2201 = vpack.c.bf16 %v2137, %v2137
    %v2202 = vpack.c.bf16 %v2138, %v2138
    %v2203 = vpack.c.bf16 %v2139, %v2139
    %v2204 = vpack.c.bf16 %v2140, %v2140
    %v2205 = vpack.c.bf16 %v2141, %v2141
    %v2206 = vpack.c.bf16 %v2142, %v2142
    %v2207 = vpack.c.bf16 %v2143, %v2143
    %v2208 = vpack.c.bf16 %v2144, %v2144
    %v2209 = vpack.c.bf16 %v2145, %v2145
    %v2210 = vpack.c.bf16 %v2146, %v2146
    %v2211 = vpack.c.bf16 %v2147, %v2147
    %v2212 = vpack.c.bf16 %v2148, %v2148
    %v2213 = vpack.c.bf16 %v2149, %v2149
    %v2214 = vpack.c.bf16 %v2150, %v2150
    %v2215 = vpack.c.bf16 %v2151, %v2151
    %v2216 = vpack.c.bf16 %v2152, %v2152
    %v2217 = vpack.c.bf16 %v2153, %v2153
    %v2218 = vpack.c.bf16 %v2154, %v2154
    %v2219 = vpack.c.bf16 %v2155, %v2155
    %v2220 = vpack.c.bf16 %v2156, %v2156
    %v2221 = vpack.c.bf16 %v2157, %v2157
    %v2222 = vpack.c.bf16 %v2158, %v2158
    %v2223 = vpack.c.bf16 %v2159, %v2159
    %v2224 = vpack.c.bf16 %v2160, %v2160
    %v2225 = vpack.c.bf16 %v2161, %v2161
    %v2226 = vpack.c.bf16 %v2162, %v2162
    %v2227 = vpack.c.bf16 %v2163, %v2163
    %v2228 = vpack.c.bf16 %v2164, %v2164
    %v2229 = vpack.c.bf16 %v2165, %v2165
    %v2230 = vpack.c.bf16 %v2166, %v2166
    %v2231 = vpack.c.bf16 %v2167, %v2167
    %v2232 = vpack.c.bf16 %v2168, %v2168
    %v2233 = vpack.c.bf16 %v2169, %v2169
    %v2234 = vpack.c.bf16 %v2170, %v2170
    %v2235 = vpack.c.bf16 %v2171, %v2171
    %v2236 = vpack.c.bf16 %v2172, %v2172
    %v2237 = vpack.c.bf16 %v2173, %v2173
    %v2238 = vpack.c.bf16 %v2174, %v2174
    %2239 = vst [vmem:[%s4] sm:$0xf] %v2175
    %2240 = vst [vmem:[%s4 + $0x4] sm:$0xf] %v2176
    %2241 = vst [vmem:[%s4 + $0x8] sm:$0xf] %v2177
    %2242 = vst [vmem:[%s4 + $0xc] sm:$0xf] %v2178
    %2243 = vst [vmem:[%s4 + $0x10] sm:$0xf] %v2179
    %2244 = vst [vmem:[%s4 + $0x14] sm:$0xf] %v2180
    %2245 = vst [vmem:[%s4 + $0x18] sm:$0xf] %v2181
    %2246 = vst [vmem:[%s4 + $0x1c] sm:$0xf] %v2182
    %2247 = vst [vmem:[%s4 + $0x20] sm:$0xf] %v2183
    %2248 = vst [vmem:[%s4 + $0x24] sm:$0xf] %v2184
    %2249 = vst [vmem:[%s4 + $0x28] sm:$0xf] %v2185
    %2250 = vst [vmem:[%s4 + $0x2c] sm:$0xf] %v2186
    %2251 = vst [vmem:[%s4 + $0x30] sm:$0xf] %v2187
    %2252 = vst [vmem:[%s4 + $0x34] sm:$0xf] %v2188
    %2253 = vst [vmem:[%s4 + $0x38] sm:$0xf] %v2189
    %2254 = vst [vmem:[%s4 + $0x3c] sm:$0xf] %v2190
    %2255 = vst [vmem:[%s4 + $0x40] sm:$0xf] %v2191
    %2256 = vst [vmem:[%s4 + $0x44] sm:$0xf] %v2192
    %2257 = vst [vmem:[%s4 + $0x48] sm:$0xf] %v2193
    %2258 = vst [vmem:[%s4 + $0x4c] sm:$0xf] %v2194
    %2259 = vst [vmem:[%s4 + $0x50] sm:$0xf] %v2195
    %2260 = vst [vmem:[%s4 + $0x54] sm:$0xf] %v2196
    %2261 = vst [vmem:[%s4 + $0x58] sm:$0xf] %v2197
    %2262 = vst [vmem:[%s4 + $0x5c] sm:$0xf] %v2198
    %2263 = vst [vmem:[%s4 + $0x60] sm:$0xf] %v2199
    %2264 = vst [vmem:[%s4 + $0x64] sm:$0xf] %v2200
    %2265 = vst [vmem:[%s4 + $0x68] sm:$0xf] %v2201
    %2266 = vst [vmem:[%s4 + $0x6c] sm:$0xf] %v2202
    %2267 = vst [vmem:[%s4 + $0x70] sm:$0xf] %v2203
    %2268 = vst [vmem:[%s4 + $0x74] sm:$0xf] %v2204
    %2269 = vst [vmem:[%s4 + $0x78] sm:$0xf] %v2205
    %2270 = vst [vmem:[%s4 + $0x7c] sm:$0xf] %v2206
    %2271 = vst [vmem:[%s4 + $0x80] sm:$0xf] %v2207
    %2272 = vst [vmem:[%s4 + $0x84] sm:$0xf] %v2208
    %2273 = vst [vmem:[%s4 + $0x88] sm:$0xf] %v2209
    %2274 = vst [vmem:[%s4 + $0x8c] sm:$0xf] %v2210
    %2275 = vst [vmem:[%s4 + $0x90] sm:$0xf] %v2211
    %2276 = vst [vmem:[%s4 + $0x94] sm:$0xf] %v2212
    %2277 = vst [vmem:[%s4 + $0x98] sm:$0xf] %v2213
    %2278 = vst [vmem:[%s4 + $0x9c] sm:$0xf] %v2214
    %2279 = vst [vmem:[%s4 + $0xa0] sm:$0xf] %v2215
    %2280 = vst [vmem:[%s4 + $0xa4] sm:$0xf] %v2216
    %2281 = vst [vmem:[%s4 + $0xa8] sm:$0xf] %v2217
    %2282 = vst [vmem:[%s4 + $0xac] sm:$0xf] %v2218
    %2283 = vst [vmem:[%s4 + $0xb0] sm:$0xf] %v2219
    %2284 = vst [vmem:[%s4 + $0xb4] sm:$0xf] %v2220
    %2285 = vst [vmem:[%s4 + $0xb8] sm:$0xf] %v2221
    %2286 = vst [vmem:[%s4 + $0xbc] sm:$0xf] %v2222
    %2287 = vst [vmem:[%s4 + $0xc0] sm:$0xf] %v2223
    %2288 = vst [vmem:[%s4 + $0xc4] sm:$0xf] %v2224
    %2289 = vst [vmem:[%s4 + $0xc8] sm:$0xf] %v2225
    %2290 = vst [vmem:[%s4 + $0xcc] sm:$0xf] %v2226
    %2291 = vst [vmem:[%s4 + $0xd0] sm:$0xf] %v2227
    %2292 = vst [vmem:[%s4 + $0xd4] sm:$0xf] %v2228
    %2293 = vst [vmem:[%s4 + $0xd8] sm:$0xf] %v2229
    %2294 = vst [vmem:[%s4 + $0xdc] sm:$0xf] %v2230
    %2295 = vst [vmem:[%s4 + $0xe0] sm:$0xf] %v2231
    %2296 = vst [vmem:[%s4 + $0xe4] sm:$0xf] %v2232
    %2297 = vst [vmem:[%s4 + $0xe8] sm:$0xf] %v2233
    %2298 = vst [vmem:[%s4 + $0xec] sm:$0xf] %v2234
    %2299 = vst [vmem:[%s4 + $0xf0] sm:$0xf] %v2235
    %2300 = vst [vmem:[%s4 + $0xf4] sm:$0xf] %v2236
    %2301 = vst [vmem:[%s4 + $0xf8] sm:$0xf] %v2237
    %2302 = vst [vmem:[%s4 + $0xfc] sm:$0xf] %v2238
    // Predicated region
    $region14: #{_lambda_.14} parent=1 // pred_check
      _
    $region15: #{_lambda_.14} parent=1 // pred_check_branch
      %2304 = sbr.rel (0) target = $region17
    $region16: #{_lambda_.14} parent=1 // pred_region
      _
    $region17: #{_lambda_.14} parent=1 // pred_fallthru
      _
    // Predicated region
    $region18: #{_lambda_.14} parent=1 // pred_check
      _
    $region19: #{_lambda_.14} parent=1 // pred_check_branch
      %2306 = sbr.rel (0) target = $region21
    $region20: #{_lambda_.14} parent=1 // pred_region
      _
    $region21: #{_lambda_.14} parent=1 // pred_fallthru
      _

// kernel: _lambda_.10
$region0: #{_lambda_.10}
  #allocation0 [shape = 'u32[]', space=smem, size = 0x4, offset = 0x4, fixed_abs, tag = 'smem constant byte address 0x4 - core index']
  #allocation1 [shape = 'u32[72,128]{1,0:T(1,128)}', space=vmem, size = 0x9000, scoped, tag = 'internal scratch']
  %s0 = inlined_call_operand.vmem [shape: bf16[128,128], index: 0, kind: input, shape index: {}]
  %s1 = inlined_call_operand.vmem [shape: bf16[128,128], index: 1, kind: input, shape index: {}]
  %s2 = inlined_call_operand.vmem [shape: f32[1,128], index: 2, kind: input, shape index: {}]
  %s3 = inlined_call_operand.vmem [shape: bf16[128,128], index: 3, kind: output, shape index: {}]
  %s4 = sld [smem:[#allocation0]]
  $region22: #{_lambda_.10} parent=0
    _
  %s6 = ssub.s32 1, %s4
  %s7 = scalar_select 0, %s6, %s4
  // Predicated region
  $region2: #{_lambda_.10} parent=0 // pred_check
    _
  $region3: #{_lambda_.10} parent=0 // pred_check_branch
    %9 = sbr.rel (0) target = $region5
  $region4: #{_lambda_.10} parent=0 // pred_region
    _
  $region5: #{_lambda_.10} parent=0 // pred_fallthru
    _
  // Predicated region
  $region6: #{_lambda_.10} parent=0 // pred_check
    _
  $region7: #{_lambda_.10} parent=0 // pred_check_branch
    %11 = sbr.rel (0) target = $region9
  $region8: #{_lambda_.10} parent=0 // pred_region
    _
  $region9: #{_lambda_.10} parent=0 // pred_fallthru
    _
  // Predicated region
  $region10: #{_lambda_.10} parent=0 // pred_check
    _
  $region11: #{_lambda_.10} parent=0 // pred_check_branch
    %13 = sbr.rel (0) target = $region13
  $region12: #{_lambda_.10} parent=0 // pred_region
    _
  $region13: #{_lambda_.10} parent=0 // pred_fallthru
    _
  %v14 = vld [vmem:[%s0] sm:$0xf]
  %v15 = vld [vmem:[%s0 + $0x4] sm:$0xf]
  %v16 = vld [vmem:[%s0 + $0x8] sm:$0xf]
  %v17 = vld [vmem:[%s0 + $0xc] sm:$0xf]
  %v18 = vld [vmem:[%s0 + $0x10] sm:$0xf]
  %v19 = vld [vmem:[%s0 + $0x14] sm:$0xf]
  %v20 = vld [vmem:[%s0 + $0x18] sm:$0xf]
  %v21 = vld [vmem:[%s0 + $0x1c] sm:$0xf]
  %v22 = vld [vmem:[%s0 + $0x20] sm:$0xf]
  %v23 = vld [vmem:[%s0 + $0x24] sm:$0xf]
  %v24 = vld [vmem:[%s0 + $0x28] sm:$0xf]
  %v25 = vld [vmem:[%s0 + $0x2c] sm:$0xf]
  %v26 = vld [vmem:[%s0 + $0x30] sm:$0xf]
  %v27 = vld [vmem:[%s0 + $0x34] sm:$0xf]
  %v28 = vld [vmem:[%s0 + $0x38] sm:$0xf]
  %v29 = vld [vmem:[%s0 + $0x3c] sm:$0xf]
  %v30 = vld [vmem:[%s1] sm:$0xf]
  %v31 = vld [vmem:[%s1 + $0x4] sm:$0xf]
  %v32 = vld [vmem:[%s1 + $0x8] sm:$0xf]
  %v33 = vld [vmem:[%s1 + $0xc] sm:$0xf]
  %v34 = vld [vmem:[%s1 + $0x10] sm:$0xf]
  %v35 = vld [vmem:[%s1 + $0x14] sm:$0xf]
  %v36 = vld [vmem:[%s1 + $0x18] sm:$0xf]
  %v37 = vld [vmem:[%s1 + $0x1c] sm:$0xf]
  %v38 = vld [vmem:[%s1 + $0x20] sm:$0xf]
  %v39 = vld [vmem:[%s1 + $0x24] sm:$0xf]
  %v40 = vld [vmem:[%s1 + $0x28] sm:$0xf]
  %v41 = vld [vmem:[%s1 + $0x2c] sm:$0xf]
  %v42 = vld [vmem:[%s1 + $0x30] sm:$0xf]
  %v43 = vld [vmem:[%s1 + $0x34] sm:$0xf]
  %v44 = vld [vmem:[%s1 + $0x38] sm:$0xf]
  %v45 = vld [vmem:[%s1 + $0x3c] sm:$0xf]
  %v46 = vld [vmem:[%s2] sm:$0x1]
  %v48 = vperm.slane %v46, 0
  %v66 = vunpack.c.l.b16 %v14
  %v67 = vunpack.c.l.b16 %v15
  %v68 = vunpack.c.l.b16 %v16
  %v69 = vunpack.c.l.b16 %v17
  %v70 = vunpack.c.l.b16 %v18
  %v71 = vunpack.c.l.b16 %v19
  %v72 = vunpack.c.l.b16 %v20
  %v73 = vunpack.c.l.b16 %v21
  %v74 = vunpack.c.l.b16 %v22
  %v75 = vunpack.c.l.b16 %v23
  %v76 = vunpack.c.l.b16 %v24
  %v77 = vunpack.c.l.b16 %v25
  %v78 = vunpack.c.l.b16 %v26
  %v79 = vunpack.c.l.b16 %v27
  %v80 = vunpack.c.l.b16 %v28
  %v81 = vunpack.c.l.b16 %v29
  %v82 = vpack.c.b16 %v67, %v66
  %v83 = vpack.c.b16 %v69, %v68
  %v84 = vpack.c.b16 %v71, %v70
  %v85 = vpack.c.b16 %v73, %v72
  %v86 = vpack.c.b16 %v75, %v74
  %v87 = vpack.c.b16 %v77, %v76
  %v88 = vpack.c.b16 %v79, %v78
  %v89 = vpack.c.b16 %v81, %v80
  %v114 = vunpack.c.l.b16 %v30
  %v115 = vunpack.c.l.b16 %v31
  %v116 = vunpack.c.l.b16 %v32
  %v117 = vunpack.c.l.b16 %v33
  %v118 = vunpack.c.l.b16 %v34
  %v119 = vunpack.c.l.b16 %v35
  %v120 = vunpack.c.l.b16 %v36
  %v121 = vunpack.c.l.b16 %v37
  %v122 = vunpack.c.l.b16 %v38
  %v123 = vunpack.c.l.b16 %v39
  %v124 = vunpack.c.l.b16 %v40
  %v125 = vunpack.c.l.b16 %v41
  %v126 = vunpack.c.l.b16 %v42
  %v127 = vunpack.c.l.b16 %v43
  %v128 = vunpack.c.l.b16 %v44
  %v129 = vunpack.c.l.b16 %v45
  %v130 = vpack.c.b16 %v115, %v114
  %v131 = vpack.c.b16 %v117, %v116
  %v132 = vpack.c.b16 %v119, %v118
  %v133 = vpack.c.b16 %v121, %v120
  %v134 = vpack.c.b16 %v123, %v122
  %v135 = vpack.c.b16 %v125, %v124
  %v136 = vpack.c.b16 %v127, %v126
  %v137 = vpack.c.b16 %v129, %v128
  %146 = vmatpush.bf16.msra.mxu0 %v137
  %147 = vmatpush.bf16.msra.mxu0 %v136
  %148 = vmatpush.bf16.msra.mxu0 %v135
  %149 = vmatpush.bf16.msra.mxu0 %v134
  %150 = vmatpush.bf16.msra.mxu0 %v133
  %151 = vmatpush.bf16.msra.mxu0 %v132
  %152 = vmatpush.bf16.msra.mxu0 %v131
  %153 = vmatpush.bf16.msra.mxu0 %v130
  %154 = vmatmul.bf16.gmra.mxu0 %v82
  %v155 = vpop.f32.mrf.mxu0
  %v156 = vadd.f32 %v48, %v155
  %v157 = vpop.f32.mrf.mxu0
  %v158 = vadd.f32 %v48, %v157
  %159 = vmatmul.bf16.gmra.mxu0 %v83
  %v160 = vpop.f32.mrf.mxu0
  %v161 = vadd.f32 %v48, %v160
  %v162 = vpop.f32.mrf.mxu0
  %v163 = vadd.f32 %v48, %v162
  %164 = vmatmul.bf16.gmra.mxu0 %v84
  %v165 = vpop.f32.mrf.mxu0
  %v166 = vadd.f32 %v48, %v165
  %v167 = vpop.f32.mrf.mxu0
  %v168 = vadd.f32 %v48, %v167
  %169 = vmatmul.bf16.gmra.mxu0 %v85
  %v170 = vpop.f32.mrf.mxu0
  %v171 = vadd.f32 %v48, %v170
  %v172 = vpop.f32.mrf.mxu0
  %v173 = vadd.f32 %v48, %v172
  %174 = vmatmul.bf16.gmra.mxu0 %v86
  %v175 = vpop.f32.mrf.mxu0
  %v176 = vadd.f32 %v48, %v175
  %v177 = vpop.f32.mrf.mxu0
  %v178 = vadd.f32 %v48, %v177
  %179 = vmatmul.bf16.gmra.mxu0 %v87
  %v180 = vpop.f32.mrf.mxu0
  %v181 = vadd.f32 %v48, %v180
  %v182 = vpop.f32.mrf.mxu0
  %v183 = vadd.f32 %v48, %v182
  %184 = vmatmul.bf16.gmra.mxu0 %v88
  %v185 = vpop.f32.mrf.mxu0
  %v186 = vadd.f32 %v48, %v185
  %v187 = vpop.f32.mrf.mxu0
  %v188 = vadd.f32 %v48, %v187
  %189 = vmatmul.bf16.gmra.mxu0 %v89
  %v190 = vpop.f32.mrf.mxu0
  %v191 = vadd.f32 %v48, %v190
  %v192 = vpop.f32.mrf.mxu0
  %v193 = vadd.f32 %v48, %v192
  %194 = vdwg.mxu0
  %vm195 = vcmp.ge.f32.partialorder %v156, 0.0
  %vm196 = vcmp.ge.f32.partialorder %v158, 0.0
  %vm197 = vcmp.ge.f32.partialorder %v161, 0.0
  %vm198 = vcmp.ge.f32.partialorder %v163, 0.0
  %vm199 = vcmp.ge.f32.partialorder %v166, 0.0
  %vm200 = vcmp.ge.f32.partialorder %v168, 0.0
  %vm201 = vcmp.ge.f32.partialorder %v171, 0.0
  %vm202 = vcmp.ge.f32.partialorder %v173, 0.0
  %vm203 = vcmp.ge.f32.partialorder %v176, 0.0
  %vm204 = vcmp.ge.f32.partialorder %v178, 0.0
  %vm205 = vcmp.ge.f32.partialorder %v181, 0.0
  %vm206 = vcmp.ge.f32.partialorder %v183, 0.0
  %vm207 = vcmp.ge.f32.partialorder %v186, 0.0
  %vm208 = vcmp.ge.f32.partialorder %v188, 0.0
  %vm209 = vcmp.ge.f32.partialorder %v191, 0.0
  %vm210 = vcmp.ge.f32.partialorder %v193, 0.0
  %v211 = vmul.f32 %v156, 0.2
  %v212 = vmul.f32 %v158, 0.2
  %v213 = vmul.f32 %v161, 0.2
  %v214 = vmul.f32 %v163, 0.2
  %v215 = vmul.f32 %v166, 0.2
  %v216 = vmul.f32 %v168, 0.2
  %v217 = vmul.f32 %v171, 0.2
  %v218 = vmul.f32 %v173, 0.2
  %v219 = vmul.f32 %v176, 0.2
  %v220 = vmul.f32 %v178, 0.2
  %v221 = vmul.f32 %v181, 0.2
  %v222 = vmul.f32 %v183, 0.2
  %v223 = vmul.f32 %v186, 0.2
  %v224 = vmul.f32 %v188, 0.2
  %v225 = vmul.f32 %v191, 0.2
  %v226 = vmul.f32 %v193, 0.2
  %v227 = vsel %vm195, %v156, %v211
  %v228 = vsel %vm196, %v158, %v212
  %v229 = vsel %vm197, %v161, %v213
  %v230 = vsel %vm198, %v163, %v214
  %v231 = vsel %vm199, %v166, %v215
  %v232 = vsel %vm200, %v168, %v216
  %v233 = vsel %vm201, %v171, %v217
  %v234 = vsel %vm202, %v173, %v218
  %v235 = vsel %vm203, %v176, %v219
  %v236 = vsel %vm204, %v178, %v220
  %v237 = vsel %vm205, %v181, %v221
  %v238 = vsel %vm206, %v183, %v222
  %v239 = vsel %vm207, %v186, %v223
  %v240 = vsel %vm208, %v188, %v224
  %v241 = vsel %vm209, %v191, %v225
  %v242 = vsel %vm210, %v193, %v226
  %v243 = vpack.c.bf16 %v227, %v227
  %v244 = vpack.c.bf16 %v228, %v228
  %v245 = vpack.c.bf16 %v229, %v229
  %v246 = vpack.c.bf16 %v230, %v230
  %v247 = vpack.c.bf16 %v231, %v231
  %v248 = vpack.c.bf16 %v232, %v232
  %v249 = vpack.c.bf16 %v233, %v233
  %v250 = vpack.c.bf16 %v234, %v234
  %v251 = vpack.c.bf16 %v235, %v235
  %v252 = vpack.c.bf16 %v236, %v236
  %v253 = vpack.c.bf16 %v237, %v237
  %v254 = vpack.c.bf16 %v238, %v238
  %v255 = vpack.c.bf16 %v239, %v239
  %v256 = vpack.c.bf16 %v240, %v240
  %v257 = vpack.c.bf16 %v241, %v241
  %v258 = vpack.c.bf16 %v242, %v242
  %259 = vst [vmem:[%s3] sm:$0xf] %v243
  %260 = vst [vmem:[%s3 + $0x4] sm:$0xf] %v244
  %261 = vst [vmem:[%s3 + $0x8] sm:$0xf] %v245
  %262 = vst [vmem:[%s3 + $0xc] sm:$0xf] %v246
  %263 = vst [vmem:[%s3 + $0x10] sm:$0xf] %v247
  %264 = vst [vmem:[%s3 + $0x14] sm:$0xf] %v248
  %265 = vst [vmem:[%s3 + $0x18] sm:$0xf] %v249
  %266 = vst [vmem:[%s3 + $0x1c] sm:$0xf] %v250
  %267 = vst [vmem:[%s3 + $0x20] sm:$0xf] %v251
  %268 = vst [vmem:[%s3 + $0x24] sm:$0xf] %v252
  %269 = vst [vmem:[%s3 + $0x28] sm:$0xf] %v253
  %270 = vst [vmem:[%s3 + $0x2c] sm:$0xf] %v254
  %271 = vst [vmem:[%s3 + $0x30] sm:$0xf] %v255
  %272 = vst [vmem:[%s3 + $0x34] sm:$0xf] %v256
  %273 = vst [vmem:[%s3 + $0x38] sm:$0xf] %v257
  %274 = vst [vmem:[%s3 + $0x3c] sm:$0xf] %v258
  // Predicated region
  $region14: #{_lambda_.10} parent=0 // pred_check
    _
  $region15: #{_lambda_.10} parent=0 // pred_check_branch
    %276 = sbr.rel (0) target = $region17
  $region16: #{_lambda_.10} parent=0 // pred_region
    _
  $region17: #{_lambda_.10} parent=0 // pred_fallthru
    _
  // Predicated region
  $region18: #{_lambda_.10} parent=0 // pred_check
    _
  $region19: #{_lambda_.10} parent=0 // pred_check_branch
    %278 = sbr.rel (0) target = $region21
  $region20: #{_lambda_.10} parent=0 // pred_region
    _
  $region21: #{_lambda_.10} parent=0 // pred_fallthru
    _

// kernel: _lambda_.15
$region0: #{_lambda_.15}
  #allocation0 [shape = 'u32[]', space=smem, size = 0x4, offset = 0x4, fixed_abs, tag = 'smem constant byte address 0x4 - core index']
  #allocation1 [shape = 'u32[72,128]{1,0:T(1,128)}', space=vmem, size = 0x9000, scoped, tag = 'internal scratch']
  #allocation2 [shape = 'u32[2048]{0}', space=vmem, size = 0x2000, scoped, tag = 'scoped memory for _lambda_.15']
  #allocation3 [shape = 'u32[2048]{0}', space=vmem, size = 0x2000, scoped, tag = 'scoped memory for _lambda_.15']
  #allocation4 [shape = 'u32[2048]{0}', space=vmem, size = 0x2000, scoped, tag = 'scoped memory for _lambda_.15']
  #allocation5 [shape = 'u32[2048]{0}', space=vmem, size = 0x2000, scoped, tag = 'scoped memory for _lambda_.15']
  #allocation6 [shape = 'u32[2048]{0}', space=vmem, size = 0x2000, scoped, tag = 'scoped memory for _lambda_.15']
  %s0 = inlined_call_operand.vmem [shape: bf16[128,128], index: 0, kind: input, shape index: {}]
  %s1 = inlined_call_operand.vmem [shape: f32[1,128], index: 1, kind: input, shape index: {}]
  %s2 = inlined_call_operand.vmem [shape: bf16[128,72], index: 2, kind: input, shape index: {}]
  %s3 = inlined_call_operand.<no memory space> [shape: bf16[], index: 3, kind: input, shape index: {}]
  %s4 = inlined_call_operand.vmem [shape: bf16[128,128], index: 4, kind: output, shape index: {}]
  %s5 = sld [smem:[#allocation0]]
  $region22: #{_lambda_.15} parent=0
    _
  %s7 = ssub.s32 1, %s5
  %s8 = scalar_select 0, %s7, %s5
  %v9 = vstv %s3
  %v10 = vunpack.i.l.bf16 %v9
  %v12 = vunpack.i.h.bf16 %v9
  $region1: #{_lambda_.15} parent=0
    #allocation7 [shape = 'u8[32768]{0}', space=vmem, size = 0x8000, dematerialized = true, scoped, tag = 'FusionAdapter Buffer %fusion.11 = bf16[128,128]{1,0:T(8,128)(2,1)} fusion(%param_2.185, %param_3.77), kind=kLoop, calls=%fused_computation.110.clone, metadata={op_name="jit(<lambda>)/jit(_pad)/pad" stack_frame_id=21}']
    // Predicated region
    $region2: #{_lambda_.15} parent=1 // pred_check
      _
    $region3: #{_lambda_.15} parent=1 // pred_check_branch
      %15 = sbr.rel (0) target = $region5
    $region4: #{_lambda_.15} parent=1 // pred_region
      _
    $region5: #{_lambda_.15} parent=1 // pred_fallthru
      _
    // Predicated region
    $region6: #{_lambda_.15} parent=1 // pred_check
      _
    $region7: #{_lambda_.15} parent=1 // pred_check_branch
      %17 = sbr.rel (0) target = $region9
    $region8: #{_lambda_.15} parent=1 // pred_region
      _
    $region9: #{_lambda_.15} parent=1 // pred_fallthru
      _
    // Predicated region
    $region10: #{_lambda_.15} parent=1 // pred_check
      _
    $region11: #{_lambda_.15} parent=1 // pred_check_branch
      %19 = sbr.rel (0) target = $region13
    $region12: #{_lambda_.15} parent=1 // pred_region
      _
    $region13: #{_lambda_.15} parent=1 // pred_fallthru
      _
    %s21 = sor.u32 255, 127
    %s22 = sand.u32 %s21, 85
    %s23 = sshrl.u32 %s22, 1
    %s24 = sor.u32 %s22, %s23
    %s25 = sand.u32 51, %s24
    %s26 = sshrl.u32 %s25, 2
    %s27 = sor.u32 %s25, %s26
    %s28 = sand.u32 15, %s27
    %v29 = vld [vmem:[%s2] sm:%s28]
    %v30 = vunpack.c.l.bf16 %v29
    %v31 = vunpack.c.h.bf16 %v29
    %v32 = vlaneseq
    %v33 = vand.u32 %v32, 127
    %vm35 = vcmp.lt.s32.totalorder %v33, 72
    %v36 = vsel %vm35, %v30, %v10
    %v37 = vpack.c.bf16 0.0, %v36
    %s39 = ssub.s32 16, 1
    %40 = vst [vmem:[#allocation7] sm:%s39] %v37
    %s41 = scalar_lea.vmem %s2, 4
    %s43 = sor.u32 255, 127
    %s44 = sand.u32 %s43, 85
    %s45 = sshrl.u32 %s44, 1
    %s46 = sor.u32 %s44, %s45
    %s47 = sand.u32 51, %s46
    %s48 = sshrl.u32 %s47, 2
    %s49 = sor.u32 %s47, %s48
    %s50 = sand.u32 15, %s49
    %v51 = vld [vmem:[%s41] sm:%s50]
    %v52 = vunpack.c.l.bf16 %v51
    %v53 = vunpack.c.h.bf16 %v51
    %v54 = vlaneseq
    %v55 = vand.u32 %v54, 127
    %vm57 = vcmp.lt.s32.totalorder %v55, 72
    %v58 = vsel %vm57, %v52, %v10
    %s59 = scalar_lea.vmem [#allocation7], 4
    %v60 = vpack.c.bf16 0.0, %v58
    %s62 = ssub.s32 16, 1
    %63 = vst [vmem:[%s59] sm:%s62] %v60
    %s64 = scalar_lea.vmem %s2, 8
    %s66 = sor.u32 255, 127
    %s67 = sand.u32 %s66, 85
    %s68 = sshrl.u32 %s67, 1
    %s69 = sor.u32 %s67, %s68
    %s70 = sand.u32 51, %s69
    %s71 = sshrl.u32 %s70, 2
    %s72 = sor.u32 %s70, %s71
    %s73 = sand.u32 15, %s72
    %v74 = vld [vmem:[%s64] sm:%s73]
    %v75 = vunpack.c.l.bf16 %v74
    %v76 = vunpack.c.h.bf16 %v74
    %v77 = vlaneseq
    %v78 = vand.u32 %v77, 127
    %vm80 = vcmp.lt.s32.totalorder %v78, 72
    %v81 = vsel %vm80, %v75, %v10
    %s82 = scalar_lea.vmem [#allocation7], 8
    %v83 = vpack.c.bf16 0.0, %v81
    %s85 = ssub.s32 16, 1
    %86 = vst [vmem:[%s82] sm:%s85] %v83
    %s87 = scalar_lea.vmem %s2, 12
    %s89 = sor.u32 255, 127
    %s90 = sand.u32 %s89, 85
    %s91 = sshrl.u32 %s90, 1
    %s92 = sor.u32 %s90, %s91
    %s93 = sand.u32 51, %s92
    %s94 = sshrl.u32 %s93, 2
    %s95 = sor.u32 %s93, %s94
    %s96 = sand.u32 15, %s95
    %v97 = vld [vmem:[%s87] sm:%s96]
    %v98 = vunpack.c.l.bf16 %v97
    %v99 = vunpack.c.h.bf16 %v97
    %v100 = vlaneseq
    %v101 = vand.u32 %v100, 127
    %vm103 = vcmp.lt.s32.totalorder %v101, 72
    %v104 = vsel %vm103, %v98, %v10
    %s105 = scalar_lea.vmem [#allocation7], 12
    %v106 = vpack.c.bf16 0.0, %v104
    %s108 = ssub.s32 16, 1
    %109 = vst [vmem:[%s105] sm:%s108] %v106
    %s110 = scalar_lea.vmem %s2, 16
    %s112 = sor.u32 255, 127
    %s113 = sand.u32 %s112, 85
    %s114 = sshrl.u32 %s113, 1
    %s115 = sor.u32 %s113, %s114
    %s116 = sand.u32 51, %s115
    %s117 = sshrl.u32 %s116, 2
    %s118 = sor.u32 %s116, %s117
    %s119 = sand.u32 15, %s118
    %v120 = vld [vmem:[%s110] sm:%s119]
    %v121 = vunpack.c.l.bf16 %v120
    %v122 = vunpack.c.h.bf16 %v120
    %v123 = vlaneseq
    %v124 = vand.u32 %v123, 127
    %vm126 = vcmp.lt.s32.totalorder %v124, 72
    %v127 = vsel %vm126, %v121, %v10
    %s128 = scalar_lea.vmem [#allocation7], 16
    %v129 = vpack.c.bf16 0.0, %v127
    %s131 = ssub.s32 16, 1
    %132 = vst [vmem:[%s128] sm:%s131] %v129
    %s133 = scalar_lea.vmem %s2, 20
    %s135 = sor.u32 255, 127
    %s136 = sand.u32 %s135, 85
    %s137 = sshrl.u32 %s136, 1
    %s138 = sor.u32 %s136, %s137
    %s139 = sand.u32 51, %s138
    %s140 = sshrl.u32 %s139, 2
    %s141 = sor.u32 %s139, %s140
    %s142 = sand.u32 15, %s141
    %v143 = vld [vmem:[%s133] sm:%s142]
    %v144 = vunpack.c.l.bf16 %v143
    %v145 = vunpack.c.h.bf16 %v143
    %v146 = vlaneseq
    %v147 = vand.u32 %v146, 127
    %vm149 = vcmp.lt.s32.totalorder %v147, 72
    %v150 = vsel %vm149, %v144, %v10
    %s151 = scalar_lea.vmem [#allocation7], 20
    %v152 = vpack.c.bf16 0.0, %v150
    %s154 = ssub.s32 16, 1
    %155 = vst [vmem:[%s151] sm:%s154] %v152
    %s156 = scalar_lea.vmem %s2, 24
    %s158 = sor.u32 255, 127
    %s159 = sand.u32 %s158, 85
    %s160 = sshrl.u32 %s159, 1
    %s161 = sor.u32 %s159, %s160
    %s162 = sand.u32 51, %s161
    %s163 = sshrl.u32 %s162, 2
    %s164 = sor.u32 %s162, %s163
    %s165 = sand.u32 15, %s164
    %v166 = vld [vmem:[%s156] sm:%s165]
    %v167 = vunpack.c.l.bf16 %v166
    %v168 = vunpack.c.h.bf16 %v166
    %v169 = vlaneseq
    %v170 = vand.u32 %v169, 127
    %vm172 = vcmp.lt.s32.totalorder %v170, 72
    %v173 = vsel %vm172, %v167, %v10
    %s174 = scalar_lea.vmem [#allocation7], 24
    %v175 = vpack.c.bf16 0.0, %v173
    %s177 = ssub.s32 16, 1
    %178 = vst [vmem:[%s174] sm:%s177] %v175
    %s179 = scalar_lea.vmem %s2, 28
    %s181 = sor.u32 255, 127
    %s182 = sand.u32 %s181, 85
    %s183 = sshrl.u32 %s182, 1
    %s184 = sor.u32 %s182, %s183
    %s185 = sand.u32 51, %s184
    %s186 = sshrl.u32 %s185, 2
    %s187 = sor.u32 %s185, %s186
    %s188 = sand.u32 15, %s187
    %v189 = vld [vmem:[%s179] sm:%s188]
    %v190 = vunpack.c.l.bf16 %v189
    %v191 = vunpack.c.h.bf16 %v189
    %v192 = vlaneseq
    %v193 = vand.u32 %v192, 127
    %vm195 = vcmp.lt.s32.totalorder %v193, 72
    %v196 = vsel %vm195, %v190, %v10
    %s197 = scalar_lea.vmem [#allocation7], 28
    %v198 = vpack.c.bf16 0.0, %v196
    %s200 = ssub.s32 16, 1
    %201 = vst [vmem:[%s197] sm:%s200] %v198
    %s202 = scalar_lea.vmem %s2, 32
    %s204 = sor.u32 255, 127
    %s205 = sand.u32 %s204, 85
    %s206 = sshrl.u32 %s205, 1
    %s207 = sor.u32 %s205, %s206
    %s208 = sand.u32 51, %s207
    %s209 = sshrl.u32 %s208, 2
    %s210 = sor.u32 %s208, %s209
    %s211 = sand.u32 15, %s210
    %v212 = vld [vmem:[%s202] sm:%s211]
    %v213 = vunpack.c.l.bf16 %v212
    %v214 = vunpack.c.h.bf16 %v212
    %v215 = vlaneseq
    %v216 = vand.u32 %v215, 127
    %vm218 = vcmp.lt.s32.totalorder %v216, 72
    %v219 = vsel %vm218, %v213, %v10
    %s220 = scalar_lea.vmem [#allocation7], 32
    %v221 = vpack.c.bf16 0.0, %v219
    %s223 = ssub.s32 16, 1
    %224 = vst [vmem:[%s220] sm:%s223] %v221
    %s225 = scalar_lea.vmem %s2, 36
    %s227 = sor.u32 255, 127
    %s228 = sand.u32 %s227, 85
    %s229 = sshrl.u32 %s228, 1
    %s230 = sor.u32 %s228, %s229
    %s231 = sand.u32 51, %s230
    %s232 = sshrl.u32 %s231, 2
    %s233 = sor.u32 %s231, %s232
    %s234 = sand.u32 15, %s233
    %v235 = vld [vmem:[%s225] sm:%s234]
    %v236 = vunpack.c.l.bf16 %v235
    %v237 = vunpack.c.h.bf16 %v235
    %v238 = vlaneseq
    %v239 = vand.u32 %v238, 127
    %vm241 = vcmp.lt.s32.totalorder %v239, 72
    %v242 = vsel %vm241, %v236, %v10
    %s243 = scalar_lea.vmem [#allocation7], 36
    %v244 = vpack.c.bf16 0.0, %v242
    %s246 = ssub.s32 16, 1
    %247 = vst [vmem:[%s243] sm:%s246] %v244
    %s248 = scalar_lea.vmem %s2, 40
    %s250 = sor.u32 255, 127
    %s251 = sand.u32 %s250, 85
    %s252 = sshrl.u32 %s251, 1
    %s253 = sor.u32 %s251, %s252
    %s254 = sand.u32 51, %s253
    %s255 = sshrl.u32 %s254, 2
    %s256 = sor.u32 %s254, %s255
    %s257 = sand.u32 15, %s256
    %v258 = vld [vmem:[%s248] sm:%s257]
    %v259 = vunpack.c.l.bf16 %v258
    %v260 = vunpack.c.h.bf16 %v258
    %v261 = vlaneseq
    %v262 = vand.u32 %v261, 127
    %vm264 = vcmp.lt.s32.totalorder %v262, 72
    %v265 = vsel %vm264, %v259, %v10
    %s266 = scalar_lea.vmem [#allocation7], 40
    %v267 = vpack.c.bf16 0.0, %v265
    %s269 = ssub.s32 16, 1
    %270 = vst [vmem:[%s266] sm:%s269] %v267
    %s271 = scalar_lea.vmem %s2, 44
    %s273 = sor.u32 255, 127
    %s274 = sand.u32 %s273, 85
    %s275 = sshrl.u32 %s274, 1
    %s276 = sor.u32 %s274, %s275
    %s277 = sand.u32 51, %s276
    %s278 = sshrl.u32 %s277, 2
    %s279 = sor.u32 %s277, %s278
    %s280 = sand.u32 15, %s279
    %v281 = vld [vmem:[%s271] sm:%s280]
    %v282 = vunpack.c.l.bf16 %v281
    %v283 = vunpack.c.h.bf16 %v281
    %v284 = vlaneseq
    %v285 = vand.u32 %v284, 127
    %vm287 = vcmp.lt.s32.totalorder %v285, 72
    %v288 = vsel %vm287, %v282, %v10
    %s289 = scalar_lea.vmem [#allocation7], 44
    %v290 = vpack.c.bf16 0.0, %v288
    %s292 = ssub.s32 16, 1
    %293 = vst [vmem:[%s289] sm:%s292] %v290
    %s294 = scalar_lea.vmem %s2, 48
    %s296 = sor.u32 255, 127
    %s297 = sand.u32 %s296, 85
    %s298 = sshrl.u32 %s297, 1
    %s299 = sor.u32 %s297, %s298
    %s300 = sand.u32 51, %s299
    %s301 = sshrl.u32 %s300, 2
    %s302 = sor.u32 %s300, %s301
    %s303 = sand.u32 15, %s302
    %v304 = vld [vmem:[%s294] sm:%s303]
    %v305 = vunpack.c.l.bf16 %v304
    %v306 = vunpack.c.h.bf16 %v304
    %v307 = vlaneseq
    %v308 = vand.u32 %v307, 127
    %vm310 = vcmp.lt.s32.totalorder %v308, 72
    %v311 = vsel %vm310, %v305, %v10
    %s312 = scalar_lea.vmem [#allocation7], 48
    %v313 = vpack.c.bf16 0.0, %v311
    %s315 = ssub.s32 16, 1
    %316 = vst [vmem:[%s312] sm:%s315] %v313
    %s317 = scalar_lea.vmem %s2, 52
    %s319 = sor.u32 255, 127
    %s320 = sand.u32 %s319, 85
    %s321 = sshrl.u32 %s320, 1
    %s322 = sor.u32 %s320, %s321
    %s323 = sand.u32 51, %s322
    %s324 = sshrl.u32 %s323, 2
    %s325 = sor.u32 %s323, %s324
    %s326 = sand.u32 15, %s325
    %v327 = vld [vmem:[%s317] sm:%s326]
    %v328 = vunpack.c.l.bf16 %v327
    %v329 = vunpack.c.h.bf16 %v327
    %v330 = vlaneseq
    %v331 = vand.u32 %v330, 127
    %vm333 = vcmp.lt.s32.totalorder %v331, 72
    %v334 = vsel %vm333, %v328, %v10
    %s335 = scalar_lea.vmem [#allocation7], 52
    %v336 = vpack.c.bf16 0.0, %v334
    %s338 = ssub.s32 16, 1
    %339 = vst [vmem:[%s335] sm:%s338] %v336
    %s340 = scalar_lea.vmem %s2, 56
    %s342 = sor.u32 255, 127
    %s343 = sand.u32 %s342, 85
    %s344 = sshrl.u32 %s343, 1
    %s345 = sor.u32 %s343, %s344
    %s346 = sand.u32 51, %s345
    %s347 = sshrl.u32 %s346, 2
    %s348 = sor.u32 %s346, %s347
    %s349 = sand.u32 15, %s348
    %v350 = vld [vmem:[%s340] sm:%s349]
    %v351 = vunpack.c.l.bf16 %v350
    %v352 = vunpack.c.h.bf16 %v350
    %v353 = vlaneseq
    %v354 = vand.u32 %v353, 127
    %vm356 = vcmp.lt.s32.totalorder %v354, 72
    %v357 = vsel %vm356, %v351, %v10
    %s358 = scalar_lea.vmem [#allocation7], 56
    %v359 = vpack.c.bf16 0.0, %v357
    %s361 = ssub.s32 16, 1
    %362 = vst [vmem:[%s358] sm:%s361] %v359
    %s363 = scalar_lea.vmem %s2, 60
    %s365 = sor.u32 255, 127
    %s366 = sand.u32 %s365, 85
    %s367 = sshrl.u32 %s366, 1
    %s368 = sor.u32 %s366, %s367
    %s369 = sand.u32 51, %s368
    %s370 = sshrl.u32 %s369, 2
    %s371 = sor.u32 %s369, %s370
    %s372 = sand.u32 15, %s371
    %v373 = vld [vmem:[%s363] sm:%s372]
    %v374 = vunpack.c.l.bf16 %v373
    %v375 = vunpack.c.h.bf16 %v373
    %v376 = vlaneseq
    %v377 = vand.u32 %v376, 127
    %vm379 = vcmp.lt.s32.totalorder %v377, 72
    %v380 = vsel %vm379, %v374, %v10
    %s381 = scalar_lea.vmem [#allocation7], 60
    %v382 = vpack.c.bf16 0.0, %v380
    %s384 = ssub.s32 16, 1
    %385 = vst [vmem:[%s381] sm:%s384] %v382
    %v386 = vld [vmem:[#allocation7] sm:$0xf]
    %v387 = vld [vmem:[#allocation7 + $0x4] sm:$0xf]
    %v388 = vld [vmem:[#allocation7 + $0x8] sm:$0xf]
    %v389 = vld [vmem:[#allocation7 + $0xc] sm:$0xf]
    %v390 = vld [vmem:[#allocation7 + $0x10] sm:$0xf]
    %v391 = vld [vmem:[#allocation7 + $0x14] sm:$0xf]
    %v392 = vld [vmem:[#allocation7 + $0x18] sm:$0xf]
    %v393 = vld [vmem:[#allocation7 + $0x1c] sm:$0xf]
    %v394 = vld [vmem:[#allocation7 + $0x20] sm:$0xf]
    %v395 = vld [vmem:[#allocation7 + $0x24] sm:$0xf]
    %v396 = vld [vmem:[#allocation7 + $0x28] sm:$0xf]
    %v397 = vld [vmem:[#allocation7 + $0x2c] sm:$0xf]
    %v398 = vld [vmem:[#allocation7 + $0x30] sm:$0xf]
    %v399 = vld [vmem:[#allocation7 + $0x34] sm:$0xf]
    %v400 = vld [vmem:[#allocation7 + $0x38] sm:$0xf]
    %v401 = vld [vmem:[#allocation7 + $0x3c] sm:$0xf]
    %v402 = vld [vmem:[%s0] sm:$0xf]
    %v403 = vld [vmem:[%s0 + $0x4] sm:$0xf]
    %v404 = vld [vmem:[%s0 + $0x8] sm:$0xf]
    %v405 = vld [vmem:[%s0 + $0xc] sm:$0xf]
    %v406 = vld [vmem:[%s0 + $0x10] sm:$0xf]
    %v407 = vld [vmem:[%s0 + $0x14] sm:$0xf]
    %v408 = vld [vmem:[%s0 + $0x18] sm:$0xf]
    %v409 = vld [vmem:[%s0 + $0x1c] sm:$0xf]
    %v410 = vld [vmem:[%s0 + $0x20] sm:$0xf]
    %v411 = vld [vmem:[%s0 + $0x24] sm:$0xf]
    %v412 = vld [vmem:[%s0 + $0x28] sm:$0xf]
    %v413 = vld [vmem:[%s0 + $0x2c] sm:$0xf]
    %v414 = vld [vmem:[%s0 + $0x30] sm:$0xf]
    %v415 = vld [vmem:[%s0 + $0x34] sm:$0xf]
    %v416 = vld [vmem:[%s0 + $0x38] sm:$0xf]
    %v417 = vld [vmem:[%s0 + $0x3c] sm:$0xf]
    %v418 = vld [vmem:[%s1] sm:$0x1]
    %v420 = vperm.slane %v418, 0
    %v438 = vunpack.c.l.b16 %v386
    %v439 = vunpack.c.l.b16 %v387
    %v440 = vunpack.c.l.b16 %v388
    %v441 = vunpack.c.l.b16 %v389
    %v442 = vunpack.c.l.b16 %v390
    %v443 = vunpack.c.l.b16 %v391
    %v444 = vunpack.c.l.b16 %v392
    %v445 = vunpack.c.l.b16 %v393
    %v446 = vunpack.c.l.b16 %v394
    %v447 = vunpack.c.l.b16 %v395
    %v448 = vunpack.c.l.b16 %v396
    %v449 = vunpack.c.l.b16 %v397
    %v450 = vunpack.c.l.b16 %v398
    %v451 = vunpack.c.l.b16 %v399
    %v452 = vunpack.c.l.b16 %v400
    %v453 = vunpack.c.l.b16 %v401
    %v454 = vpack.c.b16 %v439, %v438
    %v455 = vpack.c.b16 %v441, %v440
    %v456 = vpack.c.b16 %v443, %v442
    %v457 = vpack.c.b16 %v445, %v444
    %v458 = vpack.c.b16 %v447, %v446
    %v459 = vpack.c.b16 %v449, %v448
    %v460 = vpack.c.b16 %v451, %v450
    %v461 = vpack.c.b16 %v453, %v452
    %v486 = vunpack.c.l.b16 %v402
    %v487 = vunpack.c.l.b16 %v403
    %v488 = vunpack.c.l.b16 %v404
    %v489 = vunpack.c.l.b16 %v405
    %v490 = vunpack.c.l.b16 %v406
    %v491 = vunpack.c.l.b16 %v407
    %v492 = vunpack.c.l.b16 %v408
    %v493 = vunpack.c.l.b16 %v409
    %v494 = vunpack.c.l.b16 %v410
    %v495 = vunpack.c.l.b16 %v411
    %v496 = vunpack.c.l.b16 %v412
    %v497 = vunpack.c.l.b16 %v413
    %v498 = vunpack.c.l.b16 %v414
    %v499 = vunpack.c.l.b16 %v415
    %v500 = vunpack.c.l.b16 %v416
    %v501 = vunpack.c.l.b16 %v417
    %v502 = vpack.c.b16 %v487, %v486
    %v503 = vpack.c.b16 %v489, %v488
    %v504 = vpack.c.b16 %v491, %v490
    %v505 = vpack.c.b16 %v493, %v492
    %v506 = vpack.c.b16 %v495, %v494
    %v507 = vpack.c.b16 %v497, %v496
    %v508 = vpack.c.b16 %v499, %v498
    %v509 = vpack.c.b16 %v501, %v500
    %518 = vmatpush.bf16.msra.mxu0 %v509
    %519 = vmatpush.bf16.msra.mxu0 %v508
    %520 = vmatpush.bf16.msra.mxu0 %v507
    %521 = vmatpush.bf16.msra.mxu0 %v506
    %522 = vmatpush.bf16.msra.mxu0 %v505
    %523 = vmatpush.bf16.msra.mxu0 %v504
    %524 = vmatpush.bf16.msra.mxu0 %v503
    %525 = vmatpush.bf16.msra.mxu0 %v502
    %526 = vmatmul.bf16.gmra.mxu0 %v454
    %v527 = vpop.f32.mrf.mxu0
    %v528 = vadd.f32 %v420, %v527
    %v529 = vpop.f32.mrf.mxu0
    %v530 = vadd.f32 %v420, %v529
    %531 = vmatmul.bf16.gmra.mxu0 %v455
    %v532 = vpop.f32.mrf.mxu0
    %v533 = vadd.f32 %v420, %v532
    %v534 = vpop.f32.mrf.mxu0
    %v535 = vadd.f32 %v420, %v534
    %536 = vmatmul.bf16.gmra.mxu0 %v456
    %v537 = vpop.f32.mrf.mxu0
    %v538 = vadd.f32 %v420, %v537
    %v539 = vpop.f32.mrf.mxu0
    %v540 = vadd.f32 %v420, %v539
    %541 = vmatmul.bf16.gmra.mxu0 %v457
    %v542 = vpop.f32.mrf.mxu0
    %v543 = vadd.f32 %v420, %v542
    %v544 = vpop.f32.mrf.mxu0
    %v545 = vadd.f32 %v420, %v544
    %546 = vmatmul.bf16.gmra.mxu0 %v458
    %v547 = vpop.f32.mrf.mxu0
    %v548 = vadd.f32 %v420, %v547
    %v549 = vpop.f32.mrf.mxu0
    %v550 = vadd.f32 %v420, %v549
    %551 = vmatmul.bf16.gmra.mxu0 %v459
    %v552 = vpop.f32.mrf.mxu0
    %v553 = vadd.f32 %v420, %v552
    %v554 = vpop.f32.mrf.mxu0
    %v555 = vadd.f32 %v420, %v554
    %556 = vmatmul.bf16.gmra.mxu0 %v460
    %v557 = vpop.f32.mrf.mxu0
    %v558 = vadd.f32 %v420, %v557
    %v559 = vpop.f32.mrf.mxu0
    %v560 = vadd.f32 %v420, %v559
    %561 = vmatmul.bf16.gmra.mxu0 %v461
    %v562 = vpop.f32.mrf.mxu0
    %v563 = vadd.f32 %v420, %v562
    %v564 = vpop.f32.mrf.mxu0
    %v565 = vadd.f32 %v420, %v564
    %566 = vdwg.mxu0
    %vm567 = vcmp.ge.f32.partialorder %v528, 0.0
    %vm568 = vcmp.ge.f32.partialorder %v530, 0.0
    %vm569 = vcmp.ge.f32.partialorder %v533, 0.0
    %vm570 = vcmp.ge.f32.partialorder %v535, 0.0
    %vm571 = vcmp.ge.f32.partialorder %v538, 0.0
    %vm572 = vcmp.ge.f32.partialorder %v540, 0.0
    %vm573 = vcmp.ge.f32.partialorder %v543, 0.0
    %vm574 = vcmp.ge.f32.partialorder %v545, 0.0
    %vm575 = vcmp.ge.f32.partialorder %v548, 0.0
    %vm576 = vcmp.ge.f32.partialorder %v550, 0.0
    %vm577 = vcmp.ge.f32.partialorder %v553, 0.0
    %vm578 = vcmp.ge.f32.partialorder %v555, 0.0
    %vm579 = vcmp.ge.f32.partialorder %v558, 0.0
    %vm580 = vcmp.ge.f32.partialorder %v560, 0.0
    %vm581 = vcmp.ge.f32.partialorder %v563, 0.0
    %vm582 = vcmp.ge.f32.partialorder %v565, 0.0
    %v583 = vmul.f32 %v528, 0.2
    %v584 = vmul.f32 %v530, 0.2
    %v585 = vmul.f32 %v533, 0.2
    %v586 = vmul.f32 %v535, 0.2
    %v587 = vmul.f32 %v538, 0.2
    %v588 = vmul.f32 %v540, 0.2
    %v589 = vmul.f32 %v543, 0.2
    %v590 = vmul.f32 %v545, 0.2
    %v591 = vmul.f32 %v548, 0.2
    %v592 = vmul.f32 %v550, 0.2
    %v593 = vmul.f32 %v553, 0.2
    %v594 = vmul.f32 %v555, 0.2
    %v595 = vmul.f32 %v558, 0.2
    %v596 = vmul.f32 %v560, 0.2
    %v597 = vmul.f32 %v563, 0.2
    %v598 = vmul.f32 %v565, 0.2
    %v599 = vsel %vm567, %v528, %v583
    %v600 = vsel %vm568, %v530, %v584
    %v601 = vsel %vm569, %v533, %v585
    %v602 = vsel %vm570, %v535, %v586
    %v603 = vsel %vm571, %v538, %v587
    %v604 = vsel %vm572, %v540, %v588
    %v605 = vsel %vm573, %v543, %v589
    %v606 = vsel %vm574, %v545, %v590
    %v607 = vsel %vm575, %v548, %v591
    %v608 = vsel %vm576, %v550, %v592
    %v609 = vsel %vm577, %v553, %v593
    %v610 = vsel %vm578, %v555, %v594
    %v611 = vsel %vm579, %v558, %v595
    %v612 = vsel %vm580, %v560, %v596
    %v613 = vsel %vm581, %v563, %v597
    %v614 = vsel %vm582, %v565, %v598
    %v615 = vpack.c.bf16 %v599, %v599
    %v616 = vpack.c.bf16 %v600, %v600
    %v617 = vpack.c.bf16 %v601, %v601
    %v618 = vpack.c.bf16 %v602, %v602
    %v619 = vpack.c.bf16 %v603, %v603
    %v620 = vpack.c.bf16 %v604, %v604
    %v621 = vpack.c.bf16 %v605, %v605
    %v622 = vpack.c.bf16 %v606, %v606
    %v623 = vpack.c.bf16 %v607, %v607
    %v624 = vpack.c.bf16 %v608, %v608
    %v625 = vpack.c.bf16 %v609, %v609
    %v626 = vpack.c.bf16 %v610, %v610
    %v627 = vpack.c.bf16 %v611, %v611
    %v628 = vpack.c.bf16 %v612, %v612
    %v629 = vpack.c.bf16 %v613, %v613
    %v630 = vpack.c.bf16 %v614, %v614
    %631 = vst [vmem:[%s4] sm:$0xf] %v615
    %632 = vst [vmem:[%s4 + $0x4] sm:$0xf] %v616
    %633 = vst [vmem:[%s4 + $0x8] sm:$0xf] %v617
    %634 = vst [vmem:[%s4 + $0xc] sm:$0xf] %v618
    %635 = vst [vmem:[%s4 + $0x10] sm:$0xf] %v619
    %636 = vst [vmem:[%s4 + $0x14] sm:$0xf] %v620
    %637 = vst [vmem:[%s4 + $0x18] sm:$0xf] %v621
    %638 = vst [vmem:[%s4 + $0x1c] sm:$0xf] %v622
    %639 = vst [vmem:[%s4 + $0x20] sm:$0xf] %v623
    %640 = vst [vmem:[%s4 + $0x24] sm:$0xf] %v624
    %641 = vst [vmem:[%s4 + $0x28] sm:$0xf] %v625
    %642 = vst [vmem:[%s4 + $0x2c] sm:$0xf] %v626
    %643 = vst [vmem:[%s4 + $0x30] sm:$0xf] %v627
    %644 = vst [vmem:[%s4 + $0x34] sm:$0xf] %v628
    %645 = vst [vmem:[%s4 + $0x38] sm:$0xf] %v629
    %646 = vst [vmem:[%s4 + $0x3c] sm:$0xf] %v630
    // Predicated region
    $region14: #{_lambda_.15} parent=1 // pred_check
      _
    $region15: #{_lambda_.15} parent=1 // pred_check_branch
      %648 = sbr.rel (0) target = $region17
    $region16: #{_lambda_.15} parent=1 // pred_region
      _
    $region17: #{_lambda_.15} parent=1 // pred_fallthru
      _
    // Predicated region
    $region18: #{_lambda_.15} parent=1 // pred_check
      _
    $region19: #{_lambda_.15} parent=1 // pred_check_branch
      %650 = sbr.rel (0) target = $region21
    $region20: #{_lambda_.15} parent=1 // pred_region
      _
    $region21: #{_lambda_.15} parent=1 // pred_fallthru
      _

// kernel: _lambda_.11
$region0: #{_lambda_.11}
  #allocation0 [shape = 'u32[]', space=smem, size = 0x4, offset = 0x4, fixed_abs, tag = 'smem constant byte address 0x4 - core index']
  #allocation1 [shape = 'u32[72,128]{1,0:T(1,128)}', space=vmem, size = 0x9000, scoped, tag = 'internal scratch']
  %s0 = inlined_call_operand.vmem [shape: bf16[32,256], index: 0, kind: input, shape index: {}]
  %s1 = inlined_call_operand.vmem [shape: bf16[256,128], index: 1, kind: input, shape index: {}]
  %s2 = inlined_call_operand.vmem [shape: f32[1,128], index: 2, kind: input, shape index: {}]
  %s3 = inlined_call_operand.vmem [shape: bf16[32,128], index: 3, kind: output, shape index: {}]
  %s4 = sld [smem:[#allocation0]]
  $region22: #{_lambda_.11} parent=0
    _
  %s6 = ssub.s32 1, %s4
  %s7 = scalar_select 0, %s6, %s4
  // Predicated region
  $region2: #{_lambda_.11} parent=0 // pred_check
    _
  $region3: #{_lambda_.11} parent=0 // pred_check_branch
    %9 = sbr.rel (0) target = $region5
  $region4: #{_lambda_.11} parent=0 // pred_region
    _
  $region5: #{_lambda_.11} parent=0 // pred_fallthru
    _
  // Predicated region
  $region6: #{_lambda_.11} parent=0 // pred_check
    _
  $region7: #{_lambda_.11} parent=0 // pred_check_branch
    %11 = sbr.rel (0) target = $region9
  $region8: #{_lambda_.11} parent=0 // pred_region
    _
  $region9: #{_lambda_.11} parent=0 // pred_fallthru
    _
  // Predicated region
  $region10: #{_lambda_.11} parent=0 // pred_check
    _
  $region11: #{_lambda_.11} parent=0 // pred_check_branch
    %13 = sbr.rel (0) target = $region13
  $region12: #{_lambda_.11} parent=0 // pred_region
    _
  $region13: #{_lambda_.11} parent=0 // pred_fallthru
    _
  %v14 = vld [vmem:[%s0] sm:$0xff]
  %v15 = vld [vmem:[%s0 + $0x8] sm:$0xff]
  %v16 = vld [vmem:[%s0 + $0x10] sm:$0xff]
  %v17 = vld [vmem:[%s0 + $0x18] sm:$0xff]
  %v18 = vld [vmem:[%s1] sm:$0xf]
  %v19 = vld [vmem:[%s1 + $0x4] sm:$0xf]
  %v20 = vld [vmem:[%s1 + $0x8] sm:$0xf]
  %v21 = vld [vmem:[%s1 + $0xc] sm:$0xf]
  %v22 = vld [vmem:[%s1 + $0x10] sm:$0xf]
  %v23 = vld [vmem:[%s1 + $0x14] sm:$0xf]
  %v24 = vld [vmem:[%s1 + $0x18] sm:$0xf]
  %v25 = vld [vmem:[%s1 + $0x1c] sm:$0xf]
  %v26 = vld [vmem:[%s1 + $0x20] sm:$0xf]
  %v27 = vld [vmem:[%s1 + $0x24] sm:$0xf]
  %v28 = vld [vmem:[%s1 + $0x28] sm:$0xf]
  %v29 = vld [vmem:[%s1 + $0x2c] sm:$0xf]
  %v30 = vld [vmem:[%s1 + $0x30] sm:$0xf]
  %v31 = vld [vmem:[%s1 + $0x34] sm:$0xf]
  %v32 = vld [vmem:[%s1 + $0x38] sm:$0xf]
  %v33 = vld [vmem:[%s1 + $0x3c] sm:$0xf]
  %v34 = vld [vmem:[%s1 + $0x40] sm:$0xf]
  %v35 = vld [vmem:[%s1 + $0x44] sm:$0xf]
  %v36 = vld [vmem:[%s1 + $0x48] sm:$0xf]
  %v37 = vld [vmem:[%s1 + $0x4c] sm:$0xf]
  %v38 = vld [vmem:[%s1 + $0x50] sm:$0xf]
  %v39 = vld [vmem:[%s1 + $0x54] sm:$0xf]
  %v40 = vld [vmem:[%s1 + $0x58] sm:$0xf]
  %v41 = vld [vmem:[%s1 + $0x5c] sm:$0xf]
  %v42 = vld [vmem:[%s1 + $0x60] sm:$0xf]
  %v43 = vld [vmem:[%s1 + $0x64] sm:$0xf]
  %v44 = vld [vmem:[%s1 + $0x68] sm:$0xf]
  %v45 = vld [vmem:[%s1 + $0x6c] sm:$0xf]
  %v46 = vld [vmem:[%s1 + $0x70] sm:$0xf]
  %v47 = vld [vmem:[%s1 + $0x74] sm:$0xf]
  %v48 = vld [vmem:[%s1 + $0x78] sm:$0xf]
  %v49 = vld [vmem:[%s1 + $0x7c] sm:$0xf]
  %v50 = vld [vmem:[%s2] sm:$0x1]
  %v52 = vperm.slane %v50, 0
  %v58 = vunpack.c.l.b16 %v14
  %v59 = vunpack.c.h.b16 %v14
  %v60 = vunpack.c.l.b16 %v15
  %v61 = vunpack.c.h.b16 %v15
  %v62 = vunpack.c.l.b16 %v16
  %v63 = vunpack.c.h.b16 %v16
  %v64 = vunpack.c.l.b16 %v17
  %v65 = vunpack.c.h.b16 %v17
  %v66 = vpack.c.b16 %v60, %v58
  %v67 = vpack.c.b16 %v61, %v59
  %v68 = vpack.c.b16 %v64, %v62
  %v69 = vpack.c.b16 %v65, %v63
  %v106 = vunpack.c.l.b16 %v18
  %v107 = vunpack.c.l.b16 %v19
  %v108 = vunpack.c.l.b16 %v20
  %v109 = vunpack.c.l.b16 %v21
  %v110 = vunpack.c.l.b16 %v22
  %v111 = vunpack.c.l.b16 %v23
  %v112 = vunpack.c.l.b16 %v24
  %v113 = vunpack.c.l.b16 %v25
  %v114 = vunpack.c.l.b16 %v26
  %v115 = vunpack.c.l.b16 %v27
  %v116 = vunpack.c.l.b16 %v28
  %v117 = vunpack.c.l.b16 %v29
  %v118 = vunpack.c.l.b16 %v30
  %v119 = vunpack.c.l.b16 %v31
  %v120 = vunpack.c.l.b16 %v32
  %v121 = vunpack.c.l.b16 %v33
  %v122 = vunpack.c.l.b16 %v34
  %v123 = vunpack.c.l.b16 %v35
  %v124 = vunpack.c.l.b16 %v36
  %v125 = vunpack.c.l.b16 %v37
  %v126 = vunpack.c.l.b16 %v38
  %v127 = vunpack.c.l.b16 %v39
  %v128 = vunpack.c.l.b16 %v40
  %v129 = vunpack.c.l.b16 %v41
  %v130 = vunpack.c.l.b16 %v42
  %v131 = vunpack.c.l.b16 %v43
  %v132 = vunpack.c.l.b16 %v44
  %v133 = vunpack.c.l.b16 %v45
  %v134 = vunpack.c.l.b16 %v46
  %v135 = vunpack.c.l.b16 %v47
  %v136 = vunpack.c.l.b16 %v48
  %v137 = vunpack.c.l.b16 %v49
  %v138 = vpack.c.b16 %v107, %v106
  %v139 = vpack.c.b16 %v109, %v108
  %v140 = vpack.c.b16 %v111, %v110
  %v141 = vpack.c.b16 %v113, %v112
  %v142 = vpack.c.b16 %v115, %v114
  %v143 = vpack.c.b16 %v117, %v116
  %v144 = vpack.c.b16 %v119, %v118
  %v145 = vpack.c.b16 %v121, %v120
  %v146 = vpack.c.b16 %v123, %v122
  %v147 = vpack.c.b16 %v125, %v124
  %v148 = vpack.c.b16 %v127, %v126
  %v149 = vpack.c.b16 %v129, %v128
  %v150 = vpack.c.b16 %v131, %v130
  %v151 = vpack.c.b16 %v133, %v132
  %v152 = vpack.c.b16 %v135, %v134
  %v153 = vpack.c.b16 %v137, %v136
  %170 = vmatpush.bf16.msra.mxu0 %v145
  %171 = vmatpush.bf16.msra.mxu0 %v144
  %172 = vmatpush.bf16.msra.mxu0 %v143
  %173 = vmatpush.bf16.msra.mxu0 %v142
  %174 = vmatpush.bf16.msra.mxu0 %v141
  %175 = vmatpush.bf16.msra.mxu0 %v140
  %176 = vmatpush.bf16.msra.mxu0 %v139
  %177 = vmatpush.bf16.msra.mxu0 %v138
  %178 = vmatmul.bf16.gmra.mxu0 %v66
  %v179 = vpop.f32.mrf.mxu0
  %v180 = vadd.f32 %v52, %v179
  %v181 = vpop.f32.mrf.mxu0
  %v182 = vadd.f32 %v52, %v181
  %183 = vmatmul.bf16.gmra.mxu0 %v68
  %v184 = vpop.f32.mrf.mxu0
  %v185 = vadd.f32 %v52, %v184
  %v186 = vpop.f32.mrf.mxu0
  %v187 = vadd.f32 %v52, %v186
  %188 = vdwg.mxu0
  %189 = vmatpush.bf16.msra.mxu0 %v153
  %190 = vmatpush.bf16.msra.mxu0 %v152
  %191 = vmatpush.bf16.msra.mxu0 %v151
  %192 = vmatpush.bf16.msra.mxu0 %v150
  %193 = vmatpush.bf16.msra.mxu0 %v149
  %194 = vmatpush.bf16.msra.mxu0 %v148
  %195 = vmatpush.bf16.msra.mxu0 %v147
  %196 = vmatpush.bf16.msra.mxu0 %v146
  %197 = vmatmul.bf16.gmra.mxu0 %v67
  %v198 = vpop.f32.mrf.mxu0
  %v199 = vadd.f32 %v180, %v198
  %v200 = vpop.f32.mrf.mxu0
  %v201 = vadd.f32 %v182, %v200
  %202 = vmatmul.bf16.gmra.mxu0 %v69
  %v203 = vpop.f32.mrf.mxu0
  %v204 = vadd.f32 %v185, %v203
  %v205 = vpop.f32.mrf.mxu0
  %v206 = vadd.f32 %v187, %v205
  %207 = vdwg.mxu0
  %vm208 = vcmp.ge.f32.partialorder %v199, 0.0
  %vm209 = vcmp.ge.f32.partialorder %v201, 0.0
  %vm210 = vcmp.ge.f32.partialorder %v204, 0.0
  %vm211 = vcmp.ge.f32.partialorder %v206, 0.0
  %v212 = vmul.f32 %v199, 0.2
  %v213 = vmul.f32 %v201, 0.2
  %v214 = vmul.f32 %v204, 0.2
  %v215 = vmul.f32 %v206, 0.2
  %v216 = vsel %vm208, %v199, %v212
  %v217 = vsel %vm209, %v201, %v213
  %v218 = vsel %vm210, %v204, %v214
  %v219 = vsel %vm211, %v206, %v215
  %v220 = vpack.c.bf16 %v216, %v216
  %v221 = vpack.c.bf16 %v217, %v217
  %v222 = vpack.c.bf16 %v218, %v218
  %v223 = vpack.c.bf16 %v219, %v219
  %224 = vst [vmem:[%s3] sm:$0xf] %v220
  %225 = vst [vmem:[%s3 + $0x4] sm:$0xf] %v221
  %226 = vst [vmem:[%s3 + $0x8] sm:$0xf] %v222
  %227 = vst [vmem:[%s3 + $0xc] sm:$0xf] %v223
  // Predicated region
  $region14: #{_lambda_.11} parent=0 // pred_check
    _
  $region15: #{_lambda_.11} parent=0 // pred_check_branch
    %229 = sbr.rel (0) target = $region17
  $region16: #{_lambda_.11} parent=0 // pred_region
    _
  $region17: #{_lambda_.11} parent=0 // pred_fallthru
    _
  // Predicated region
  $region18: #{_lambda_.11} parent=0 // pred_check
    _
  $region19: #{_lambda_.11} parent=0 // pred_check_branch
    %231 = sbr.rel (0) target = $region21
  $region20: #{_lambda_.11} parent=0 // pred_region
    _
  $region21: #{_lambda_.11} parent=0 // pred_fallthru
    _

// kernel: _lambda_.12
$region0: #{_lambda_.12}
  #allocation0 [shape = 'u32[]', space=smem, size = 0x4, offset = 0x4, fixed_abs, tag = 'smem constant byte address 0x4 - core index']
  #allocation1 [shape = 'u32[72,128]{1,0:T(1,128)}', space=vmem, size = 0x9000, scoped, tag = 'internal scratch']
  %s0 = inlined_call_operand.vmem [shape: bf16[32,144], index: 0, kind: input, shape index: {}]
  %s1 = inlined_call_operand.vmem [shape: bf16[144,128], index: 1, kind: input, shape index: {}]
  %s2 = inlined_call_operand.vmem [shape: f32[1,128], index: 2, kind: input, shape index: {}]
  %s3 = inlined_call_operand.vmem [shape: bf16[32,128], index: 3, kind: output, shape index: {}]
  %s4 = sld [smem:[#allocation0]]
  $region22: #{_lambda_.12} parent=0
    _
  %s6 = ssub.s32 1, %s4
  %s7 = scalar_select 0, %s6, %s4
  // Predicated region
  $region2: #{_lambda_.12} parent=0 // pred_check
    _
  $region3: #{_lambda_.12} parent=0 // pred_check_branch
    %9 = sbr.rel (0) target = $region5
  $region4: #{_lambda_.12} parent=0 // pred_region
    _
  $region5: #{_lambda_.12} parent=0 // pred_fallthru
    _
  // Predicated region
  $region6: #{_lambda_.12} parent=0 // pred_check
    _
  $region7: #{_lambda_.12} parent=0 // pred_check_branch
    %11 = sbr.rel (0) target = $region9
  $region8: #{_lambda_.12} parent=0 // pred_region
    _
  $region9: #{_lambda_.12} parent=0 // pred_fallthru
    _
  // Predicated region
  $region10: #{_lambda_.12} parent=0 // pred_check
    _
  $region11: #{_lambda_.12} parent=0 // pred_check_branch
    %13 = sbr.rel (0) target = $region13
  $region12: #{_lambda_.12} parent=0 // pred_region
    _
  $region13: #{_lambda_.12} parent=0 // pred_fallthru
    _
  %v15 = vld [vmem:[%s0] sm:$0xff]
  %v16 = vld [vmem:[%s0 + $0x8] sm:$0xff]
  %v17 = vld [vmem:[%s0 + $0x10] sm:$0xff]
  %v18 = vld [vmem:[%s0 + $0x18] sm:$0xff]
  %v19 = vld [vmem:[%s1] sm:$0xf]
  %v20 = vld [vmem:[%s1 + $0x4] sm:$0xf]
  %v21 = vld [vmem:[%s1 + $0x8] sm:$0xf]
  %v22 = vld [vmem:[%s1 + $0xc] sm:$0xf]
  %v23 = vld [vmem:[%s1 + $0x10] sm:$0xf]
  %v24 = vld [vmem:[%s1 + $0x14] sm:$0xf]
  %v25 = vld [vmem:[%s1 + $0x18] sm:$0xf]
  %v26 = vld [vmem:[%s1 + $0x1c] sm:$0xf]
  %v27 = vld [vmem:[%s1 + $0x20] sm:$0xf]
  %v28 = vld [vmem:[%s1 + $0x24] sm:$0xf]
  %v29 = vld [vmem:[%s1 + $0x28] sm:$0xf]
  %v30 = vld [vmem:[%s1 + $0x2c] sm:$0xf]
  %v31 = vld [vmem:[%s1 + $0x30] sm:$0xf]
  %v32 = vld [vmem:[%s1 + $0x34] sm:$0xf]
  %v33 = vld [vmem:[%s1 + $0x38] sm:$0xf]
  %v34 = vld [vmem:[%s1 + $0x3c] sm:$0xf]
  %v35 = vld [vmem:[%s1 + $0x40] sm:$0xf]
  %v36 = vld [vmem:[%s1 + $0x44] sm:$0xf]
  %v37 = vld [vmem:[%s2] sm:$0x1]
  %v39 = vperm.slane %v37, 0
  %v45 = vunpack.c.l.b16 %v15
  %v46 = vunpack.c.h.b16 %v15
  %v47 = vunpack.c.l.b16 %v16
  %v48 = vunpack.c.h.b16 %v16
  %v49 = vunpack.c.l.b16 %v17
  %v50 = vunpack.c.h.b16 %v17
  %v51 = vunpack.c.l.b16 %v18
  %v52 = vunpack.c.h.b16 %v18
  %v53 = vpack.c.b16 %v47, %v45
  %v54 = vpack.c.b16 %v48, %v46
  %v55 = vpack.c.b16 %v51, %v49
  %v56 = vpack.c.b16 %v52, %v50
  %v77 = vunpack.c.l.b16 %v19
  %v78 = vunpack.c.l.b16 %v20
  %v79 = vunpack.c.l.b16 %v21
  %v80 = vunpack.c.l.b16 %v22
  %v81 = vunpack.c.l.b16 %v23
  %v82 = vunpack.c.l.b16 %v24
  %v83 = vunpack.c.l.b16 %v25
  %v84 = vunpack.c.l.b16 %v26
  %v85 = vunpack.c.l.b16 %v27
  %v86 = vunpack.c.l.b16 %v28
  %v87 = vunpack.c.l.b16 %v29
  %v88 = vunpack.c.l.b16 %v30
  %v89 = vunpack.c.l.b16 %v31
  %v90 = vunpack.c.l.b16 %v32
  %v91 = vunpack.c.l.b16 %v33
  %v92 = vunpack.c.l.b16 %v34
  %v93 = vunpack.c.l.b16 %v35
  %v94 = vunpack.c.l.b16 %v36
  %v95 = vpack.c.b16 %v78, %v77
  %v96 = vpack.c.b16 %v80, %v79
  %v97 = vpack.c.b16 %v82, %v81
  %v98 = vpack.c.b16 %v84, %v83
  %v99 = vpack.c.b16 %v86, %v85
  %v100 = vpack.c.b16 %v88, %v87
  %v101 = vpack.c.b16 %v90, %v89
  %v102 = vpack.c.b16 %v92, %v91
  %v103 = vpack.c.b16 %v94, %v93
  %vm113 = vcmask 130048
  %v115 = vsel %vm113, %v54, 0
  %v118 = vsel %vm113, %v56, 0
  %120 = vmatpush.bf16.msra.mxu0 %v102
  %121 = vmatpush.bf16.msra.mxu0 %v101
  %122 = vmatpush.bf16.msra.mxu0 %v100
  %123 = vmatpush.bf16.msra.mxu0 %v99
  %124 = vmatpush.bf16.msra.mxu0 %v98
  %125 = vmatpush.bf16.msra.mxu0 %v97
  %126 = vmatpush.bf16.msra.mxu0 %v96
  %127 = vmatpush.bf16.msra.mxu0 %v95
  %128 = vmatmul.bf16.gmra.mxu0 %v53
  %v129 = vpop.f32.mrf.mxu0
  %v130 = vadd.f32 %v39, %v129
  %v131 = vpop.f32.mrf.mxu0
  %v132 = vadd.f32 %v39, %v131
  %133 = vmatmul.bf16.gmra.mxu0 %v55
  %v134 = vpop.f32.mrf.mxu0
  %v135 = vadd.f32 %v39, %v134
  %v136 = vpop.f32.mrf.mxu0
  %v137 = vadd.f32 %v39, %v136
  %138 = vdwg.mxu0
  %139 = vmatpush.bf16.msra.mxu0 0
  %140 = vmatpush.bf16.msra.mxu0 0
  %141 = vmatpush.bf16.msra.mxu0 0
  %142 = vmatpush.bf16.msra.mxu0 0
  %143 = vmatpush.bf16.msra.mxu0 0
  %144 = vmatpush.bf16.msra.mxu0 0
  %145 = vmatpush.bf16.msra.mxu0 0
  %146 = vmatpush.bf16.msra.mxu0 %v103
  %147 = vmatmul.bf16.gmra.mxu0 %v115
  %v148 = vpop.f32.mrf.mxu0
  %v149 = vadd.f32 %v130, %v148
  %v150 = vpop.f32.mrf.mxu0
  %v151 = vadd.f32 %v132, %v150
  %152 = vmatmul.bf16.gmra.mxu0 %v118
  %v153 = vpop.f32.mrf.mxu0
  %v154 = vadd.f32 %v135, %v153
  %v155 = vpop.f32.mrf.mxu0
  %v156 = vadd.f32 %v137, %v155
  %157 = vdwg.mxu0
  %vm158 = vcmp.ge.f32.partialorder %v149, 0.0
  %vm159 = vcmp.ge.f32.partialorder %v151, 0.0
  %vm160 = vcmp.ge.f32.partialorder %v154, 0.0
  %vm161 = vcmp.ge.f32.partialorder %v156, 0.0
  %v162 = vmul.f32 %v149, 0.2
  %v163 = vmul.f32 %v151, 0.2
  %v164 = vmul.f32 %v154, 0.2
  %v165 = vmul.f32 %v156, 0.2
  %v166 = vsel %vm158, %v149, %v162
  %v167 = vsel %vm159, %v151, %v163
  %v168 = vsel %vm160, %v154, %v164
  %v169 = vsel %vm161, %v156, %v165
  %v170 = vpack.c.bf16 %v166, %v166
  %v171 = vpack.c.bf16 %v167, %v167
  %v172 = vpack.c.bf16 %v168, %v168
  %v173 = vpack.c.bf16 %v169, %v169
  %174 = vst [vmem:[%s3] sm:$0xf] %v170
  %175 = vst [vmem:[%s3 + $0x4] sm:$0xf] %v171
  %176 = vst [vmem:[%s3 + $0x8] sm:$0xf] %v172
  %177 = vst [vmem:[%s3 + $0xc] sm:$0xf] %v173
  // Predicated region
  $region14: #{_lambda_.12} parent=0 // pred_check
    _
  $region15: #{_lambda_.12} parent=0 // pred_check_branch
    %179 = sbr.rel (0) target = $region17
  $region16: #{_lambda_.12} parent=0 // pred_region
    _
  $region17: #{_lambda_.12} parent=0 // pred_fallthru
    _
  // Predicated region
  $region18: #{_lambda_.12} parent=0 // pred_check
    _
  $region19: #{_lambda_.12} parent=0 // pred_check_branch
    %181 = sbr.rel (0) target = $region21
  $region20: #{_lambda_.12} parent=0 // pred_region
    _
  $region21: #{_lambda_.12} parent=0 // pred_fallthru
    _

// kernel: _lambda_.16
$region0: #{_lambda_.16}
  #allocation0 [shape = 'u32[]', space=smem, size = 0x4, offset = 0x4, fixed_abs, tag = 'smem constant byte address 0x4 - core index']
  #allocation1 [shape = 'u32[72,128]{1,0:T(1,128)}', space=vmem, size = 0x9000, scoped, tag = 'internal scratch']
  #allocation2 [shape = 'u32[2048]{0}', space=vmem, size = 0x2000, scoped, tag = 'scoped memory for _lambda_.16']
  #allocation3 [shape = 'u32[2048]{0}', space=vmem, size = 0x2000, scoped, tag = 'scoped memory for _lambda_.16']
  #allocation4 [shape = 'u32[2048]{0}', space=vmem, size = 0x2000, scoped, tag = 'scoped memory for _lambda_.16']
  #allocation5 [shape = 'u32[2048]{0}', space=vmem, size = 0x2000, scoped, tag = 'scoped memory for _lambda_.16']
  #allocation6 [shape = 'u32[2048]{0}', space=vmem, size = 0x2000, scoped, tag = 'scoped memory for _lambda_.16']
  %s0 = inlined_call_operand.vmem [shape: bf16[512,128], index: 0, kind: input, shape index: {}]
  %s1 = inlined_call_operand.vmem [shape: f32[1,128], index: 1, kind: input, shape index: {}]
  %s2 = inlined_call_operand.vmem [shape: bf16[8,512], index: 2, kind: input, shape index: {}]
  %s3 = inlined_call_operand.<no memory space> [shape: bf16[], index: 3, kind: input, shape index: {}]
  %s4 = inlined_call_operand.vmem [shape: bf16[16,128], index: 4, kind: output, shape index: {}]
  %s5 = sld [smem:[#allocation0]]
  $region22: #{_lambda_.16} parent=0
    _
  %s7 = ssub.s32 1, %s5
  %s8 = scalar_select 0, %s7, %s5
  %v9 = vstv %s3
  %v10 = vunpack.i.l.bf16 %v9
  %v12 = vunpack.i.h.bf16 %v9
  $region1: #{_lambda_.16} parent=0
    #allocation7 [shape = 'u8[16384]{0}', space=vmem, size = 0x4000, dematerialized = true, scoped, tag = 'FusionAdapter Buffer %fusion.21 = bf16[16,512]{1,0:T(8,128)(2,1)} fusion(%param_2.210, %param_3.85), kind=kLoop, calls=%fused_computation.120.clone, metadata={op_name="jit(<lambda>)/jit(_pad)/pad" stack_frame_id=21}']
    // Predicated region
    $region2: #{_lambda_.16} parent=1 // pred_check
      _
    $region3: #{_lambda_.16} parent=1 // pred_check_branch
      %15 = sbr.rel (0) target = $region5
    $region4: #{_lambda_.16} parent=1 // pred_region
      _
    $region5: #{_lambda_.16} parent=1 // pred_fallthru
      _
    // Predicated region
    $region6: #{_lambda_.16} parent=1 // pred_check
      _
    $region7: #{_lambda_.16} parent=1 // pred_check_branch
      %17 = sbr.rel (0) target = $region9
    $region8: #{_lambda_.16} parent=1 // pred_region
      _
    $region9: #{_lambda_.16} parent=1 // pred_fallthru
      _
    // Predicated region
    $region10: #{_lambda_.16} parent=1 // pred_check
      _
    $region11: #{_lambda_.16} parent=1 // pred_check_branch
      %19 = sbr.rel (0) target = $region13
    $region12: #{_lambda_.16} parent=1 // pred_region
      _
    $region13: #{_lambda_.16} parent=1 // pred_fallthru
      _
    %s21 = sor.u32 255, 127
    %s22 = sand.u32 %s21, 85
    %s23 = sshrl.u32 %s22, 1
    %s24 = sor.u32 %s22, %s23
    %s25 = sand.u32 51, %s24
    %s26 = sshrl.u32 %s25, 2
    %s27 = sor.u32 %s25, %s26
    %s28 = sand.u32 15, %s27
    %v29 = vld [vmem:[%s2] sm:%s28]
    %v30 = vunpack.c.l.bf16 %v29
    %v31 = vunpack.c.h.bf16 %v29
    %v32 = vpack.c.bf16 0.0, %v30
    %s34 = ssub.s32 16, 1
    %35 = vst [vmem:[#allocation7] sm:%s34] %v32
    %s36 = scalar_lea.vmem %s2, 4
    %s38 = sor.u32 255, 127
    %s39 = sand.u32 %s38, 85
    %s40 = sshrl.u32 %s39, 1
    %s41 = sor.u32 %s39, %s40
    %s42 = sand.u32 51, %s41
    %s43 = sshrl.u32 %s42, 2
    %s44 = sor.u32 %s42, %s43
    %s45 = sand.u32 15, %s44
    %v46 = vld [vmem:[%s36] sm:%s45]
    %v47 = vunpack.c.l.bf16 %v46
    %v48 = vunpack.c.h.bf16 %v46
    %s49 = scalar_lea.vmem [#allocation7], 4
    %v50 = vpack.c.bf16 0.0, %v47
    %s52 = ssub.s32 16, 1
    %53 = vst [vmem:[%s49] sm:%s52] %v50
    %s54 = scalar_lea.vmem %s2, 8
    %s56 = sor.u32 255, 127
    %s57 = sand.u32 %s56, 85
    %s58 = sshrl.u32 %s57, 1
    %s59 = sor.u32 %s57, %s58
    %s60 = sand.u32 51, %s59
    %s61 = sshrl.u32 %s60, 2
    %s62 = sor.u32 %s60, %s61
    %s63 = sand.u32 15, %s62
    %v64 = vld [vmem:[%s54] sm:%s63]
    %v65 = vunpack.c.l.bf16 %v64
    %v66 = vunpack.c.h.bf16 %v64
    %s67 = scalar_lea.vmem [#allocation7], 8
    %v68 = vpack.c.bf16 0.0, %v65
    %s70 = ssub.s32 16, 1
    %71 = vst [vmem:[%s67] sm:%s70] %v68
    %s72 = scalar_lea.vmem %s2, 12
    %s74 = sor.u32 255, 127
    %s75 = sand.u32 %s74, 85
    %s76 = sshrl.u32 %s75, 1
    %s77 = sor.u32 %s75, %s76
    %s78 = sand.u32 51, %s77
    %s79 = sshrl.u32 %s78, 2
    %s80 = sor.u32 %s78, %s79
    %s81 = sand.u32 15, %s80
    %v82 = vld [vmem:[%s72] sm:%s81]
    %v83 = vunpack.c.l.bf16 %v82
    %v84 = vunpack.c.h.bf16 %v82
    %s85 = scalar_lea.vmem [#allocation7], 12
    %v86 = vpack.c.bf16 0.0, %v83
    %s88 = ssub.s32 16, 1
    %89 = vst [vmem:[%s85] sm:%s88] %v86
    %s90 = scalar_lea.vmem [#allocation7], 16
    %v91 = vpack.c.bf16 0.0, %v10
    %s93 = ssub.s32 16, 1
    %94 = vst [vmem:[%s90] sm:%s93] %v91
    %s95 = scalar_lea.vmem [#allocation7], 20
    %v96 = vpack.c.bf16 0.0, %v10
    %s98 = ssub.s32 16, 1
    %99 = vst [vmem:[%s95] sm:%s98] %v96
    %s100 = scalar_lea.vmem [#allocation7], 24
    %v101 = vpack.c.bf16 0.0, %v10
    %s103 = ssub.s32 16, 1
    %104 = vst [vmem:[%s100] sm:%s103] %v101
    %s105 = scalar_lea.vmem [#allocation7], 28
    %v106 = vpack.c.bf16 0.0, %v10
    %s108 = ssub.s32 16, 1
    %109 = vst [vmem:[%s105] sm:%s108] %v106
    %v110 = vld [vmem:[#allocation7] sm:$0xff]
    %v111 = vld [vmem:[#allocation7 + $0x8] sm:$0xff]
    %v112 = vld [vmem:[#allocation7 + $0x10] sm:$0xff]
    %v113 = vld [vmem:[#allocation7 + $0x18] sm:$0xff]
    %v114 = vld [vmem:[%s0] sm:$0xf]
    %v115 = vld [vmem:[%s0 + $0x4] sm:$0xf]
    %v116 = vld [vmem:[%s0 + $0x8] sm:$0xf]
    %v117 = vld [vmem:[%s0 + $0xc] sm:$0xf]
    %v118 = vld [vmem:[%s0 + $0x10] sm:$0xf]
    %v119 = vld [vmem:[%s0 + $0x14] sm:$0xf]
    %v120 = vld [vmem:[%s0 + $0x18] sm:$0xf]
    %v121 = vld [vmem:[%s0 + $0x1c] sm:$0xf]
    %v122 = vld [vmem:[%s0 + $0x20] sm:$0xf]
    %v123 = vld [vmem:[%s0 + $0x24] sm:$0xf]
    %v124 = vld [vmem:[%s0 + $0x28] sm:$0xf]
    %v125 = vld [vmem:[%s0 + $0x2c] sm:$0xf]
    %v126 = vld [vmem:[%s0 + $0x30] sm:$0xf]
    %v127 = vld [vmem:[%s0 + $0x34] sm:$0xf]
    %v128 = vld [vmem:[%s0 + $0x38] sm:$0xf]
    %v129 = vld [vmem:[%s0 + $0x3c] sm:$0xf]
    %v130 = vld [vmem:[%s0 + $0x40] sm:$0xf]
    %v131 = vld [vmem:[%s0 + $0x44] sm:$0xf]
    %v132 = vld [vmem:[%s0 + $0x48] sm:$0xf]
    %v133 = vld [vmem:[%s0 + $0x4c] sm:$0xf]
    %v134 = vld [vmem:[%s0 + $0x50] sm:$0xf]
    %v135 = vld [vmem:[%s0 + $0x54] sm:$0xf]
    %v136 = vld [vmem:[%s0 + $0x58] sm:$0xf]
    %v137 = vld [vmem:[%s0 + $0x5c] sm:$0xf]
    %v138 = vld [vmem:[%s0 + $0x60] sm:$0xf]
    %v139 = vld [vmem:[%s0 + $0x64] sm:$0xf]
    %v140 = vld [vmem:[%s0 + $0x68] sm:$0xf]
    %v141 = vld [vmem:[%s0 + $0x6c] sm:$0xf]
    %v142 = vld [vmem:[%s0 + $0x70] sm:$0xf]
    %v143 = vld [vmem:[%s0 + $0x74] sm:$0xf]
    %v144 = vld [vmem:[%s0 + $0x78] sm:$0xf]
    %v145 = vld [vmem:[%s0 + $0x7c] sm:$0xf]
    %v146 = vld [vmem:[%s0 + $0x80] sm:$0xf]
    %v147 = vld [vmem:[%s0 + $0x84] sm:$0xf]
    %v148 = vld [vmem:[%s0 + $0x88] sm:$0xf]
    %v149 = vld [vmem:[%s0 + $0x8c] sm:$0xf]
    %v150 = vld [vmem:[%s0 + $0x90] sm:$0xf]
    %v151 = vld [vmem:[%s0 + $0x94] sm:$0xf]
    %v152 = vld [vmem:[%s0 + $0x98] sm:$0xf]
    %v153 = vld [vmem:[%s0 + $0x9c] sm:$0xf]
    %v154 = vld [vmem:[%s0 + $0xa0] sm:$0xf]
    %v155 = vld [vmem:[%s0 + $0xa4] sm:$0xf]
    %v156 = vld [vmem:[%s0 + $0xa8] sm:$0xf]
    %v157 = vld [vmem:[%s0 + $0xac] sm:$0xf]
    %v158 = vld [vmem:[%s0 + $0xb0] sm:$0xf]
    %v159 = vld [vmem:[%s0 + $0xb4] sm:$0xf]
    %v160 = vld [vmem:[%s0 + $0xb8] sm:$0xf]
    %v161 = vld [vmem:[%s0 + $0xbc] sm:$0xf]
    %v162 = vld [vmem:[%s0 + $0xc0] sm:$0xf]
    %v163 = vld [vmem:[%s0 + $0xc4] sm:$0xf]
    %v164 = vld [vmem:[%s0 + $0xc8] sm:$0xf]
    %v165 = vld [vmem:[%s0 + $0xcc] sm:$0xf]
    %v166 = vld [vmem:[%s0 + $0xd0] sm:$0xf]
    %v167 = vld [vmem:[%s0 + $0xd4] sm:$0xf]
    %v168 = vld [vmem:[%s0 + $0xd8] sm:$0xf]
    %v169 = vld [vmem:[%s0 + $0xdc] sm:$0xf]
    %v170 = vld [vmem:[%s0 + $0xe0] sm:$0xf]
    %v171 = vld [vmem:[%s0 + $0xe4] sm:$0xf]
    %v172 = vld [vmem:[%s0 + $0xe8] sm:$0xf]
    %v173 = vld [vmem:[%s0 + $0xec] sm:$0xf]
    %v174 = vld [vmem:[%s0 + $0xf0] sm:$0xf]
    %v175 = vld [vmem:[%s0 + $0xf4] sm:$0xf]
    %v176 = vld [vmem:[%s0 + $0xf8] sm:$0xf]
    %v177 = vld [vmem:[%s0 + $0xfc] sm:$0xf]
    %v178 = vld [vmem:[%s1] sm:$0x1]
    %v180 = vperm.slane %v178, 0
    %v186 = vunpack.c.l.b16 %v110
    %v187 = vunpack.c.h.b16 %v110
    %v188 = vunpack.c.l.b16 %v111
    %v189 = vunpack.c.h.b16 %v111
    %v190 = vunpack.c.l.b16 %v112
    %v191 = vunpack.c.h.b16 %v112
    %v192 = vunpack.c.l.b16 %v113
    %v193 = vunpack.c.h.b16 %v113
    %v194 = vpack.c.b16 %v190, %v186
    %v195 = vpack.c.b16 %v191, %v187
    %v196 = vpack.c.b16 %v192, %v188
    %v197 = vpack.c.b16 %v193, %v189
    %v266 = vunpack.c.l.b16 %v114
    %v267 = vunpack.c.l.b16 %v115
    %v268 = vunpack.c.l.b16 %v116
    %v269 = vunpack.c.l.b16 %v117
    %v270 = vunpack.c.l.b16 %v118
    %v271 = vunpack.c.l.b16 %v119
    %v272 = vunpack.c.l.b16 %v120
    %v273 = vunpack.c.l.b16 %v121
    %v274 = vunpack.c.l.b16 %v122
    %v275 = vunpack.c.l.b16 %v123
    %v276 = vunpack.c.l.b16 %v124
    %v277 = vunpack.c.l.b16 %v125
    %v278 = vunpack.c.l.b16 %v126
    %v279 = vunpack.c.l.b16 %v127
    %v280 = vunpack.c.l.b16 %v128
    %v281 = vunpack.c.l.b16 %v129
    %v282 = vunpack.c.l.b16 %v130
    %v283 = vunpack.c.l.b16 %v131
    %v284 = vunpack.c.l.b16 %v132
    %v285 = vunpack.c.l.b16 %v133
    %v286 = vunpack.c.l.b16 %v134
    %v287 = vunpack.c.l.b16 %v135
    %v288 = vunpack.c.l.b16 %v136
    %v289 = vunpack.c.l.b16 %v137
    %v290 = vunpack.c.l.b16 %v138
    %v291 = vunpack.c.l.b16 %v139
    %v292 = vunpack.c.l.b16 %v140
    %v293 = vunpack.c.l.b16 %v141
    %v294 = vunpack.c.l.b16 %v142
    %v295 = vunpack.c.l.b16 %v143
    %v296 = vunpack.c.l.b16 %v144
    %v297 = vunpack.c.l.b16 %v145
    %v298 = vunpack.c.l.b16 %v146
    %v299 = vunpack.c.l.b16 %v147
    %v300 = vunpack.c.l.b16 %v148
    %v301 = vunpack.c.l.b16 %v149
    %v302 = vunpack.c.l.b16 %v150
    %v303 = vunpack.c.l.b16 %v151
    %v304 = vunpack.c.l.b16 %v152
    %v305 = vunpack.c.l.b16 %v153
    %v306 = vunpack.c.l.b16 %v154
    %v307 = vunpack.c.l.b16 %v155
    %v308 = vunpack.c.l.b16 %v156
    %v309 = vunpack.c.l.b16 %v157
    %v310 = vunpack.c.l.b16 %v158
    %v311 = vunpack.c.l.b16 %v159
    %v312 = vunpack.c.l.b16 %v160
    %v313 = vunpack.c.l.b16 %v161
    %v314 = vunpack.c.l.b16 %v162
    %v315 = vunpack.c.l.b16 %v163
    %v316 = vunpack.c.l.b16 %v164
    %v317 = vunpack.c.l.b16 %v165
    %v318 = vunpack.c.l.b16 %v166
    %v319 = vunpack.c.l.b16 %v167
    %v320 = vunpack.c.l.b16 %v168
    %v321 = vunpack.c.l.b16 %v169
    %v322 = vunpack.c.l.b16 %v170
    %v323 = vunpack.c.l.b16 %v171
    %v324 = vunpack.c.l.b16 %v172
    %v325 = vunpack.c.l.b16 %v173
    %v326 = vunpack.c.l.b16 %v174
    %v327 = vunpack.c.l.b16 %v175
    %v328 = vunpack.c.l.b16 %v176
    %v329 = vunpack.c.l.b16 %v177
    %v330 = vpack.c.b16 %v267, %v266
    %v331 = vpack.c.b16 %v269, %v268
    %v332 = vpack.c.b16 %v271, %v270
    %v333 = vpack.c.b16 %v273, %v272
    %v334 = vpack.c.b16 %v275, %v274
    %v335 = vpack.c.b16 %v277, %v276
    %v336 = vpack.c.b16 %v279, %v278
    %v337 = vpack.c.b16 %v281, %v280
    %v338 = vpack.c.b16 %v283, %v282
    %v339 = vpack.c.b16 %v285, %v284
    %v340 = vpack.c.b16 %v287, %v286
    %v341 = vpack.c.b16 %v289, %v288
    %v342 = vpack.c.b16 %v291, %v290
    %v343 = vpack.c.b16 %v293, %v292
    %v344 = vpack.c.b16 %v295, %v294
    %v345 = vpack.c.b16 %v297, %v296
    %v346 = vpack.c.b16 %v299, %v298
    %v347 = vpack.c.b16 %v301, %v300
    %v348 = vpack.c.b16 %v303, %v302
    %v349 = vpack.c.b16 %v305, %v304
    %v350 = vpack.c.b16 %v307, %v306
    %v351 = vpack.c.b16 %v309, %v308
    %v352 = vpack.c.b16 %v311, %v310
    %v353 = vpack.c.b16 %v313, %v312
    %v354 = vpack.c.b16 %v315, %v314
    %v355 = vpack.c.b16 %v317, %v316
    %v356 = vpack.c.b16 %v319, %v318
    %v357 = vpack.c.b16 %v321, %v320
    %v358 = vpack.c.b16 %v323, %v322
    %v359 = vpack.c.b16 %v325, %v324
    %v360 = vpack.c.b16 %v327, %v326
    %v361 = vpack.c.b16 %v329, %v328
    %394 = vmatpush.bf16.msra.mxu0 %v337
    %395 = vmatpush.bf16.msra.mxu0 %v336
    %396 = vmatpush.bf16.msra.mxu0 %v335
    %397 = vmatpush.bf16.msra.mxu0 %v334
    %398 = vmatpush.bf16.msra.mxu0 %v333
    %399 = vmatpush.bf16.msra.mxu0 %v332
    %400 = vmatpush.bf16.msra.mxu0 %v331
    %401 = vmatpush.bf16.msra.mxu0 %v330
    %402 = vmatmul.bf16.gmra.mxu0 %v194
    %v403 = vpop.f32.mrf.mxu0
    %v404 = vadd.f32 %v180, %v403
    %v405 = vpop.f32.mrf.mxu0
    %v406 = vadd.f32 %v180, %v405
    %407 = vdwg.mxu0
    %408 = vmatpush.bf16.msra.mxu0 %v345
    %409 = vmatpush.bf16.msra.mxu0 %v344
    %410 = vmatpush.bf16.msra.mxu0 %v343
    %411 = vmatpush.bf16.msra.mxu0 %v342
    %412 = vmatpush.bf16.msra.mxu0 %v341
    %413 = vmatpush.bf16.msra.mxu0 %v340
    %414 = vmatpush.bf16.msra.mxu0 %v339
    %415 = vmatpush.bf16.msra.mxu0 %v338
    %416 = vmatmul.bf16.gmra.mxu0 %v195
    %v417 = vpop.f32.mrf.mxu0
    %v418 = vadd.f32 %v404, %v417
    %v419 = vpop.f32.mrf.mxu0
    %v420 = vadd.f32 %v406, %v419
    %421 = vdwg.mxu0
    %422 = vmatpush.bf16.msra.mxu0 %v353
    %423 = vmatpush.bf16.msra.mxu0 %v352
    %424 = vmatpush.bf16.msra.mxu0 %v351
    %425 = vmatpush.bf16.msra.mxu0 %v350
    %426 = vmatpush.bf16.msra.mxu0 %v349
    %427 = vmatpush.bf16.msra.mxu0 %v348
    %428 = vmatpush.bf16.msra.mxu0 %v347
    %429 = vmatpush.bf16.msra.mxu0 %v346
    %430 = vmatmul.bf16.gmra.mxu0 %v196
    %v431 = vpop.f32.mrf.mxu0
    %v432 = vadd.f32 %v418, %v431
    %v433 = vpop.f32.mrf.mxu0
    %v434 = vadd.f32 %v420, %v433
    %435 = vdwg.mxu0
    %436 = vmatpush.bf16.msra.mxu0 %v361
    %437 = vmatpush.bf16.msra.mxu0 %v360
    %438 = vmatpush.bf16.msra.mxu0 %v359
    %439 = vmatpush.bf16.msra.mxu0 %v358
    %440 = vmatpush.bf16.msra.mxu0 %v357
    %441 = vmatpush.bf16.msra.mxu0 %v356
    %442 = vmatpush.bf16.msra.mxu0 %v355
    %443 = vmatpush.bf16.msra.mxu0 %v354
    %444 = vmatmul.bf16.gmra.mxu0 %v197
    %v445 = vpop.f32.mrf.mxu0
    %v446 = vadd.f32 %v432, %v445
    %v447 = vpop.f32.mrf.mxu0
    %v448 = vadd.f32 %v434, %v447
    %449 = vdwg.mxu0
    %vm450 = vcmp.ge.f32.partialorder %v446, 0.0
    %vm451 = vcmp.ge.f32.partialorder %v448, 0.0
    %v452 = vmul.f32 %v446, 0.2
    %v453 = vmul.f32 %v448, 0.2
    %v454 = vsel %vm450, %v446, %v452
    %v455 = vsel %vm451, %v448, %v453
    %v456 = vpack.c.bf16 %v454, %v454
    %v457 = vpack.c.bf16 %v455, %v455
    %458 = vst [vmem:[%s4] sm:$0xf] %v456
    %459 = vst [vmem:[%s4 + $0x4] sm:$0xf] %v457
    // Predicated region
    $region14: #{_lambda_.16} parent=1 // pred_check
      _
    $region15: #{_lambda_.16} parent=1 // pred_check_branch
      %461 = sbr.rel (0) target = $region17
    $region16: #{_lambda_.16} parent=1 // pred_region
      _
    $region17: #{_lambda_.16} parent=1 // pred_fallthru
      _
    // Predicated region
    $region18: #{_lambda_.16} parent=1 // pred_check
      _
    $region19: #{_lambda_.16} parent=1 // pred_check_branch
      %463 = sbr.rel (0) target = $region21
    $region20: #{_lambda_.16} parent=1 // pred_region
      _
    $region21: #{_lambda_.16} parent=1 // pred_fallthru
      _

// kernel: _lambda_.13
$region0: #{_lambda_.13}
  #allocation0 [shape = 'u32[]', space=smem, size = 0x4, offset = 0x4, fixed_abs, tag = 'smem constant byte address 0x4 - core index']
  #allocation1 [shape = 'u32[72,128]{1,0:T(1,128)}', space=vmem, size = 0x9000, scoped, tag = 'internal scratch']
  #allocation2 [shape = 'f32[1,1]{1,0:T(1,128)S(1)}', space=vmem, size = 0x200, scoped, tag = 'scoped memory for _lambda_.13']
  %s0 = inlined_call_operand.vmem [shape: bf16[2,4,128], index: 0, kind: input, shape index: {}]
  %s1 = inlined_call_operand.vmem [shape: f32[128,128], index: 1, kind: input, shape index: {}]
  %s2 = inlined_call_operand.vmem [shape: f32[1,128], index: 2, kind: input, shape index: {}]
  %s3 = inlined_call_operand.vmem [shape: f32[128,1], index: 3, kind: input, shape index: {}]
  %s4 = inlined_call_operand.<no memory space> [shape: f32[1,1], index: 4, kind: input, shape index: {}]
  %s5 = inlined_call_operand.vmem [shape: f32[2,1], index: 5, kind: output, shape index: {}]
  %s6 = sld [smem:[#allocation0]]
  $region30: #{_lambda_.13} parent=0
    _
  %s8 = ssub.s32 1, %s6
  %s9 = scalar_select 0, %s8, %s6
  %v10 = vstv %s4
  %11 = vst [vmem:[#allocation2] sm:$0x1] %v10
  // Predicated region
  $region2: #{_lambda_.13} parent=0 // pred_check
    _
  $region3: #{_lambda_.13} parent=0 // pred_check_branch
    %13 = sbr.rel (0) target = $region5
  $region4: #{_lambda_.13} parent=0 // pred_region
    _
  $region5: #{_lambda_.13} parent=0 // pred_fallthru
    _
  // Predicated region
  $region6: #{_lambda_.13} parent=0 // pred_check
    _
  $region7: #{_lambda_.13} parent=0 // pred_check_branch
    %15 = sbr.rel (0) target = $region9
  $region8: #{_lambda_.13} parent=0 // pred_region
    _
  $region9: #{_lambda_.13} parent=0 // pred_fallthru
    _
  // Predicated region
  $region10: #{_lambda_.13} parent=0 // pred_check
    _
  $region11: #{_lambda_.13} parent=0 // pred_check_branch
    %17 = sbr.rel (0) target = $region13
  $region12: #{_lambda_.13} parent=0 // pred_region
    _
  $region13: #{_lambda_.13} parent=0 // pred_fallthru
    _
  // Predicated region
  $region14: #{_lambda_.13} parent=0 // pred_check
    _
  $region15: #{_lambda_.13} parent=0 // pred_check_branch
    %19 = sbr.rel (0) target = $region17
  $region16: #{_lambda_.13} parent=0 // pred_region
    _
  $region17: #{_lambda_.13} parent=0 // pred_fallthru
    _
  // Predicated region
  $region18: #{_lambda_.13} parent=0 // pred_check
    _
  $region19: #{_lambda_.13} parent=0 // pred_check_branch
    %21 = sbr.rel (0) target = $region21
  $region20: #{_lambda_.13} parent=0 // pred_region
    _
  $region21: #{_lambda_.13} parent=0 // pred_fallthru
    _
  %v22 = vld [vmem:[%s0] sm:$0x3]
  %v23 = vld [vmem:[%s0 + $0x2] sm:$0x3]
  %v24 = vunpack.c.l.bf16 %v22
  %v25 = vunpack.c.l.bf16 %v23
  %vm26 = vcmask 1043456
  %v27 = vsel %vm26, %v24, 0.0
  %v28 = vrot.slane %v27, 4
  %v29 = vadd.f32 %v27, %v28
  %v30 = vrot.slane %v29, 2
  %v31 = vadd.f32 %v29, %v30
  %v32 = vrot.slane %v31, 1
  %v33 = vadd.f32 %v31, %v32
  %v34 = vsel %vm26, %v25, 0.0
  %v35 = vrot.slane %v34, 4
  %v36 = vadd.f32 %v34, %v35
  %v37 = vrot.slane %v36, 2
  %v38 = vadd.f32 %v36, %v37
  %v39 = vrot.slane %v38, 1
  %v40 = vadd.f32 %v38, %v39
  %v41 = vmul.f32 %v33, 0.25
  %v42 = vmul.f32 %v40, 0.25
  %v43 = vld [vmem:[%s1] sm:$0xff]
  %v44 = vld [vmem:[%s1 + $0x8] sm:$0xff]
  %v45 = vld [vmem:[%s1 + $0x10] sm:$0xff]
  %v46 = vld [vmem:[%s1 + $0x18] sm:$0xff]
  %v47 = vld [vmem:[%s1 + $0x20] sm:$0xff]
  %v48 = vld [vmem:[%s1 + $0x28] sm:$0xff]
  %v49 = vld [vmem:[%s1 + $0x30] sm:$0xff]
  %v50 = vld [vmem:[%s1 + $0x38] sm:$0xff]
  %v51 = vld [vmem:[%s1 + $0x40] sm:$0xff]
  %v52 = vld [vmem:[%s1 + $0x48] sm:$0xff]
  %v53 = vld [vmem:[%s1 + $0x50] sm:$0xff]
  %v54 = vld [vmem:[%s1 + $0x58] sm:$0xff]
  %v55 = vld [vmem:[%s1 + $0x60] sm:$0xff]
  %v56 = vld [vmem:[%s1 + $0x68] sm:$0xff]
  %v57 = vld [vmem:[%s1 + $0x70] sm:$0xff]
  %v58 = vld [vmem:[%s1 + $0x78] sm:$0xff]
  %v59 = vld [vmem:[%s2] sm:$0x1]
  %v61 = vperm.slane %v59, 0
  %vm65 = vcmask 1041409
  %v66 = vsel %vm65, %v42, %v41
  %68 = vmatpush.msra.mxu0 %v58
  %69 = vmatpush.msra.mxu0 %v57
  %70 = vmatpush.msra.mxu0 %v56
  %71 = vmatpush.msra.mxu0 %v55
  %72 = vmatpush.msra.mxu0 %v54
  %73 = vmatpush.msra.mxu0 %v53
  %74 = vmatpush.msra.mxu0 %v52
  %75 = vmatpush.msra.mxu0 %v51
  %76 = vmatpush.msra.mxu0 %v50
  %77 = vmatpush.msra.mxu0 %v49
  %78 = vmatpush.msra.mxu0 %v48
  %79 = vmatpush.msra.mxu0 %v47
  %80 = vmatpush.msra.mxu0 %v46
  %81 = vmatpush.msra.mxu0 %v45
  %82 = vmatpush.msra.mxu0 %v44
  %83 = vmatpush.msra.mxu0 %v43
  %84 = vmatmul.f32.gmra.mxu0 %v66
  %v85 = vpop.f32.mrf.mxu0
  %v86 = vadd.f32 %v61, %v85
  %87 = vdwg.mxu0
  %vm88 = vcmp.ge.f32.partialorder %v86, 0.0
  %v89 = vmul.f32 %v86, 0.2
  %v90 = vsel %vm88, %v86, %v89
  %v91 = vld [vmem:[%s3] sm:$0xff]
  %v92 = vld [vmem:[%s3 + $0x8] sm:$0xff]
  %v93 = vld [vmem:[%s3 + $0x10] sm:$0xff]
  %v94 = vld [vmem:[%s3 + $0x18] sm:$0xff]
  %v95 = vld [vmem:[%s3 + $0x20] sm:$0xff]
  %v96 = vld [vmem:[%s3 + $0x28] sm:$0xff]
  %v97 = vld [vmem:[%s3 + $0x30] sm:$0xff]
  %v98 = vld [vmem:[%s3 + $0x38] sm:$0xff]
  %v99 = vld [vmem:[%s3 + $0x40] sm:$0xff]
  %v100 = vld [vmem:[%s3 + $0x48] sm:$0xff]
  %v101 = vld [vmem:[%s3 + $0x50] sm:$0xff]
  %v102 = vld [vmem:[%s3 + $0x58] sm:$0xff]
  %v103 = vld [vmem:[%s3 + $0x60] sm:$0xff]
  %v104 = vld [vmem:[%s3 + $0x68] sm:$0xff]
  %v105 = vld [vmem:[%s3 + $0x70] sm:$0xff]
  %v106 = vld [vmem:[%s3 + $0x78] sm:$0xff]
  %v107 = vld [vmem:[#allocation2] sm:$0x1]
  %v109 = vperm.slane %v107, 0
  %111 = vmatpush.msra.mxu0 %v106
  %112 = vmatpush.msra.mxu0 %v105
  %113 = vmatpush.msra.mxu0 %v104
  %114 = vmatpush.msra.mxu0 %v103
  %115 = vmatpush.msra.mxu0 %v102
  %116 = vmatpush.msra.mxu0 %v101
  %117 = vmatpush.msra.mxu0 %v100
  %118 = vmatpush.msra.mxu0 %v99
  %119 = vmatpush.msra.mxu0 %v98
  %120 = vmatpush.msra.mxu0 %v97
  %121 = vmatpush.msra.mxu0 %v96
  %122 = vmatpush.msra.mxu0 %v95
  %123 = vmatpush.msra.mxu0 %v94
  %124 = vmatpush.msra.mxu0 %v93
  %125 = vmatpush.msra.mxu0 %v92
  %126 = vmatpush.msra.mxu0 %v91
  %127 = vmatmul.f32.gmra.mxu0 %v90
  %v128 = vpop.f32.mrf.mxu0
  %v129 = vadd.f32 %v109, %v128
  %130 = vdwg.mxu0
  %vm131 = vcmask 1024
  %132 = vst.msk [vmem:[%s5] sm:$0x3] %vm131, %v129
  // Predicated region
  $region22: #{_lambda_.13} parent=0 // pred_check
    _
  $region23: #{_lambda_.13} parent=0 // pred_check_branch
    %134 = sbr.rel (0) target = $region25
  $region24: #{_lambda_.13} parent=0 // pred_region
    _
  $region25: #{_lambda_.13} parent=0 // pred_fallthru
    _
  // Predicated region
  $region26: #{_lambda_.13} parent=0 // pred_check
    _
  $region27: #{_lambda_.13} parent=0 // pred_check_branch
    %136 = sbr.rel (0) target = $region29
  $region28: #{_lambda_.13} parent=0 // pred_region
    _
  $region29: #{_lambda_.13} parent=0 // pred_fallthru
    _

</llo_original>
